<compile_context>
chip_gen: v5e
topology: v5e:2x2
jax: 0.10.0
libtpu: 0.0.40
codegen_flags: <defaults>
</compile_context>

<pallas_src>
import math
from functools import partial

import jax
import jax.numpy as jnp
from jax.experimental import pallas as pl
from jax.experimental.pallas import tpu as pltpu


def _layernorm(x, g, b, eps, n):
    # matches the repo's custom LayerNorm: torch .std() is unbiased (n-1),
    # and it divides by (std + eps), not sqrt(var + eps).
    mean = jnp.mean(x, axis=-1, keepdims=True)
    var = jnp.sum((x - mean) ** 2, axis=-1, keepdims=True) / (n - 1)
    return g * (x - mean) / (jnp.sqrt(var) + eps) + b


def _gelu(x):
    # BERT-pytorch GELU (tanh approximation)
    return 0.5 * x * (1.0 + jnp.tanh(math.sqrt(2.0 / math.pi) * (x + 0.044715 * x * x * x)))


def transformer_block_kernel(x_ref, kmask_ref,
                             wq_ref, bq_ref, wk_ref, bk_ref, wv_ref, bv_ref,
                             wo_ref, bo_ref,
                             ln1g_ref, ln1b_ref,
                             w1_ref, b1_ref, w2_ref, b2_ref,
                             ln2g_ref, ln2b_ref,
                             o_ref, *, n_heads, d_k, eps):
    x = x_ref[0]                         # (S, H) f32 residual stream
    S, H = x.shape
    bf16 = jnp.bfloat16
    scale = 1.0 / math.sqrt(d_k)

    # Additive key-padding bias computed ONCE (shared by all heads / query rows):
    key_valid = kmask_ref[0]             # (1, S): 1 = attend, 0 = padded key
    bias = jnp.where(key_valid == 0.0, -1e9, 0.0)        # broadcasts to (h, S, S)

    # ---------- sublayer 1: x + MultiHeadAttention(LayerNorm(x)) ----------
    xn = _layernorm(x, ln1g_ref[...], ln1b_ref[...], eps, H)
    # Head-batched projections: weights are already (n_heads, H, d_k), so the
    # head split is free (no lane-sliced stack / no transpose in the kernel).
    xb = jnp.broadcast_to(xn.astype(bf16)[None], (n_heads, S, H))
    qh = (jnp.einsum("nsh,nhd->nsd", xb, wq_ref[...],
                     preferred_element_type=jnp.float32) + bq_ref[...]).astype(bf16)
    kh = (jnp.einsum("nsh,nhd->nsd", xb, wk_ref[...],
                     preferred_element_type=jnp.float32) + bk_ref[...]).astype(bf16)
    vh = (jnp.einsum("nsh,nhd->nsd", xb, wv_ref[...],
                     preferred_element_type=jnp.float32) + bv_ref[...]).astype(bf16)

    # All heads in one batched contraction; K consumed directly (no k.T).
    scores = jnp.einsum("nqd,nkd->nqk", qh, kh,
                        preferred_element_type=jnp.float32)               # (h, S, S)
    scores = scores * scale + bias
    scores = scores - jnp.max(scores, axis=-1, keepdims=True)
    e = jnp.exp(scores)                  # f32 softmax (safe on v5e; TODO bf16 on v6e/v7x)
    p = e * pl.reciprocal(jnp.sum(e, axis=-1, keepdims=True), approx=True)
    ctx = jnp.einsum("nqk,nkd->nqd", p.astype(bf16), vh,
                     preferred_element_type=jnp.float32)                  # (h, S, d_k)

    # Head-merge fused into the output projection: per-head (S,d_k)@(d_k,H),
    # summed over heads -> lane-dense (S, H) output, no concat relayout.
    attn = jnp.sum(jnp.einsum("nqd,nde->nqe", ctx.astype(bf16), wo_ref[...],
                              preferred_element_type=jnp.float32), axis=0) + bo_ref[...]
    x = x + attn                          # residual (sublayer dropout = identity)

    # ---------- sublayer 2: x + FFN(LayerNorm(x)) ----------
    xn2 = _layernorm(x, ln2g_ref[...], ln2b_ref[...], eps, H)
    h1 = _gelu(jnp.dot(xn2.astype(bf16), w1_ref[...],
                       preferred_element_type=jnp.float32) + b1_ref[...])
    ff = jnp.dot(h1.astype(bf16), w2_ref[...],
                 preferred_element_type=jnp.float32) + b2_ref[...]
    x = x + ff                            # residual (sublayer dropout = identity)

    # TODO(synk): final nn.Dropout is identity at inference; no RNG dropout applied.
    o_ref[0] = x


def prepare_params(params, n_heads):
    """One-time weight prep (hoisted out of the per-forward path): per-head
    reshapes + bf16 casts so each forward call does no weight repacking."""
    H = params["wq"].shape[0]
    d_k = H // n_heads
    bf16 = jnp.bfloat16

    def per_head_w(w):       # (H, H) -> (n_heads, H, d_k)
        return jnp.transpose(w.reshape(H, n_heads, d_k), (1, 0, 2)).astype(bf16)

    def per_head_b(b):       # (1, H) -> (n_heads, 1, d_k)
        return b.reshape(n_heads, 1, d_k).astype(jnp.float32)

    return {
        "wq": per_head_w(params["wq"]), "bq": per_head_b(params["bq"]),
        "wk": per_head_w(params["wk"]), "bk": per_head_b(params["bk"]),
        "wv": per_head_w(params["wv"]), "bv": per_head_b(params["bv"]),
        # head-merge fused into the output projection
        "wo": params["wo"].reshape(n_heads, d_k, H).astype(bf16),
        "bo": params["bo"].astype(jnp.float32),
        "ln1_g": params["ln1_g"].astype(jnp.float32),
        "ln1_b": params["ln1_b"].astype(jnp.float32),
        "w1": params["w1"].astype(bf16), "b1": params["b1"].astype(jnp.float32),
        "w2": params["w2"].astype(bf16), "b2": params["b2"].astype(jnp.float32),
        "ln2_g": params["ln2_g"].astype(jnp.float32),
        "ln2_b": params["ln2_b"].astype(jnp.float32),
    }


def _vmem_limit_bytes():
    # Leave headroom below the physical per-core VMEM (64 MiB on v7x, 128 MiB on
    # v5e/v6e) for compiler scratch, spills and the x/o pipeline buffers.
    try:
        cap = pltpu.get_tpu_info().vmem_capacity_bytes
    except Exception:
        cap = 64 * 1024 * 1024
    return min(int(cap * 0.6), 96 * 1024 * 1024)


def transformer_block(x, key_valid, prepped, n_heads):
    """x: (B,S,H) f32.  key_valid: (B,S), 1 = attend to that key, 0 = padded."""
    B, S, H = x.shape
    d_k = H // n_heads
    kmask = key_valid.astype(jnp.float32).reshape(B, 1, S)

    weights = [prepped["wq"], prepped["bq"], prepped["wk"], prepped["bk"],
               prepped["wv"], prepped["bv"], prepped["wo"], prepped["bo"],
               prepped["ln1_g"], prepped["ln1_b"],
               prepped["w1"], prepped["b1"], prepped["w2"], prepped["b2"],
               prepped["ln2_g"], prepped["ln2_b"]]

    kernel = partial(transformer_block_kernel, n_heads=n_heads, d_k=d_k, eps=1e-6)

    def build(resident_weights):
        if resident_weights:
            # Grid-invariant weights resident whole-array in VMEM: single copy,
            # no per-grid-step double-buffering.
            wspecs = [pl.BlockSpec(memory_space=pltpu.MemorySpace.VMEM)
                      for _ in weights]
        else:
            wspecs = [pl.BlockSpec(w.shape, lambda b, _n=w.ndim: (0,) * _n)
                      for w in weights]
        in_specs = [
            pl.BlockSpec((1, S, H), lambda b: (b, 0, 0)),   # x  (per-batch window)
            pl.BlockSpec((1, 1, S), lambda b: (b, 0, 0)),   # key-validity mask
        ] + wspecs
        return pl.pallas_call(
            kernel,
            out_shape=jax.ShapeDtypeStruct((B, S, H), jnp.float32),
            grid_spec=pltpu.PrefetchScalarGridSpec(
                num_scalar_prefetch=0,
                grid=(B,),                                  # parallel over batch
                in_specs=in_specs,
                out_specs=pl.BlockSpec((1, S, H), lambda b: (b, 0, 0)),
            ),
            compiler_params=pltpu.CompilerParams(
                dimension_semantics=("parallel",),
                vmem_limit_bytes=_vmem_limit_bytes(),
            ),
        )

    try:
        return build(True)(x, kmask, *weights)
    except Exception:
        # TODO(synk): fallback to full-shape windowed weight specs if whole-array
        # VMEM residency is unavailable on this jax version.
        return build(False)(x, kmask, *weights)


def reference(x, mask, params, n_heads):
    """Pure-JAX f32 reference mirroring the PyTorch forward exactly."""
    B, S, H = x.shape
    d_k = H // n_heads
    eps = 1e-6

    def ln(t, g, b):
        mean = jnp.mean(t, axis=-1, keepdims=True)
        var = jnp.sum((t - mean) ** 2, axis=-1, keepdims=True) / (H - 1)
        return g[0] * (t - mean) / (jnp.sqrt(var) + eps) + b[0]

    def gelu(t):
        return 0.5 * t * (1.0 + jnp.tanh(math.sqrt(2.0 / math.pi) * (t + 0.044715 * t ** 3)))

    xn = ln(x, params["ln1_g"], params["ln1_b"])
    q = xn @ params["wq"] + params["bq"][0]
    k = xn @ params["wk"] + params["bk"][0]
    v = xn @ params["wv"] + params["bv"][0]

    def split(t):
        return t.reshape(B, S, n_heads, d_k).transpose(0, 2, 1, 3)

    qh, kh, vh = split(q), split(k), split(v)
    scores = jnp.einsum("bhqd,bhkd->bhqk", qh, kh) / math.sqrt(d_k)
    scores = jnp.where(mask[:, None, :, :] == 0, -1e9, scores)
    p = jax.nn.softmax(scores, axis=-1)
    o = jnp.einsum("bhqk,bhkd->bhqd", p, vh).transpose(0, 2, 1, 3).reshape(B, S, H)
    attn = o @ params["wo"] + params["bo"][0]
    x = x + attn

    xn2 = ln(x, params["ln2_g"], params["ln2_b"])
    ff = gelu(xn2 @ params["w1"] + params["b1"][0]) @ params["w2"] + params["b2"][0]
    return x + ff


if __name__ == "__main__":
    B, S, H = 2, 8, 32
    n_heads = 4
    d_ff = 4 * H  # 128

    key = jax.random.PRNGKey(0)
    keys = jax.random.split(key, 16)

    def init(k, shape, scale=0.02):
        return (scale * jax.random.normal(k, shape)).astype(jnp.float32)

    params = {
        "wq": init(keys[0], (H, H)), "bq": init(keys[1], (1, H)),
        "wk": init(keys[2], (H, H)), "bk": init(keys[3], (1, H)),
        "wv": init(keys[4], (H, H)), "bv": init(keys[5], (1, H)),
        "wo": init(keys[6], (H, H)), "bo": init(keys[7], (1, H)),
        "ln1_g": jnp.ones((1, H), jnp.float32), "ln1_b": jnp.zeros((1, H), jnp.float32),
        "w1": init(keys[8], (H, d_ff)), "b1": init(keys[9], (1, d_ff)),
        "w2": init(keys[10], (d_ff, H)), "b2": init(keys[11], (1, H)),
        "ln2_g": jnp.ones((1, H), jnp.float32), "ln2_b": jnp.zeros((1, H), jnp.float32),
    }

    x = jax.random.normal(keys[12], (B, S, H), dtype=jnp.float32)

    # padding-style mask: second example has 2 padded key positions
    lens = jnp.array([S, S - 2])
    key_valid = (jnp.arange(S)[None, :] < lens[:, None]).astype(jnp.float32)  # (B, S)
    mask = jnp.broadcast_to(key_valid[:, None, :], (B, S, S))                 # reference mask

    prepped = prepare_params(params, n_heads)          # one-time weight prep
    out = transformer_block(x, key_valid, prepped, n_heads)
    jax.block_until_ready(out)

    ref = reference(x, mask, params, n_heads)
    assert out.shape == (B, S, H) and out.dtype == jnp.float32
    max_err = jnp.max(jnp.abs(out - ref))
    assert jnp.allclose(out, ref, rtol=2e-3, atol=2e-3), f"mismatch vs reference (max|err|={max_err})"

    print("KERNEL_OK")
</pallas_src>

<mosaic_0001>
module attributes {stable_mosaic.version = 11 : i64} {
  func.func @transformer_block_kernel(%arg0: i32, %arg1: memref<1x8x32xf32, #tpu.memory_space<vmem>>, %arg2: memref<1x1x8xf32, #tpu.memory_space<vmem>>, %arg3: memref<4x32x8xbf16, #tpu.memory_space<vmem>>, %arg4: memref<4x1x8xf32, #tpu.memory_space<vmem>>, %arg5: memref<4x32x8xbf16, #tpu.memory_space<vmem>>, %arg6: memref<4x1x8xf32, #tpu.memory_space<vmem>>, %arg7: memref<4x32x8xbf16, #tpu.memory_space<vmem>>, %arg8: memref<4x1x8xf32, #tpu.memory_space<vmem>>, %arg9: memref<4x8x32xbf16, #tpu.memory_space<vmem>>, %arg10: memref<1x32xf32, #tpu.memory_space<vmem>>, %arg11: memref<1x32xf32, #tpu.memory_space<vmem>>, %arg12: memref<1x32xf32, #tpu.memory_space<vmem>>, %arg13: memref<32x128xbf16, #tpu.memory_space<vmem>>, %arg14: memref<1x128xf32, #tpu.memory_space<vmem>>, %arg15: memref<128x32xbf16, #tpu.memory_space<vmem>>, %arg16: memref<1x32xf32, #tpu.memory_space<vmem>>, %arg17: memref<1x32xf32, #tpu.memory_space<vmem>>, %arg18: memref<1x32xf32, #tpu.memory_space<vmem>>, %arg19: memref<1x8x32xf32, #tpu.memory_space<vmem>>) attributes {dimension_semantics = [#tpu.dimension_semantics<parallel>], iteration_bounds = array<i64: 2>, scalar_prefetch = 0 : i64, scratch_operands = 0 : i64, tpu.core_type = #tpu.core_type<tc>, window_params = [{transform_indices = @transform_0, window_bounds = array<i64: 1, 8, 32>}, {transform_indices = @transform_1, window_bounds = array<i64: 1, 1, 8>}, {pipeline_mode = #tpu.pipeline_mode<synchronous>, transform_indices = @transform_2, window_bounds = array<i64: 4, 32, 8>}, {pipeline_mode = #tpu.pipeline_mode<synchronous>, transform_indices = @transform_3, window_bounds = array<i64: 4, 1, 8>}, {pipeline_mode = #tpu.pipeline_mode<synchronous>, transform_indices = @transform_4, window_bounds = array<i64: 4, 32, 8>}, {pipeline_mode = #tpu.pipeline_mode<synchronous>, transform_indices = @transform_5, window_bounds = array<i64: 4, 1, 8>}, {pipeline_mode = #tpu.pipeline_mode<synchronous>, transform_indices = @transform_6, window_bounds = array<i64: 4, 32, 8>}, {pipeline_mode = #tpu.pipeline_mode<synchronous>, transform_indices = @transform_7, window_bounds = array<i64: 4, 1, 8>}, {pipeline_mode = #tpu.pipeline_mode<synchronous>, transform_indices = @transform_8, window_bounds = array<i64: 4, 8, 32>}, {pipeline_mode = #tpu.pipeline_mode<synchronous>, transform_indices = @transform_9, window_bounds = array<i64: 1, 32>}, {pipeline_mode = #tpu.pipeline_mode<synchronous>, transform_indices = @transform_10, window_bounds = array<i64: 1, 32>}, {pipeline_mode = #tpu.pipeline_mode<synchronous>, transform_indices = @transform_11, window_bounds = array<i64: 1, 32>}, {pipeline_mode = #tpu.pipeline_mode<synchronous>, transform_indices = @transform_12, window_bounds = array<i64: 32, 128>}, {pipeline_mode = #tpu.pipeline_mode<synchronous>, transform_indices = @transform_13, window_bounds = array<i64: 1, 128>}, {pipeline_mode = #tpu.pipeline_mode<synchronous>, transform_indices = @transform_14, window_bounds = array<i64: 128, 32>}, {pipeline_mode = #tpu.pipeline_mode<synchronous>, transform_indices = @transform_15, window_bounds = array<i64: 1, 32>}, {pipeline_mode = #tpu.pipeline_mode<synchronous>, transform_indices = @transform_16, window_bounds = array<i64: 1, 32>}, {pipeline_mode = #tpu.pipeline_mode<synchronous>, transform_indices = @transform_17, window_bounds = array<i64: 1, 32>}, {transform_indices = @transform_18, window_bounds = array<i64: 1, 8, 32>}]} {
    %c0 = arith.constant 0 : index
    %c0_0 = arith.constant 0 : index
    %c0_1 = arith.constant 0 : index
    %0 = vector.load %arg1[%c0, %c0_0, %c0_1] : memref<1x8x32xf32, #tpu.memory_space<vmem>>, vector<1x8x32xf32>
    %1 = vector.shape_cast %0 : vector<1x8x32xf32> to vector<8x32xf32>
    %c0_2 = arith.constant 0 : index
    %c0_3 = arith.constant 0 : index
    %c0_4 = arith.constant 0 : index
    %2 = vector.load %arg2[%c0_2, %c0_3, %c0_4] : memref<1x1x8xf32, #tpu.memory_space<vmem>>, vector<1x1x8xf32>
    %3 = vector.shape_cast %2 : vector<1x1x8xf32> to vector<1x8xf32>
    %cst = arith.constant 0.000000e+00 : f32
    %4 = vector.broadcast %cst : f32 to vector<1x8xf32>
    %5 = arith.cmpf oeq, %3, %4 : vector<1x8xf32>
    %cst_5 = arith.constant -1.000000e+09 : f32
    %cst_6 = arith.constant 0.000000e+00 : f32
    %6 = vector.broadcast %cst_5 : f32 to vector<1x8xf32>
    %7 = vector.broadcast %cst_6 : f32 to vector<1x8xf32>
    %8 = arith.select %5, %6, %7 : vector<1x8xi1>, vector<1x8xf32>
    %c0_7 = arith.constant 0 : index
    %c0_8 = arith.constant 0 : index
    %9 = vector.load %arg11[%c0_7, %c0_8] : memref<1x32xf32, #tpu.memory_space<vmem>>, vector<1x32xf32>
    %c0_9 = arith.constant 0 : index
    %c0_10 = arith.constant 0 : index
    %10 = vector.load %arg12[%c0_9, %c0_10] : memref<1x32xf32, #tpu.memory_space<vmem>>, vector<1x32xf32>
    %cst_11 = arith.constant dense<0.000000e+00> : vector<8xf32>
    %11 = vector.multi_reduction <add>, %1, %cst_11 [1] : vector<8x32xf32> to vector<8xf32>
    %12 = vector.shape_cast %11 : vector<8xf32> to vector<8x1xf32>
    %cst_12 = arith.constant 3.200000e+01 : f32
    %13 = vector.broadcast %cst_12 : f32 to vector<8x1xf32>
    %14 = arith.divf %12, %13 : vector<8x1xf32>
    %15 = vector.broadcast %14 : vector<8x1xf32> to vector<8x32xf32>
    %16 = arith.subf %1, %15 : vector<8x32xf32>
    %17 = arith.mulf %16, %16 : vector<8x32xf32>
    %cst_13 = arith.constant dense<0.000000e+00> : vector<8xf32>
    %18 = vector.multi_reduction <add>, %17, %cst_13 [1] : vector<8x32xf32> to vector<8xf32>
    %19 = vector.shape_cast %18 : vector<8xf32> to vector<8x1xf32>
    %cst_14 = arith.constant 3.100000e+01 : f32
    %20 = vector.broadcast %cst_14 : f32 to vector<8x1xf32>
    %21 = arith.divf %19, %20 : vector<8x1xf32>
    %22 = vector.broadcast %14 : vector<8x1xf32> to vector<8x32xf32>
    %23 = arith.subf %1, %22 : vector<8x32xf32>
    %24 = vector.broadcast %9 : vector<1x32xf32> to vector<8x32xf32>
    %25 = arith.mulf %24, %23 : vector<8x32xf32>
    %26 = math.sqrt %21 : vector<8x1xf32>
    %cst_15 = arith.constant 9.99999997E-7 : f32
    %27 = vector.broadcast %cst_15 : f32 to vector<8x1xf32>
    %28 = arith.addf %26, %27 : vector<8x1xf32>
    %29 = vector.broadcast %28 : vector<8x1xf32> to vector<8x32xf32>
    %30 = arith.divf %25, %29 : vector<8x32xf32>
    %31 = vector.broadcast %10 : vector<1x32xf32> to vector<8x32xf32>
    %32 = arith.addf %30, %31 : vector<8x32xf32>
    %33 = arith.truncf %32 : vector<8x32xf32> to vector<8x32xbf16>
    %34 = vector.shape_cast %33 : vector<8x32xbf16> to vector<1x8x32xbf16>
    %35 = vector.shape_cast %34 : vector<1x8x32xbf16> to vector<1x8x32xbf16>
    %36 = vector.broadcast %35 : vector<1x8x32xbf16> to vector<4x8x32xbf16>
    %c0_16 = arith.constant 0 : index
    %c0_17 = arith.constant 0 : index
    %c0_18 = arith.constant 0 : index
    %37 = vector.load %arg3[%c0_16, %c0_17, %c0_18] : memref<4x32x8xbf16, #tpu.memory_space<vmem>>, vector<4x32x8xbf16>
    "tpu.trace_start"() <{level = 10 : i32, message = "nsh,nhd->nsd"}> : () -> ()
    %cst_19 = arith.constant dense<0.000000e+00> : vector<4x8x8xf32>
    %38 = tpu.matmul %36, %37, %cst_19 {dimension_numbers = #tpu.dot_dimension_numbers<[2], [1], [1], [2], [0, 0, 0, 1, 1, 2], [0], [0]>} : vector<4x8x32xbf16>, vector<4x32x8xbf16>, vector<4x8x8xf32> -> vector<4x8x8xf32>
    "tpu.trace_stop"() : () -> ()
    %c0_20 = arith.constant 0 : index
    %c0_21 = arith.constant 0 : index
    %c0_22 = arith.constant 0 : index
    %39 = vector.load %arg4[%c0_20, %c0_21, %c0_22] : memref<4x1x8xf32, #tpu.memory_space<vmem>>, vector<4x1x8xf32>
    %40 = vector.broadcast %39 : vector<4x1x8xf32> to vector<4x8x8xf32>
    %41 = arith.addf %38, %40 : vector<4x8x8xf32>
    %42 = arith.truncf %41 : vector<4x8x8xf32> to vector<4x8x8xbf16>
    %c0_23 = arith.constant 0 : index
    %c0_24 = arith.constant 0 : index
    %c0_25 = arith.constant 0 : index
    %43 = vector.load %arg5[%c0_23, %c0_24, %c0_25] : memref<4x32x8xbf16, #tpu.memory_space<vmem>>, vector<4x32x8xbf16>
    "tpu.trace_start"() <{level = 10 : i32, message = "nsh,nhd->nsd"}> : () -> ()
    %cst_26 = arith.constant dense<0.000000e+00> : vector<4x8x8xf32>
    %44 = tpu.matmul %36, %43, %cst_26 {dimension_numbers = #tpu.dot_dimension_numbers<[2], [1], [1], [2], [0, 0, 0, 1, 1, 2], [0], [0]>} : vector<4x8x32xbf16>, vector<4x32x8xbf16>, vector<4x8x8xf32> -> vector<4x8x8xf32>
    "tpu.trace_stop"() : () -> ()
    %c0_27 = arith.constant 0 : index
    %c0_28 = arith.constant 0 : index
    %c0_29 = arith.constant 0 : index
    %45 = vector.load %arg6[%c0_27, %c0_28, %c0_29] : memref<4x1x8xf32, #tpu.memory_space<vmem>>, vector<4x1x8xf32>
    %46 = vector.broadcast %45 : vector<4x1x8xf32> to vector<4x8x8xf32>
    %47 = arith.addf %44, %46 : vector<4x8x8xf32>
    %48 = arith.truncf %47 : vector<4x8x8xf32> to vector<4x8x8xbf16>
    %c0_30 = arith.constant 0 : index
    %c0_31 = arith.constant 0 : index
    %c0_32 = arith.constant 0 : index
    %49 = vector.load %arg7[%c0_30, %c0_31, %c0_32] : memref<4x32x8xbf16, #tpu.memory_space<vmem>>, vector<4x32x8xbf16>
    "tpu.trace_start"() <{level = 10 : i32, message = "nsh,nhd->nsd"}> : () -> ()
    %cst_33 = arith.constant dense<0.000000e+00> : vector<4x8x8xf32>
    %50 = tpu.matmul %36, %49, %cst_33 {dimension_numbers = #tpu.dot_dimension_numbers<[2], [1], [1], [2], [0, 0, 0, 1, 1, 2], [0], [0]>} : vector<4x8x32xbf16>, vector<4x32x8xbf16>, vector<4x8x8xf32> -> vector<4x8x8xf32>
    "tpu.trace_stop"() : () -> ()
    %c0_34 = arith.constant 0 : index
    %c0_35 = arith.constant 0 : index
    %c0_36 = arith.constant 0 : index
    %51 = vector.load %arg8[%c0_34, %c0_35, %c0_36] : memref<4x1x8xf32, #tpu.memory_space<vmem>>, vector<4x1x8xf32>
    %52 = vector.broadcast %51 : vector<4x1x8xf32> to vector<4x8x8xf32>
    %53 = arith.addf %50, %52 : vector<4x8x8xf32>
    %54 = arith.truncf %53 : vector<4x8x8xf32> to vector<4x8x8xbf16>
    "tpu.trace_start"() <{level = 10 : i32, message = "nqd,nkd->nqk"}> : () -> ()
    %cst_37 = arith.constant dense<0.000000e+00> : vector<4x8x8xf32>
    %55 = tpu.matmul %42, %48, %cst_37 {dimension_numbers = #tpu.dot_dimension_numbers<[2], [2], [1], [1], [0, 0, 0, 1, 1, 1], [0], [0]>} : vector<4x8x8xbf16>, vector<4x8x8xbf16>, vector<4x8x8xf32> -> vector<4x8x8xf32>
    "tpu.trace_stop"() : () -> ()
    %cst_38 = arith.constant 0.353553385 : f32
    %56 = vector.broadcast %cst_38 : f32 to vector<4x8x8xf32>
    %57 = arith.mulf %55, %56 : vector<4x8x8xf32>
    %58 = vector.shape_cast %8 : vector<1x8xf32> to vector<1x1x8xf32>
    %59 = vector.broadcast %58 : vector<1x1x8xf32> to vector<4x8x8xf32>
    %60 = arith.addf %57, %59 : vector<4x8x8xf32>
    %cst_39 = arith.constant dense<0xFF800000> : vector<4x8xf32>
    %61 = vector.multi_reduction <maximumf>, %60, %cst_39 [2] : vector<4x8x8xf32> to vector<4x8xf32>
    %62 = vector.shape_cast %61 : vector<4x8xf32> to vector<4x8x1xf32>
    %63 = vector.broadcast %62 : vector<4x8x1xf32> to vector<4x8x8xf32>
    %64 = arith.subf %60, %63 : vector<4x8x8xf32>
    %65 = math.exp %64 : vector<4x8x8xf32>
    %cst_40 = arith.constant dense<0.000000e+00> : vector<4x8xf32>
    %66 = vector.multi_reduction <add>, %65, %cst_40 [2] : vector<4x8x8xf32> to vector<4x8xf32>
    %67 = vector.shape_cast %66 : vector<4x8xf32> to vector<4x8x1xf32>
    %68 = tpu.reciprocal %67 {approx = true} : vector<4x8x1xf32> -> vector<4x8x1xf32>
    %69 = vector.broadcast %68 : vector<4x8x1xf32> to vector<4x8x8xf32>
    %70 = arith.mulf %65, %69 : vector<4x8x8xf32>
    %71 = arith.truncf %70 : vector<4x8x8xf32> to vector<4x8x8xbf16>
    "tpu.trace_start"() <{level = 10 : i32, message = "nqk,nkd->nqd"}> : () -> ()
    %cst_41 = arith.constant dense<0.000000e+00> : vector<4x8x8xf32>
    %72 = tpu.matmul %71, %54, %cst_41 {dimension_numbers = #tpu.dot_dimension_numbers<[2], [1], [1], [2], [0, 0, 0, 1, 1, 2], [0], [0]>} : vector<4x8x8xbf16>, vector<4x8x8xbf16>, vector<4x8x8xf32> -> vector<4x8x8xf32>
    "tpu.trace_stop"() : () -> ()
    %73 = arith.truncf %72 : vector<4x8x8xf32> to vector<4x8x8xbf16>
    %c0_42 = arith.constant 0 : index
    %c0_43 = arith.constant 0 : index
    %c0_44 = arith.constant 0 : index
    %74 = vector.load %arg9[%c0_42, %c0_43, %c0_44] : memref<4x8x32xbf16, #tpu.memory_space<vmem>>, vector<4x8x32xbf16>
    "tpu.trace_start"() <{level = 10 : i32, message = "nqd,nde->nqe"}> : () -> ()
    %cst_45 = arith.constant dense<0.000000e+00> : vector<4x8x32xf32>
    %75 = tpu.matmul %73, %74, %cst_45 {dimension_numbers = #tpu.dot_dimension_numbers<[2], [1], [1], [2], [0, 0, 0, 1, 1, 2], [0], [0]>} : vector<4x8x8xbf16>, vector<4x8x32xbf16>, vector<4x8x32xf32> -> vector<4x8x32xf32>
    "tpu.trace_stop"() : () -> ()
    %cst_46 = arith.constant dense<0.000000e+00> : vector<8x32xf32>
    %76 = vector.multi_reduction <add>, %75, %cst_46 [0] : vector<4x8x32xf32> to vector<8x32xf32>
    %c0_47 = arith.constant 0 : index
    %c0_48 = arith.constant 0 : index
    %77 = vector.load %arg10[%c0_47, %c0_48] : memref<1x32xf32, #tpu.memory_space<vmem>>, vector<1x32xf32>
    %78 = vector.broadcast %77 : vector<1x32xf32> to vector<8x32xf32>
    %79 = arith.addf %76, %78 : vector<8x32xf32>
    %80 = arith.addf %1, %79 : vector<8x32xf32>
    %c0_49 = arith.constant 0 : index
    %c0_50 = arith.constant 0 : index
    %81 = vector.load %arg17[%c0_49, %c0_50] : memref<1x32xf32, #tpu.memory_space<vmem>>, vector<1x32xf32>
    %c0_51 = arith.constant 0 : index
    %c0_52 = arith.constant 0 : index
    %82 = vector.load %arg18[%c0_51, %c0_52] : memref<1x32xf32, #tpu.memory_space<vmem>>, vector<1x32xf32>
    %cst_53 = arith.constant dense<0.000000e+00> : vector<8xf32>
    %83 = vector.multi_reduction <add>, %80, %cst_53 [1] : vector<8x32xf32> to vector<8xf32>
    %84 = vector.shape_cast %83 : vector<8xf32> to vector<8x1xf32>
    %cst_54 = arith.constant 3.200000e+01 : f32
    %85 = vector.broadcast %cst_54 : f32 to vector<8x1xf32>
    %86 = arith.divf %84, %85 : vector<8x1xf32>
    %87 = vector.broadcast %86 : vector<8x1xf32> to vector<8x32xf32>
    %88 = arith.subf %80, %87 : vector<8x32xf32>
    %89 = arith.mulf %88, %88 : vector<8x32xf32>
    %cst_55 = arith.constant dense<0.000000e+00> : vector<8xf32>
    %90 = vector.multi_reduction <add>, %89, %cst_55 [1] : vector<8x32xf32> to vector<8xf32>
    %91 = vector.shape_cast %90 : vector<8xf32> to vector<8x1xf32>
    %cst_56 = arith.constant 3.100000e+01 : f32
    %92 = vector.broadcast %cst_56 : f32 to vector<8x1xf32>
    %93 = arith.divf %91, %92 : vector<8x1xf32>
    %94 = vector.broadcast %86 : vector<8x1xf32> to vector<8x32xf32>
    %95 = arith.subf %80, %94 : vector<8x32xf32>
    %96 = vector.broadcast %81 : vector<1x32xf32> to vector<8x32xf32>
    %97 = arith.mulf %96, %95 : vector<8x32xf32>
    %98 = math.sqrt %93 : vector<8x1xf32>
    %cst_57 = arith.constant 9.99999997E-7 : f32
    %99 = vector.broadcast %cst_57 : f32 to vector<8x1xf32>
    %100 = arith.addf %98, %99 : vector<8x1xf32>
    %101 = vector.broadcast %100 : vector<8x1xf32> to vector<8x32xf32>
    %102 = arith.divf %97, %101 : vector<8x32xf32>
    %103 = vector.broadcast %82 : vector<1x32xf32> to vector<8x32xf32>
    %104 = arith.addf %102, %103 : vector<8x32xf32>
    %105 = arith.truncf %104 : vector<8x32xf32> to vector<8x32xbf16>
    %c0_58 = arith.constant 0 : index
    %c0_59 = arith.constant 0 : index
    %106 = vector.load %arg13[%c0_58, %c0_59] : memref<32x128xbf16, #tpu.memory_space<vmem>>, vector<32x128xbf16>
    %cst_60 = arith.constant dense<0.000000e+00> : vector<8x128xf32>
    %107 = tpu.matmul %105, %106, %cst_60 {dimension_numbers = #tpu.dot_dimension_numbers<[1], [0], [0], [1], [0, 0, 1, 1], [], []>} : vector<8x32xbf16>, vector<32x128xbf16>, vector<8x128xf32> -> vector<8x128xf32>
    %c0_61 = arith.constant 0 : index
    %c0_62 = arith.constant 0 : index
    %108 = vector.load %arg14[%c0_61, %c0_62] : memref<1x128xf32, #tpu.memory_space<vmem>>, vector<1x128xf32>
    %109 = vector.broadcast %108 : vector<1x128xf32> to vector<8x128xf32>
    %110 = arith.addf %107, %109 : vector<8x128xf32>
    %cst_63 = arith.constant 5.000000e-01 : f32
    %111 = vector.broadcast %cst_63 : f32 to vector<8x128xf32>
    %112 = arith.mulf %111, %110 : vector<8x128xf32>
    %cst_64 = arith.constant 4.471500e-02 : f32
    %113 = vector.broadcast %cst_64 : f32 to vector<8x128xf32>
    %114 = arith.mulf %113, %110 : vector<8x128xf32>
    %115 = arith.mulf %114, %110 : vector<8x128xf32>
    %116 = arith.mulf %115, %110 : vector<8x128xf32>
    %117 = arith.addf %110, %116 : vector<8x128xf32>
    %cst_65 = arith.constant 0.797884583 : f32
    %118 = vector.broadcast %cst_65 : f32 to vector<8x128xf32>
    %119 = arith.mulf %118, %117 : vector<8x128xf32>
    %120 = math.tanh %119 : vector<8x128xf32>
    %cst_66 = arith.constant 1.000000e+00 : f32
    %121 = vector.broadcast %cst_66 : f32 to vector<8x128xf32>
    %122 = arith.addf %121, %120 : vector<8x128xf32>
    %123 = arith.mulf %112, %122 : vector<8x128xf32>
    %124 = arith.truncf %123 : vector<8x128xf32> to vector<8x128xbf16>
    %c0_67 = arith.constant 0 : index
    %c0_68 = arith.constant 0 : index
    %125 = vector.load %arg15[%c0_67, %c0_68] : memref<128x32xbf16, #tpu.memory_space<vmem>>, vector<128x32xbf16>
    %cst_69 = arith.constant dense<0.000000e+00> : vector<8x32xf32>
    %126 = tpu.matmul %124, %125, %cst_69 {dimension_numbers = #tpu.dot_dimension_numbers<[1], [0], [0], [1], [0, 0, 1, 1], [], []>} : vector<8x128xbf16>, vector<128x32xbf16>, vector<8x32xf32> -> vector<8x32xf32>
    %c0_70 = arith.constant 0 : index
    %c0_71 = arith.constant 0 : index
    %127 = vector.load %arg16[%c0_70, %c0_71] : memref<1x32xf32, #tpu.memory_space<vmem>>, vector<1x32xf32>
    %128 = vector.broadcast %127 : vector<1x32xf32> to vector<8x32xf32>
    %129 = arith.addf %126, %128 : vector<8x32xf32>
    %130 = arith.addf %80, %129 : vector<8x32xf32>
    %c0_72 = arith.constant 0 : index
    %c0_73 = arith.constant 0 : index
    %c0_74 = arith.constant 0 : index
    %131 = vector.load %arg19[%c0_72, %c0_73, %c0_74] : memref<1x8x32xf32, #tpu.memory_space<vmem>>, vector<1x8x32xf32>
    %132 = vector.shape_cast %131 : vector<1x8x32xf32> to vector<8x32xf32>
    %133 = vector.shape_cast %130 : vector<8x32xf32> to vector<1x8x32xf32>
    tpu.vector_store %arg19[%c0_72, %c0_73, %c0_74], %133 {strides = array<i32>} : memref<1x8x32xf32, #tpu.memory_space<vmem>>, vector<1x8x32xf32>,
    return
  }
  func.func @transform_0(%arg0: i32) -> (i32, i32, i32) {
    %c0_i32 = arith.constant 0 : i32
    %c0_i32_0 = arith.constant 0 : i32
    %c0_i32_1 = arith.constant 0 : i32
    return %arg0, %c0_i32, %c0_i32_0 : i32, i32, i32
  }
  func.func @transform_1(%arg0: i32) -> (i32, i32, i32) {
    %c0_i32 = arith.constant 0 : i32
    %c0_i32_0 = arith.constant 0 : i32
    %c0_i32_1 = arith.constant 0 : i32
    return %arg0, %c0_i32, %c0_i32_0 : i32, i32, i32
  }
  func.func @transform_2(%arg0: i32) -> (i32, i32, i32) {
    %c0_i32 = arith.constant 0 : i32
    %c0_i32_0 = arith.constant 0 : i32
    %c0_i32_1 = arith.constant 0 : i32
    %c0_i32_2 = arith.constant 0 : i32
    return %c0_i32, %c0_i32_0, %c0_i32_1 : i32, i32, i32
  }
  func.func @transform_3(%arg0: i32) -> (i32, i32, i32) {
    %c0_i32 = arith.constant 0 : i32
    %c0_i32_0 = arith.constant 0 : i32
    %c0_i32_1 = arith.constant 0 : i32
    %c0_i32_2 = arith.constant 0 : i32
    return %c0_i32, %c0_i32_0, %c0_i32_1 : i32, i32, i32
  }
  func.func @transform_4(%arg0: i32) -> (i32, i32, i32) {
    %c0_i32 = arith.constant 0 : i32
    %c0_i32_0 = arith.constant 0 : i32
    %c0_i32_1 = arith.constant 0 : i32
    %c0_i32_2 = arith.constant 0 : i32
    return %c0_i32, %c0_i32_0, %c0_i32_1 : i32, i32, i32
  }
  func.func @transform_5(%arg0: i32) -> (i32, i32, i32) {
    %c0_i32 = arith.constant 0 : i32
    %c0_i32_0 = arith.constant 0 : i32
    %c0_i32_1 = arith.constant 0 : i32
    %c0_i32_2 = arith.constant 0 : i32
    return %c0_i32, %c0_i32_0, %c0_i32_1 : i32, i32, i32
  }
  func.func @transform_6(%arg0: i32) -> (i32, i32, i32) {
    %c0_i32 = arith.constant 0 : i32
    %c0_i32_0 = arith.constant 0 : i32
    %c0_i32_1 = arith.constant 0 : i32
    %c0_i32_2 = arith.constant 0 : i32
    return %c0_i32, %c0_i32_0, %c0_i32_1 : i32, i32, i32
  }
  func.func @transform_7(%arg0: i32) -> (i32, i32, i32) {
    %c0_i32 = arith.constant 0 : i32
    %c0_i32_0 = arith.constant 0 : i32
    %c0_i32_1 = arith.constant 0 : i32
    %c0_i32_2 = arith.constant 0 : i32
    return %c0_i32, %c0_i32_0, %c0_i32_1 : i32, i32, i32
  }
  func.func @transform_8(%arg0: i32) -> (i32, i32, i32) {
    %c0_i32 = arith.constant 0 : i32
    %c0_i32_0 = arith.constant 0 : i32
    %c0_i32_1 = arith.constant 0 : i32
    %c0_i32_2 = arith.constant 0 : i32
    return %c0_i32, %c0_i32_0, %c0_i32_1 : i32, i32, i32
  }
  func.func @transform_9(%arg0: i32) -> (i32, i32) {
    %c0_i32 = arith.constant 0 : i32
    %c0_i32_0 = arith.constant 0 : i32
    %c0_i32_1 = arith.constant 0 : i32
    return %c0_i32, %c0_i32_0 : i32, i32
  }
  func.func @transform_10(%arg0: i32) -> (i32, i32) {
    %c0_i32 = arith.constant 0 : i32
    %c0_i32_0 = arith.constant 0 : i32
    %c0_i32_1 = arith.constant 0 : i32
    return %c0_i32, %c0_i32_0 : i32, i32
  }
  func.func @transform_11(%arg0: i32) -> (i32, i32) {
    %c0_i32 = arith.constant 0 : i32
    %c0_i32_0 = arith.constant 0 : i32
    %c0_i32_1 = arith.constant 0 : i32
    return %c0_i32, %c0_i32_0 : i32, i32
  }
  func.func @transform_12(%arg0: i32) -> (i32, i32) {
    %c0_i32 = arith.constant 0 : i32
    %c0_i32_0 = arith.constant 0 : i32
    %c0_i32_1 = arith.constant 0 : i32
    return %c0_i32, %c0_i32_0 : i32, i32
  }
  func.func @transform_13(%arg0: i32) -> (i32, i32) {
    %c0_i32 = arith.constant 0 : i32
    %c0_i32_0 = arith.constant 0 : i32
    %c0_i32_1 = arith.constant 0 : i32
    return %c0_i32, %c0_i32_0 : i32, i32
  }
  func.func @transform_14(%arg0: i32) -> (i32, i32) {
    %c0_i32 = arith.constant 0 : i32
    %c0_i32_0 = arith.constant 0 : i32
    %c0_i32_1 = arith.constant 0 : i32
    return %c0_i32, %c0_i32_0 : i32, i32
  }
  func.func @transform_15(%arg0: i32) -> (i32, i32) {
    %c0_i32 = arith.constant 0 : i32
    %c0_i32_0 = arith.constant 0 : i32
    %c0_i32_1 = arith.constant 0 : i32
    return %c0_i32, %c0_i32_0 : i32, i32
  }
  func.func @transform_16(%arg0: i32) -> (i32, i32) {
    %c0_i32 = arith.constant 0 : i32
    %c0_i32_0 = arith.constant 0 : i32
    %c0_i32_1 = arith.constant 0 : i32
    return %c0_i32, %c0_i32_0 : i32, i32
  }
  func.func @transform_17(%arg0: i32) -> (i32, i32) {
    %c0_i32 = arith.constant 0 : i32
    %c0_i32_0 = arith.constant 0 : i32
    %c0_i32_1 = arith.constant 0 : i32
    return %c0_i32, %c0_i32_0 : i32, i32
  }
  func.func @transform_18(%arg0: i32) -> (i32, i32, i32) {
    %c0_i32 = arith.constant 0 : i32
    %c0_i32_0 = arith.constant 0 : i32
    %c0_i32_1 = arith.constant 0 : i32
    return %arg0, %c0_i32, %c0_i32_0 : i32, i32, i32
  }
}

module attributes {stable_mosaic.version = 11 : i64} {
  func.func @transformer_block_kernel(%arg0: i32, %arg1: memref<1x8x32xf32, #tpu.memory_space<vmem>>, %arg2: memref<1x1x8xf32, #tpu.memory_space<vmem>>, %arg3: memref<4x32x8xbf16, #tpu.memory_space<vmem>>, %arg4: memref<4x1x8xf32, #tpu.memory_space<vmem>>, %arg5: memref<4x32x8xbf16, #tpu.memory_space<vmem>>, %arg6: memref<4x1x8xf32, #tpu.memory_space<vmem>>, %arg7: memref<4x32x8xbf16, #tpu.memory_space<vmem>>, %arg8: memref<4x1x8xf32, #tpu.memory_space<vmem>>, %arg9: memref<4x8x32xbf16, #tpu.memory_space<vmem>>, %arg10: memref<1x32xf32, #tpu.memory_space<vmem>>, %arg11: memref<1x32xf32, #tpu.memory_space<vmem>>, %arg12: memref<1x32xf32, #tpu.memory_space<vmem>>, %arg13: memref<32x128xbf16, #tpu.memory_space<vmem>>, %arg14: memref<1x128xf32, #tpu.memory_space<vmem>>, %arg15: memref<128x32xbf16, #tpu.memory_space<vmem>>, %arg16: memref<1x32xf32, #tpu.memory_space<vmem>>, %arg17: memref<1x32xf32, #tpu.memory_space<vmem>>, %arg18: memref<1x32xf32, #tpu.memory_space<vmem>>, %arg19: memref<1x8x32xf32, #tpu.memory_space<vmem>>) attributes {dimension_semantics = [#tpu.dimension_semantics<parallel>], iteration_bounds = array<i64: 2>, scalar_prefetch = 0 : i64, scratch_operands = 0 : i64, tpu.core_type = #tpu.core_type<tc>, window_params = [{transform_indices = @transform_0, window_bounds = array<i64: 1, 8, 32>}, {transform_indices = @transform_1, window_bounds = array<i64: 1, 1, 8>}, {pipeline_mode = #tpu.pipeline_mode<synchronous>, transform_indices = @transform_2, window_bounds = array<i64: 4, 32, 8>}, {pipeline_mode = #tpu.pipeline_mode<synchronous>, transform_indices = @transform_3, window_bounds = array<i64: 4, 1, 8>}, {pipeline_mode = #tpu.pipeline_mode<synchronous>, transform_indices = @transform_4, window_bounds = array<i64: 4, 32, 8>}, {pipeline_mode = #tpu.pipeline_mode<synchronous>, transform_indices = @transform_5, window_bounds = array<i64: 4, 1, 8>}, {pipeline_mode = #tpu.pipeline_mode<synchronous>, transform_indices = @transform_6, window_bounds = array<i64: 4, 32, 8>}, {pipeline_mode = #tpu.pipeline_mode<synchronous>, transform_indices = @transform_7, window_bounds = array<i64: 4, 1, 8>}, {pipeline_mode = #tpu.pipeline_mode<synchronous>, transform_indices = @transform_8, window_bounds = array<i64: 4, 8, 32>}, {pipeline_mode = #tpu.pipeline_mode<synchronous>, transform_indices = @transform_9, window_bounds = array<i64: 1, 32>}, {pipeline_mode = #tpu.pipeline_mode<synchronous>, transform_indices = @transform_10, window_bounds = array<i64: 1, 32>}, {pipeline_mode = #tpu.pipeline_mode<synchronous>, transform_indices = @transform_11, window_bounds = array<i64: 1, 32>}, {pipeline_mode = #tpu.pipeline_mode<synchronous>, transform_indices = @transform_12, window_bounds = array<i64: 32, 128>}, {pipeline_mode = #tpu.pipeline_mode<synchronous>, transform_indices = @transform_13, window_bounds = array<i64: 1, 128>}, {pipeline_mode = #tpu.pipeline_mode<synchronous>, transform_indices = @transform_14, window_bounds = array<i64: 128, 32>}, {pipeline_mode = #tpu.pipeline_mode<synchronous>, transform_indices = @transform_15, window_bounds = array<i64: 1, 32>}, {pipeline_mode = #tpu.pipeline_mode<synchronous>, transform_indices = @transform_16, window_bounds = array<i64: 1, 32>}, {pipeline_mode = #tpu.pipeline_mode<synchronous>, transform_indices = @transform_17, window_bounds = array<i64: 1, 32>}, {transform_indices = @transform_18, window_bounds = array<i64: 1, 8, 32>}]} {
    %c0 = arith.constant 0 : index
    %c0_0 = arith.constant 0 : index
    %c0_1 = arith.constant 0 : index
    %0 = vector.load %arg1[%c0, %c0_0, %c0_1] : memref<1x8x32xf32, #tpu.memory_space<vmem>>, vector<1x8x32xf32>
    %1 = vector.shape_cast %0 : vector<1x8x32xf32> to vector<8x32xf32>
    %c0_2 = arith.constant 0 : index
    %c0_3 = arith.constant 0 : index
    %c0_4 = arith.constant 0 : index
    %2 = vector.load %arg2[%c0_2, %c0_3, %c0_4] : memref<1x1x8xf32, #tpu.memory_space<vmem>>, vector<1x1x8xf32>
    %3 = vector.shape_cast %2 : vector<1x1x8xf32> to vector<1x8xf32>
    %cst = arith.constant 0.000000e+00 : f32
    %4 = vector.broadcast %cst : f32 to vector<1x8xf32>
    %5 = arith.cmpf oeq, %3, %4 : vector<1x8xf32>
    %cst_5 = arith.constant -1.000000e+09 : f32
    %cst_6 = arith.constant 0.000000e+00 : f32
    %6 = vector.broadcast %cst_5 : f32 to vector<1x8xf32>
    %7 = vector.broadcast %cst_6 : f32 to vector<1x8xf32>
    %8 = arith.select %5, %6, %7 : vector<1x8xi1>, vector<1x8xf32>
    %c0_7 = arith.constant 0 : index
    %c0_8 = arith.constant 0 : index
    %9 = vector.load %arg11[%c0_7, %c0_8] : memref<1x32xf32, #tpu.memory_space<vmem>>, vector<1x32xf32>
    %c0_9 = arith.constant 0 : index
    %c0_10 = arith.constant 0 : index
    %10 = vector.load %arg12[%c0_9, %c0_10] : memref<1x32xf32, #tpu.memory_space<vmem>>, vector<1x32xf32>
    %cst_11 = arith.constant dense<0.000000e+00> : vector<8xf32>
    %11 = vector.multi_reduction <add>, %1, %cst_11 [1] : vector<8x32xf32> to vector<8xf32>
    %12 = vector.shape_cast %11 : vector<8xf32> to vector<8x1xf32>
    %cst_12 = arith.constant 3.200000e+01 : f32
    %13 = vector.broadcast %cst_12 : f32 to vector<8x1xf32>
    %14 = arith.divf %12, %13 : vector<8x1xf32>
    %15 = vector.broadcast %14 : vector<8x1xf32> to vector<8x32xf32>
    %16 = arith.subf %1, %15 : vector<8x32xf32>
    %17 = arith.mulf %16, %16 : vector<8x32xf32>
    %cst_13 = arith.constant dense<0.000000e+00> : vector<8xf32>
    %18 = vector.multi_reduction <add>, %17, %cst_13 [1] : vector<8x32xf32> to vector<8xf32>
    %19 = vector.shape_cast %18 : vector<8xf32> to vector<8x1xf32>
    %cst_14 = arith.constant 3.100000e+01 : f32
    %20 = vector.broadcast %cst_14 : f32 to vector<8x1xf32>
    %21 = arith.divf %19, %20 : vector<8x1xf32>
    %22 = vector.broadcast %14 : vector<8x1xf32> to vector<8x32xf32>
    %23 = arith.subf %1, %22 : vector<8x32xf32>
    %24 = vector.broadcast %9 : vector<1x32xf32> to vector<8x32xf32>
    %25 = arith.mulf %24, %23 : vector<8x32xf32>
    %26 = math.sqrt %21 : vector<8x1xf32>
    %cst_15 = arith.constant 9.99999997E-7 : f32
    %27 = vector.broadcast %cst_15 : f32 to vector<8x1xf32>
    %28 = arith.addf %26, %27 : vector<8x1xf32>
    %29 = vector.broadcast %28 : vector<8x1xf32> to vector<8x32xf32>
    %30 = arith.divf %25, %29 : vector<8x32xf32>
    %31 = vector.broadcast %10 : vector<1x32xf32> to vector<8x32xf32>
    %32 = arith.addf %30, %31 : vector<8x32xf32>
    %33 = arith.truncf %32 : vector<8x32xf32> to vector<8x32xbf16>
    %34 = vector.shape_cast %33 : vector<8x32xbf16> to vector<1x8x32xbf16>
    %35 = vector.shape_cast %34 : vector<1x8x32xbf16> to vector<1x8x32xbf16>
    %36 = vector.broadcast %35 : vector<1x8x32xbf16> to vector<4x8x32xbf16>
    %c0_16 = arith.constant 0 : index
    %c0_17 = arith.constant 0 : index
    %c0_18 = arith.constant 0 : index
    %37 = vector.load %arg3[%c0_16, %c0_17, %c0_18] : memref<4x32x8xbf16, #tpu.memory_space<vmem>>, vector<4x32x8xbf16>
    "tpu.trace_start"() <{level = 10 : i32, message = "nsh,nhd->nsd"}> : () -> ()
    %cst_19 = arith.constant dense<0.000000e+00> : vector<4x8x8xf32>
    %38 = tpu.matmul %36, %37, %cst_19 {dimension_numbers = #tpu.dot_dimension_numbers<[2], [1], [1], [2], [0, 0, 0, 1, 1, 2], [0], [0]>} : vector<4x8x32xbf16>, vector<4x32x8xbf16>, vector<4x8x8xf32> -> vector<4x8x8xf32>
    "tpu.trace_stop"() : () -> ()
    %c0_20 = arith.constant 0 : index
    %c0_21 = arith.constant 0 : index
    %c0_22 = arith.constant 0 : index
    %39 = vector.load %arg4[%c0_20, %c0_21, %c0_22] : memref<4x1x8xf32, #tpu.memory_space<vmem>>, vector<4x1x8xf32>
    %40 = vector.broadcast %39 : vector<4x1x8xf32> to vector<4x8x8xf32>
    %41 = arith.addf %38, %40 : vector<4x8x8xf32>
    %42 = arith.truncf %41 : vector<4x8x8xf32> to vector<4x8x8xbf16>
    %c0_23 = arith.constant 0 : index
    %c0_24 = arith.constant 0 : index
    %c0_25 = arith.constant 0 : index
    %43 = vector.load %arg5[%c0_23, %c0_24, %c0_25] : memref<4x32x8xbf16, #tpu.memory_space<vmem>>, vector<4x32x8xbf16>
    "tpu.trace_start"() <{level = 10 : i32, message = "nsh,nhd->nsd"}> : () -> ()
    %cst_26 = arith.constant dense<0.000000e+00> : vector<4x8x8xf32>
    %44 = tpu.matmul %36, %43, %cst_26 {dimension_numbers = #tpu.dot_dimension_numbers<[2], [1], [1], [2], [0, 0, 0, 1, 1, 2], [0], [0]>} : vector<4x8x32xbf16>, vector<4x32x8xbf16>, vector<4x8x8xf32> -> vector<4x8x8xf32>
    "tpu.trace_stop"() : () -> ()
    %c0_27 = arith.constant 0 : index
    %c0_28 = arith.constant 0 : index
    %c0_29 = arith.constant 0 : index
    %45 = vector.load %arg6[%c0_27, %c0_28, %c0_29] : memref<4x1x8xf32, #tpu.memory_space<vmem>>, vector<4x1x8xf32>
    %46 = vector.broadcast %45 : vector<4x1x8xf32> to vector<4x8x8xf32>
    %47 = arith.addf %44, %46 : vector<4x8x8xf32>
    %48 = arith.truncf %47 : vector<4x8x8xf32> to vector<4x8x8xbf16>
    %c0_30 = arith.constant 0 : index
    %c0_31 = arith.constant 0 : index
    %c0_32 = arith.constant 0 : index
    %49 = vector.load %arg7[%c0_30, %c0_31, %c0_32] : memref<4x32x8xbf16, #tpu.memory_space<vmem>>, vector<4x32x8xbf16>
    "tpu.trace_start"() <{level = 10 : i32, message = "nsh,nhd->nsd"}> : () -> ()
    %cst_33 = arith.constant dense<0.000000e+00> : vector<4x8x8xf32>
    %50 = tpu.matmul %36, %49, %cst_33 {dimension_numbers = #tpu.dot_dimension_numbers<[2], [1], [1], [2], [0, 0, 0, 1, 1, 2], [0], [0]>} : vector<4x8x32xbf16>, vector<4x32x8xbf16>, vector<4x8x8xf32> -> vector<4x8x8xf32>
    "tpu.trace_stop"() : () -> ()
    %c0_34 = arith.constant 0 : index
    %c0_35 = arith.constant 0 : index
    %c0_36 = arith.constant 0 : index
    %51 = vector.load %arg8[%c0_34, %c0_35, %c0_36] : memref<4x1x8xf32, #tpu.memory_space<vmem>>, vector<4x1x8xf32>
    %52 = vector.broadcast %51 : vector<4x1x8xf32> to vector<4x8x8xf32>
    %53 = arith.addf %50, %52 : vector<4x8x8xf32>
    %54 = arith.truncf %53 : vector<4x8x8xf32> to vector<4x8x8xbf16>
    "tpu.trace_start"() <{level = 10 : i32, message = "nqd,nkd->nqk"}> : () -> ()
    %cst_37 = arith.constant dense<0.000000e+00> : vector<4x8x8xf32>
    %55 = tpu.matmul %42, %48, %cst_37 {dimension_numbers = #tpu.dot_dimension_numbers<[2], [2], [1], [1], [0, 0, 0, 1, 1, 1], [0], [0]>} : vector<4x8x8xbf16>, vector<4x8x8xbf16>, vector<4x8x8xf32> -> vector<4x8x8xf32>
    "tpu.trace_stop"() : () -> ()
    %cst_38 = arith.constant 0.353553385 : f32
    %56 = vector.broadcast %cst_38 : f32 to vector<4x8x8xf32>
    %57 = arith.mulf %55, %56 : vector<4x8x8xf32>
    %58 = vector.shape_cast %8 : vector<1x8xf32> to vector<1x1x8xf32>
    %59 = vector.broadcast %58 : vector<1x1x8xf32> to vector<4x8x8xf32>
    %60 = arith.addf %57, %59 : vector<4x8x8xf32>
    %cst_39 = arith.constant dense<0xFF800000> : vector<4x8xf32>
    %61 = vector.multi_reduction <maximumf>, %60, %cst_39 [2] : vector<4x8x8xf32> to vector<4x8xf32>
    %62 = vector.shape_cast %61 : vector<4x8xf32> to vector<4x8x1xf32>
    %63 = vector.broadcast %62 : vector<4x8x1xf32> to vector<4x8x8xf32>
    %64 = arith.subf %60, %63 : vector<4x8x8xf32>
    %65 = math.exp %64 : vector<4x8x8xf32>
    %cst_40 = arith.constant dense<0.000000e+00> : vector<4x8xf32>
    %66 = vector.multi_reduction <add>, %65, %cst_40 [2] : vector<4x8x8xf32> to vector<4x8xf32>
    %67 = vector.shape_cast %66 : vector<4x8xf32> to vector<4x8x1xf32>
    %68 = tpu.reciprocal %67 {approx = true} : vector<4x8x1xf32> -> vector<4x8x1xf32>
    %69 = vector.broadcast %68 : vector<4x8x1xf32> to vector<4x8x8xf32>
    %70 = arith.mulf %65, %69 : vector<4x8x8xf32>
    %71 = arith.truncf %70 : vector<4x8x8xf32> to vector<4x8x8xbf16>
    "tpu.trace_start"() <{level = 10 : i32, message = "nqk,nkd->nqd"}> : () -> ()
    %cst_41 = arith.constant dense<0.000000e+00> : vector<4x8x8xf32>
    %72 = tpu.matmul %71, %54, %cst_41 {dimension_numbers = #tpu.dot_dimension_numbers<[2], [1], [1], [2], [0, 0, 0, 1, 1, 2], [0], [0]>} : vector<4x8x8xbf16>, vector<4x8x8xbf16>, vector<4x8x8xf32> -> vector<4x8x8xf32>
    "tpu.trace_stop"() : () -> ()
    %73 = arith.truncf %72 : vector<4x8x8xf32> to vector<4x8x8xbf16>
    %c0_42 = arith.constant 0 : index
    %c0_43 = arith.constant 0 : index
    %c0_44 = arith.constant 0 : index
    %74 = vector.load %arg9[%c0_42, %c0_43, %c0_44] : memref<4x8x32xbf16, #tpu.memory_space<vmem>>, vector<4x8x32xbf16>
    "tpu.trace_start"() <{level = 10 : i32, message = "nqd,nde->nqe"}> : () -> ()
    %cst_45 = arith.constant dense<0.000000e+00> : vector<4x8x32xf32>
    %75 = tpu.matmul %73, %74, %cst_45 {dimension_numbers = #tpu.dot_dimension_numbers<[2], [1], [1], [2], [0, 0, 0, 1, 1, 2], [0], [0]>} : vector<4x8x8xbf16>, vector<4x8x32xbf16>, vector<4x8x32xf32> -> vector<4x8x32xf32>
    "tpu.trace_stop"() : () -> ()
    %cst_46 = arith.constant dense<0.000000e+00> : vector<8x32xf32>
    %76 = vector.multi_reduction <add>, %75, %cst_46 [0] : vector<4x8x32xf32> to vector<8x32xf32>
    %c0_47 = arith.constant 0 : index
    %c0_48 = arith.constant 0 : index
    %77 = vector.load %arg10[%c0_47, %c0_48] : memref<1x32xf32, #tpu.memory_space<vmem>>, vector<1x32xf32>
    %78 = vector.broadcast %77 : vector<1x32xf32> to vector<8x32xf32>
    %79 = arith.addf %76, %78 : vector<8x32xf32>
    %80 = arith.addf %1, %79 : vector<8x32xf32>
    %c0_49 = arith.constant 0 : index
    %c0_50 = arith.constant 0 : index
    %81 = vector.load %arg17[%c0_49, %c0_50] : memref<1x32xf32, #tpu.memory_space<vmem>>, vector<1x32xf32>
    %c0_51 = arith.constant 0 : index
    %c0_52 = arith.constant 0 : index
    %82 = vector.load %arg18[%c0_51, %c0_52] : memref<1x32xf32, #tpu.memory_space<vmem>>, vector<1x32xf32>
    %cst_53 = arith.constant dense<0.000000e+00> : vector<8xf32>
    %83 = vector.multi_reduction <add>, %80, %cst_53 [1] : vector<8x32xf32> to vector<8xf32>
    %84 = vector.shape_cast %83 : vector<8xf32> to vector<8x1xf32>
    %cst_54 = arith.constant 3.200000e+01 : f32
    %85 = vector.broadcast %cst_54 : f32 to vector<8x1xf32>
    %86 = arith.divf %84, %85 : vector<8x1xf32>
    %87 = vector.broadcast %86 : vector<8x1xf32> to vector<8x32xf32>
    %88 = arith.subf %80, %87 : vector<8x32xf32>
    %89 = arith.mulf %88, %88 : vector<8x32xf32>
    %cst_55 = arith.constant dense<0.000000e+00> : vector<8xf32>
    %90 = vector.multi_reduction <add>, %89, %cst_55 [1] : vector<8x32xf32> to vector<8xf32>
    %91 = vector.shape_cast %90 : vector<8xf32> to vector<8x1xf32>
    %cst_56 = arith.constant 3.100000e+01 : f32
    %92 = vector.broadcast %cst_56 : f32 to vector<8x1xf32>
    %93 = arith.divf %91, %92 : vector<8x1xf32>
    %94 = vector.broadcast %86 : vector<8x1xf32> to vector<8x32xf32>
    %95 = arith.subf %80, %94 : vector<8x32xf32>
    %96 = vector.broadcast %81 : vector<1x32xf32> to vector<8x32xf32>
    %97 = arith.mulf %96, %95 : vector<8x32xf32>
    %98 = math.sqrt %93 : vector<8x1xf32>
    %cst_57 = arith.constant 9.99999997E-7 : f32
    %99 = vector.broadcast %cst_57 : f32 to vector<8x1xf32>
    %100 = arith.addf %98, %99 : vector<8x1xf32>
    %101 = vector.broadcast %100 : vector<8x1xf32> to vector<8x32xf32>
    %102 = arith.divf %97, %101 : vector<8x32xf32>
    %103 = vector.broadcast %82 : vector<1x32xf32> to vector<8x32xf32>
    %104 = arith.addf %102, %103 : vector<8x32xf32>
    %105 = arith.truncf %104 : vector<8x32xf32> to vector<8x32xbf16>
    %c0_58 = arith.constant 0 : index
    %c0_59 = arith.constant 0 : index
    %106 = vector.load %arg13[%c0_58, %c0_59] : memref<32x128xbf16, #tpu.memory_space<vmem>>, vector<32x128xbf16>
    %cst_60 = arith.constant dense<0.000000e+00> : vector<8x128xf32>
    %107 = tpu.matmul %105, %106, %cst_60 {dimension_numbers = #tpu.dot_dimension_numbers<[1], [0], [0], [1], [0, 0, 1, 1], [], []>} : vector<8x32xbf16>, vector<32x128xbf16>, vector<8x128xf32> -> vector<8x128xf32>
    %c0_61 = arith.constant 0 : index
    %c0_62 = arith.constant 0 : index
    %108 = vector.load %arg14[%c0_61, %c0_62] : memref<1x128xf32, #tpu.memory_space<vmem>>, vector<1x128xf32>
    %109 = vector.broadcast %108 : vector<1x128xf32> to vector<8x128xf32>
    %110 = arith.addf %107, %109 : vector<8x128xf32>
    %cst_63 = arith.constant 5.000000e-01 : f32
    %111 = vector.broadcast %cst_63 : f32 to vector<8x128xf32>
    %112 = arith.mulf %111, %110 : vector<8x128xf32>
    %cst_64 = arith.constant 4.471500e-02 : f32
    %113 = vector.broadcast %cst_64 : f32 to vector<8x128xf32>
    %114 = arith.mulf %113, %110 : vector<8x128xf32>
    %115 = arith.mulf %114, %110 : vector<8x128xf32>
    %116 = arith.mulf %115, %110 : vector<8x128xf32>
    %117 = arith.addf %110, %116 : vector<8x128xf32>
    %cst_65 = arith.constant 0.797884583 : f32
    %118 = vector.broadcast %cst_65 : f32 to vector<8x128xf32>
    %119 = arith.mulf %118, %117 : vector<8x128xf32>
    %120 = math.tanh %119 : vector<8x128xf32>
    %cst_66 = arith.constant 1.000000e+00 : f32
    %121 = vector.broadcast %cst_66 : f32 to vector<8x128xf32>
    %122 = arith.addf %121, %120 : vector<8x128xf32>
    %123 = arith.mulf %112, %122 : vector<8x128xf32>
    %124 = arith.truncf %123 : vector<8x128xf32> to vector<8x128xbf16>
    %c0_67 = arith.constant 0 : index
    %c0_68 = arith.constant 0 : index
    %125 = vector.load %arg15[%c0_67, %c0_68] : memref<128x32xbf16, #tpu.memory_space<vmem>>, vector<128x32xbf16>
    %cst_69 = arith.constant dense<0.000000e+00> : vector<8x32xf32>
    %126 = tpu.matmul %124, %125, %cst_69 {dimension_numbers = #tpu.dot_dimension_numbers<[1], [0], [0], [1], [0, 0, 1, 1], [], []>} : vector<8x128xbf16>, vector<128x32xbf16>, vector<8x32xf32> -> vector<8x32xf32>
    %c0_70 = arith.constant 0 : index
    %c0_71 = arith.constant 0 : index
    %127 = vector.load %arg16[%c0_70, %c0_71] : memref<1x32xf32, #tpu.memory_space<vmem>>, vector<1x32xf32>
    %128 = vector.broadcast %127 : vector<1x32xf32> to vector<8x32xf32>
    %129 = arith.addf %126, %128 : vector<8x32xf32>
    %130 = arith.addf %80, %129 : vector<8x32xf32>
    %c0_72 = arith.constant 0 : index
    %c0_73 = arith.constant 0 : index
    %c0_74 = arith.constant 0 : index
    %131 = vector.load %arg19[%c0_72, %c0_73, %c0_74] : memref<1x8x32xf32, #tpu.memory_space<vmem>>, vector<1x8x32xf32>
    %132 = vector.shape_cast %131 : vector<1x8x32xf32> to vector<8x32xf32>
    %133 = vector.shape_cast %130 : vector<8x32xf32> to vector<1x8x32xf32>
    tpu.vector_store %arg19[%c0_72, %c0_73, %c0_74], %133 {strides = array<i32>} : memref<1x8x32xf32, #tpu.memory_space<vmem>>, vector<1x8x32xf32>,
    return
  }
  func.func @transform_0(%arg0: i32) -> (i32, i32, i32) {
    %c0_i32 = arith.constant 0 : i32
    %c0_i32_0 = arith.constant 0 : i32
    %c0_i32_1 = arith.constant 0 : i32
    return %arg0, %c0_i32, %c0_i32_0 : i32, i32, i32
  }
  func.func @transform_1(%arg0: i32) -> (i32, i32, i32) {
    %c0_i32 = arith.constant 0 : i32
    %c0_i32_0 = arith.constant 0 : i32
    %c0_i32_1 = arith.constant 0 : i32
    return %arg0, %c0_i32, %c0_i32_0 : i32, i32, i32
  }
  func.func @transform_2(%arg0: i32) -> (i32, i32, i32) {
    %c0_i32 = arith.constant 0 : i32
    %c0_i32_0 = arith.constant 0 : i32
    %c0_i32_1 = arith.constant 0 : i32
    %c0_i32_2 = arith.constant 0 : i32
    return %c0_i32, %c0_i32_0, %c0_i32_1 : i32, i32, i32
  }
  func.func @transform_3(%arg0: i32) -> (i32, i32, i32) {
    %c0_i32 = arith.constant 0 : i32
    %c0_i32_0 = arith.constant 0 : i32
    %c0_i32_1 = arith.constant 0 : i32
    %c0_i32_2 = arith.constant 0 : i32
    return %c0_i32, %c0_i32_0, %c0_i32_1 : i32, i32, i32
  }
  func.func @transform_4(%arg0: i32) -> (i32, i32, i32) {
    %c0_i32 = arith.constant 0 : i32
    %c0_i32_0 = arith.constant 0 : i32
    %c0_i32_1 = arith.constant 0 : i32
    %c0_i32_2 = arith.constant 0 : i32
    return %c0_i32, %c0_i32_0, %c0_i32_1 : i32, i32, i32
  }
  func.func @transform_5(%arg0: i32) -> (i32, i32, i32) {
    %c0_i32 = arith.constant 0 : i32
    %c0_i32_0 = arith.constant 0 : i32
    %c0_i32_1 = arith.constant 0 : i32
    %c0_i32_2 = arith.constant 0 : i32
    return %c0_i32, %c0_i32_0, %c0_i32_1 : i32, i32, i32
  }
  func.func @transform_6(%arg0: i32) -> (i32, i32, i32) {
    %c0_i32 = arith.constant 0 : i32
    %c0_i32_0 = arith.constant 0 : i32
    %c0_i32_1 = arith.constant 0 : i32
    %c0_i32_2 = arith.constant 0 : i32
    return %c0_i32, %c0_i32_0, %c0_i32_1 : i32, i32, i32
  }
  func.func @transform_7(%arg0: i32) -> (i32, i32, i32) {
    %c0_i32 = arith.constant 0 : i32
    %c0_i32_0 = arith.constant 0 : i32
    %c0_i32_1 = arith.constant 0 : i32
    %c0_i32_2 = arith.constant 0 : i32
    return %c0_i32, %c0_i32_0, %c0_i32_1 : i32, i32, i32
  }
  func.func @transform_8(%arg0: i32) -> (i32, i32, i32) {
    %c0_i32 = arith.constant 0 : i32
    %c0_i32_0 = arith.constant 0 : i32
    %c0_i32_1 = arith.constant 0 : i32
    %c0_i32_2 = arith.constant 0 : i32
    return %c0_i32, %c0_i32_0, %c0_i32_1 : i32, i32, i32
  }
  func.func @transform_9(%arg0: i32) -> (i32, i32) {
    %c0_i32 = arith.constant 0 : i32
    %c0_i32_0 = arith.constant 0 : i32
    %c0_i32_1 = arith.constant 0 : i32
    return %c0_i32, %c0_i32_0 : i32, i32
  }
  func.func @transform_10(%arg0: i32) -> (i32, i32) {
    %c0_i32 = arith.constant 0 : i32
    %c0_i32_0 = arith.constant 0 : i32
    %c0_i32_1 = arith.constant 0 : i32
    return %c0_i32, %c0_i32_0 : i32, i32
  }
  func.func @transform_11(%arg0: i32) -> (i32, i32) {
    %c0_i32 = arith.constant 0 : i32
    %c0_i32_0 = arith.constant 0 : i32
    %c0_i32_1 = arith.constant 0 : i32
    return %c0_i32, %c0_i32_0 : i32, i32
  }
  func.func @transform_12(%arg0: i32) -> (i32, i32) {
    %c0_i32 = arith.constant 0 : i32
    %c0_i32_0 = arith.constant 0 : i32
    %c0_i32_1 = arith.constant 0 : i32
    return %c0_i32, %c0_i32_0 : i32, i32
  }
  func.func @transform_13(%arg0: i32) -> (i32, i32) {
    %c0_i32 = arith.constant 0 : i32
    %c0_i32_0 = arith.constant 0 : i32
    %c0_i32_1 = arith.constant 0 : i32
    return %c0_i32, %c0_i32_0 : i32, i32
  }
  func.func @transform_14(%arg0: i32) -> (i32, i32) {
    %c0_i32 = arith.constant 0 : i32
    %c0_i32_0 = arith.constant 0 : i32
    %c0_i32_1 = arith.constant 0 : i32
    return %c0_i32, %c0_i32_0 : i32, i32
  }
  func.func @transform_15(%arg0: i32) -> (i32, i32) {
    %c0_i32 = arith.constant 0 : i32
    %c0_i32_0 = arith.constant 0 : i32
    %c0_i32_1 = arith.constant 0 : i32
    return %c0_i32, %c0_i32_0 : i32, i32
  }
  func.func @transform_16(%arg0: i32) -> (i32, i32) {
    %c0_i32 = arith.constant 0 : i32
    %c0_i32_0 = arith.constant 0 : i32
    %c0_i32_1 = arith.constant 0 : i32
    return %c0_i32, %c0_i32_0 : i32, i32
  }
  func.func @transform_17(%arg0: i32) -> (i32, i32) {
    %c0_i32 = arith.constant 0 : i32
    %c0_i32_0 = arith.constant 0 : i32
    %c0_i32_1 = arith.constant 0 : i32
    return %c0_i32, %c0_i32_0 : i32, i32
  }
  func.func @transform_18(%arg0: i32) -> (i32, i32, i32) {
    %c0_i32 = arith.constant 0 : i32
    %c0_i32_0 = arith.constant 0 : i32
    %c0_i32_1 = arith.constant 0 : i32
    return %arg0, %c0_i32, %c0_i32_0 : i32, i32, i32
  }
}

</mosaic_0001>

<llo_original>
// kernel: tpu_custom_call.1
$region0: #{tpu_custom_call.1}
  #allocation0 [shape = 'u32[]', space=smem, size = 0x4, offset = 0x4, fixed_abs, tag = 'smem constant byte address 0x4 - core index']
  #allocation1 [shape = 'u32[72,128]{1,0:T(1,128)}', space=vmem, size = 0x9000, scoped, tag = 'internal scratch']
  %s0 = inlined_call_operand.vmem [shape: f32[2,8,32], index: 0, kind: input, shape index: {}]
  %s1 = inlined_call_operand.vmem [shape: f32[2,1,8], index: 1, kind: input, shape index: {}]
  %s2 = inlined_call_operand.vmem [shape: bf16[4,32,8], index: 2, kind: input, shape index: {}]
  %s3 = inlined_call_operand.vmem [shape: f32[4,1,8], index: 3, kind: input, shape index: {}]
  %s4 = inlined_call_operand.vmem [shape: bf16[4,32,8], index: 4, kind: input, shape index: {}]
  %s5 = inlined_call_operand.vmem [shape: f32[4,1,8], index: 5, kind: input, shape index: {}]
  %s6 = inlined_call_operand.vmem [shape: bf16[4,32,8], index: 6, kind: input, shape index: {}]
  %s7 = inlined_call_operand.vmem [shape: f32[4,1,8], index: 7, kind: input, shape index: {}]
  %s8 = inlined_call_operand.vmem [shape: bf16[4,8,32], index: 8, kind: input, shape index: {}]
  %s9 = inlined_call_operand.vmem [shape: f32[1,32], index: 9, kind: input, shape index: {}]
  %s10 = inlined_call_operand.vmem [shape: f32[1,32], index: 10, kind: input, shape index: {}]
  %s11 = inlined_call_operand.vmem [shape: f32[1,32], index: 11, kind: input, shape index: {}]
  %s12 = inlined_call_operand.vmem [shape: bf16[32,128], index: 12, kind: input, shape index: {}]
  %s13 = inlined_call_operand.vmem [shape: f32[1,128], index: 13, kind: input, shape index: {}]
  %s14 = inlined_call_operand.vmem [shape: bf16[128,32], index: 14, kind: input, shape index: {}]
  %s15 = inlined_call_operand.vmem [shape: f32[1,32], index: 15, kind: input, shape index: {}]
  %s16 = inlined_call_operand.vmem [shape: f32[1,32], index: 16, kind: input, shape index: {}]
  %s17 = inlined_call_operand.vmem [shape: f32[1,32], index: 17, kind: input, shape index: {}]
  %s18 = inlined_call_operand.hbm [shape: f32[2,8,32], index: 18, kind: output, shape index: {}]
  %s19 = sld [smem:[#allocation0]]
  $region105: #{tpu_custom_call.1} parent=0
    _
  %s21 = ssub.s32 1, %s19
  %s22 = scalar_select 0, %s21, %s19
  $region1: #{tpu_custom_call.1} parent=0
    #allocation2 [shape = 'u8[8192]{0}', space=vmem, size = 0x2000, scoped, tag = 'output window, operand 0']
    #allocation3 [shape = 's32[2]{0}', space=sflag, size = 0x8, scoped, tag = 'scoped memory for tpu_custom_call.1']
    %23 = vsyncpa [#allocation3], 0
    %s24 = scalar_lea.sflag [#allocation3], 1
    %25 = vsyncpa %s24, 0
    loop: start=0, step=1, limit=4
    $region2: #{tpu_custom_call.1} parent=1 // loop_pre_header
      _
    $region3: #{tpu_custom_call.1} parent=1 // loop_header
      %s27 = sphi 0, %s31
      %p28 = scmp.ge.s32.totalorder %s27, 4
      %s37 = sphi 0, %s39
      %s40 = sphi 0, %s37
      %s41 = sphi 0, %s40
      %s57 = sphi 0, %s41
      %s63 = sphi 0, %s65
      %s66 = sphi 0, %s63
      %s67 = sphi 0, %s66
      %s83 = sphi 0, %s67
      %s87 = sphi 0, %s87
      %s89 = sphi 0, %s87
      %s90 = sphi 0, %s89
      %s104 = sphi 0, %s90
      %s108 = sphi 0, %s108
      %s110 = sphi 0, %s108
      %s111 = sphi 0, %s110
      %s125 = sphi 0, %s111
      %s129 = sphi 0, %s129
      %s131 = sphi 0, %s129
      %s132 = sphi 0, %s131
      %s146 = sphi 0, %s132
      %s150 = sphi 0, %s150
      %s152 = sphi 0, %s150
      %s153 = sphi 0, %s152
      %s167 = sphi 0, %s153
      %s171 = sphi 0, %s171
      %s173 = sphi 0, %s171
      %s174 = sphi 0, %s173
      %s188 = sphi 0, %s174
      %s192 = sphi 0, %s192
      %s194 = sphi 0, %s192
      %s195 = sphi 0, %s194
      %s209 = sphi 0, %s195
      %s213 = sphi 0, %s213
      %s215 = sphi 0, %s213
      %s216 = sphi 0, %s215
      %s230 = sphi 0, %s216
      %s234 = sphi 0, %s234
      %s236 = sphi 0, %s234
      %s237 = sphi 0, %s236
      %s251 = sphi 0, %s237
      %s255 = sphi 0, %s255
      %s257 = sphi 0, %s255
      %s258 = sphi 0, %s257
      %s272 = sphi 0, %s258
      %s276 = sphi 0, %s276
      %s278 = sphi 0, %s276
      %s279 = sphi 0, %s278
      %s293 = sphi 0, %s279
      %s297 = sphi 0, %s297
      %s299 = sphi 0, %s297
      %s300 = sphi 0, %s299
      %s314 = sphi 0, %s300
      %s318 = sphi 0, %s318
      %s320 = sphi 0, %s318
      %s321 = sphi 0, %s320
      %s335 = sphi 0, %s321
      %s339 = sphi 0, %s339
      %s341 = sphi 0, %s339
      %s342 = sphi 0, %s341
      %s356 = sphi 0, %s342
      %s360 = sphi 0, %s360
      %s362 = sphi 0, %s360
      %s363 = sphi 0, %s362
      %s377 = sphi 0, %s363
      %s381 = sphi 0, %s381
      %s383 = sphi 0, %s381
      %s384 = sphi 0, %s383
      %s398 = sphi 0, %s384
      %s402 = sphi 0, %s402
      %s404 = sphi 0, %s402
      %s405 = sphi 0, %s404
      %s419 = sphi 0, %s405
      %s425 = sphi 0, %s427
      %s428 = sphi 0, %s425
      %s429 = sphi 0, %s428
      %s445 = sphi 0, %s429
    $region4: #{tpu_custom_call.1} parent=1 // loop_header_branch
      %30 = sbr.rel (%p28) target = $region8
    $region5: #{tpu_custom_call.1} parent=1 // loop_body
      %s32 = ssub.s32 %s27, 1
      %s33 = ssub.s32 %s27, 2
      %s34 = sadd.s32 %s27, 1
      %s35 = ssub.s32 %s27, %s34
      %p36 = scmp.eq.s32.totalorder %s35, 0
      %s38 = sadd.s32 %s37, 1
      %s39 = scalar_select %p36, %s37, %s38
      %p42 = pneg %p36
      %p43 = scmp.eq.s32.totalorder %s27, 1
      %p44 = por %p42, %p43
      %p45 = scmp.ne.s32.totalorder %s37, %s40
      %p46 = scmp.eq.s32.totalorder %s27, 0
      %p47 = por %p45, %p46
      %p48 = scmp.ne.s32.totalorder %s37, %s40
      %p49 = scmp.eq.s32.totalorder %s32, 1
      %p50 = por %p48, %p49
      %p51 = scmp.ne.s32.totalorder %s40, %s41
      %p52 = scmp.eq.s32.totalorder %s32, 0
      %p53 = por %p51, %p52
      %p54 = scmp.ne.s32.totalorder %s40, %s41
      %p55 = scmp.eq.s32.totalorder %s33, 1
      %p56 = por %p54, %p55
      %p58 = scmp.ne.s32.totalorder %s41, %s57
      %p59 = scmp.eq.s32.totalorder %s33, 0
      %p60 = por %p58, %p59
      %s61 = ssub.s32 %s27, %s34
      %p62 = scmp.eq.s32.totalorder %s61, 0
      %s64 = sadd.s32 %s63, 1
      %s65 = scalar_select %p62, %s63, %s64
      %p68 = pneg %p62
      %p69 = scmp.eq.s32.totalorder %s27, 1
      %p70 = por %p68, %p69
      %p71 = scmp.ne.s32.totalorder %s63, %s66
      %p72 = scmp.eq.s32.totalorder %s27, 0
      %p73 = por %p71, %p72
      %p74 = scmp.ne.s32.totalorder %s63, %s66
      %p75 = scmp.eq.s32.totalorder %s32, 1
      %p76 = por %p74, %p75
      %p77 = scmp.ne.s32.totalorder %s66, %s67
      %p78 = scmp.eq.s32.totalorder %s32, 0
      %p79 = por %p77, %p78
      %p80 = scmp.ne.s32.totalorder %s66, %s67
      %p81 = scmp.eq.s32.totalorder %s33, 1
      %p82 = por %p80, %p81
      %p84 = scmp.ne.s32.totalorder %s67, %s83
      %p85 = scmp.eq.s32.totalorder %s33, 0
      %p86 = por %p84, %p85
      %s88 = sadd.s32 %s87, 1
      %p91 = scmp.eq.s32.totalorder %s27, 1
      %p92 = scmp.ne.s32.totalorder %s87, %s89
      %p93 = scmp.eq.s32.totalorder %s27, 0
      %p94 = por %p92, %p93
      %p95 = scmp.ne.s32.totalorder %s87, %s89
      %p96 = scmp.eq.s32.totalorder %s32, 1
      %p97 = por %p95, %p96
      %p98 = scmp.ne.s32.totalorder %s89, %s90
      %p99 = scmp.eq.s32.totalorder %s32, 0
      %p100 = por %p98, %p99
      %p101 = scmp.ne.s32.totalorder %s89, %s90
      %p102 = scmp.eq.s32.totalorder %s33, 1
      %p103 = por %p101, %p102
      %p105 = scmp.ne.s32.totalorder %s90, %s104
      %p106 = scmp.eq.s32.totalorder %s33, 0
      %p107 = por %p105, %p106
      %s109 = sadd.s32 %s108, 1
      %p112 = scmp.eq.s32.totalorder %s27, 1
      %p113 = scmp.ne.s32.totalorder %s108, %s110
      %p114 = scmp.eq.s32.totalorder %s27, 0
      %p115 = por %p113, %p114
      %p116 = scmp.ne.s32.totalorder %s108, %s110
      %p117 = scmp.eq.s32.totalorder %s32, 1
      %p118 = por %p116, %p117
      %p119 = scmp.ne.s32.totalorder %s110, %s111
      %p120 = scmp.eq.s32.totalorder %s32, 0
      %p121 = por %p119, %p120
      %p122 = scmp.ne.s32.totalorder %s110, %s111
      %p123 = scmp.eq.s32.totalorder %s33, 1
      %p124 = por %p122, %p123
      %p126 = scmp.ne.s32.totalorder %s111, %s125
      %p127 = scmp.eq.s32.totalorder %s33, 0
      %p128 = por %p126, %p127
      %s130 = sadd.s32 %s129, 1
      %p133 = scmp.eq.s32.totalorder %s27, 1
      %p134 = scmp.ne.s32.totalorder %s129, %s131
      %p135 = scmp.eq.s32.totalorder %s27, 0
      %p136 = por %p134, %p135
      %p137 = scmp.ne.s32.totalorder %s129, %s131
      %p138 = scmp.eq.s32.totalorder %s32, 1
      %p139 = por %p137, %p138
      %p140 = scmp.ne.s32.totalorder %s131, %s132
      %p141 = scmp.eq.s32.totalorder %s32, 0
      %p142 = por %p140, %p141
      %p143 = scmp.ne.s32.totalorder %s131, %s132
      %p144 = scmp.eq.s32.totalorder %s33, 1
      %p145 = por %p143, %p144
      %p147 = scmp.ne.s32.totalorder %s132, %s146
      %p148 = scmp.eq.s32.totalorder %s33, 0
      %p149 = por %p147, %p148
      %s151 = sadd.s32 %s150, 1
      %p154 = scmp.eq.s32.totalorder %s27, 1
      %p155 = scmp.ne.s32.totalorder %s150, %s152
      %p156 = scmp.eq.s32.totalorder %s27, 0
      %p157 = por %p155, %p156
      %p158 = scmp.ne.s32.totalorder %s150, %s152
      %p159 = scmp.eq.s32.totalorder %s32, 1
      %p160 = por %p158, %p159
      %p161 = scmp.ne.s32.totalorder %s152, %s153
      %p162 = scmp.eq.s32.totalorder %s32, 0
      %p163 = por %p161, %p162
      %p164 = scmp.ne.s32.totalorder %s152, %s153
      %p165 = scmp.eq.s32.totalorder %s33, 1
      %p166 = por %p164, %p165
      %p168 = scmp.ne.s32.totalorder %s153, %s167
      %p169 = scmp.eq.s32.totalorder %s33, 0
      %p170 = por %p168, %p169
      %s172 = sadd.s32 %s171, 1
      %p175 = scmp.eq.s32.totalorder %s27, 1
      %p176 = scmp.ne.s32.totalorder %s171, %s173
      %p177 = scmp.eq.s32.totalorder %s27, 0
      %p178 = por %p176, %p177
      %p179 = scmp.ne.s32.totalorder %s171, %s173
      %p180 = scmp.eq.s32.totalorder %s32, 1
      %p181 = por %p179, %p180
      %p182 = scmp.ne.s32.totalorder %s173, %s174
      %p183 = scmp.eq.s32.totalorder %s32, 0
      %p184 = por %p182, %p183
      %p185 = scmp.ne.s32.totalorder %s173, %s174
      %p186 = scmp.eq.s32.totalorder %s33, 1
      %p187 = por %p185, %p186
      %p189 = scmp.ne.s32.totalorder %s174, %s188
      %p190 = scmp.eq.s32.totalorder %s33, 0
      %p191 = por %p189, %p190
      %s193 = sadd.s32 %s192, 1
      %p196 = scmp.eq.s32.totalorder %s27, 1
      %p197 = scmp.ne.s32.totalorder %s192, %s194
      %p198 = scmp.eq.s32.totalorder %s27, 0
      %p199 = por %p197, %p198
      %p200 = scmp.ne.s32.totalorder %s192, %s194
      %p201 = scmp.eq.s32.totalorder %s32, 1
      %p202 = por %p200, %p201
      %p203 = scmp.ne.s32.totalorder %s194, %s195
      %p204 = scmp.eq.s32.totalorder %s32, 0
      %p205 = por %p203, %p204
      %p206 = scmp.ne.s32.totalorder %s194, %s195
      %p207 = scmp.eq.s32.totalorder %s33, 1
      %p208 = por %p206, %p207
      %p210 = scmp.ne.s32.totalorder %s195, %s209
      %p211 = scmp.eq.s32.totalorder %s33, 0
      %p212 = por %p210, %p211
      %s214 = sadd.s32 %s213, 1
      %p217 = scmp.eq.s32.totalorder %s27, 1
      %p218 = scmp.ne.s32.totalorder %s213, %s215
      %p219 = scmp.eq.s32.totalorder %s27, 0
      %p220 = por %p218, %p219
      %p221 = scmp.ne.s32.totalorder %s213, %s215
      %p222 = scmp.eq.s32.totalorder %s32, 1
      %p223 = por %p221, %p222
      %p224 = scmp.ne.s32.totalorder %s215, %s216
      %p225 = scmp.eq.s32.totalorder %s32, 0
      %p226 = por %p224, %p225
      %p227 = scmp.ne.s32.totalorder %s215, %s216
      %p228 = scmp.eq.s32.totalorder %s33, 1
      %p229 = por %p227, %p228
      %p231 = scmp.ne.s32.totalorder %s216, %s230
      %p232 = scmp.eq.s32.totalorder %s33, 0
      %p233 = por %p231, %p232
      %s235 = sadd.s32 %s234, 1
      %p238 = scmp.eq.s32.totalorder %s27, 1
      %p239 = scmp.ne.s32.totalorder %s234, %s236
      %p240 = scmp.eq.s32.totalorder %s27, 0
      %p241 = por %p239, %p240
      %p242 = scmp.ne.s32.totalorder %s234, %s236
      %p243 = scmp.eq.s32.totalorder %s32, 1
      %p244 = por %p242, %p243
      %p245 = scmp.ne.s32.totalorder %s236, %s237
      %p246 = scmp.eq.s32.totalorder %s32, 0
      %p247 = por %p245, %p246
      %p248 = scmp.ne.s32.totalorder %s236, %s237
      %p249 = scmp.eq.s32.totalorder %s33, 1
      %p250 = por %p248, %p249
      %p252 = scmp.ne.s32.totalorder %s237, %s251
      %p253 = scmp.eq.s32.totalorder %s33, 0
      %p254 = por %p252, %p253
      %s256 = sadd.s32 %s255, 1
      %p259 = scmp.eq.s32.totalorder %s27, 1
      %p260 = scmp.ne.s32.totalorder %s255, %s257
      %p261 = scmp.eq.s32.totalorder %s27, 0
      %p262 = por %p260, %p261
      %p263 = scmp.ne.s32.totalorder %s255, %s257
      %p264 = scmp.eq.s32.totalorder %s32, 1
      %p265 = por %p263, %p264
      %p266 = scmp.ne.s32.totalorder %s257, %s258
      %p267 = scmp.eq.s32.totalorder %s32, 0
      %p268 = por %p266, %p267
      %p269 = scmp.ne.s32.totalorder %s257, %s258
      %p270 = scmp.eq.s32.totalorder %s33, 1
      %p271 = por %p269, %p270
      %p273 = scmp.ne.s32.totalorder %s258, %s272
      %p274 = scmp.eq.s32.totalorder %s33, 0
      %p275 = por %p273, %p274
      %s277 = sadd.s32 %s276, 1
      %p280 = scmp.eq.s32.totalorder %s27, 1
      %p281 = scmp.ne.s32.totalorder %s276, %s278
      %p282 = scmp.eq.s32.totalorder %s27, 0
      %p283 = por %p281, %p282
      %p284 = scmp.ne.s32.totalorder %s276, %s278
      %p285 = scmp.eq.s32.totalorder %s32, 1
      %p286 = por %p284, %p285
      %p287 = scmp.ne.s32.totalorder %s278, %s279
      %p288 = scmp.eq.s32.totalorder %s32, 0
      %p289 = por %p287, %p288
      %p290 = scmp.ne.s32.totalorder %s278, %s279
      %p291 = scmp.eq.s32.totalorder %s33, 1
      %p292 = por %p290, %p291
      %p294 = scmp.ne.s32.totalorder %s279, %s293
      %p295 = scmp.eq.s32.totalorder %s33, 0
      %p296 = por %p294, %p295
      %s298 = sadd.s32 %s297, 1
      %p301 = scmp.eq.s32.totalorder %s27, 1
      %p302 = scmp.ne.s32.totalorder %s297, %s299
      %p303 = scmp.eq.s32.totalorder %s27, 0
      %p304 = por %p302, %p303
      %p305 = scmp.ne.s32.totalorder %s297, %s299
      %p306 = scmp.eq.s32.totalorder %s32, 1
      %p307 = por %p305, %p306
      %p308 = scmp.ne.s32.totalorder %s299, %s300
      %p309 = scmp.eq.s32.totalorder %s32, 0
      %p310 = por %p308, %p309
      %p311 = scmp.ne.s32.totalorder %s299, %s300
      %p312 = scmp.eq.s32.totalorder %s33, 1
      %p313 = por %p311, %p312
      %p315 = scmp.ne.s32.totalorder %s300, %s314
      %p316 = scmp.eq.s32.totalorder %s33, 0
      %p317 = por %p315, %p316
      %s319 = sadd.s32 %s318, 1
      %p322 = scmp.eq.s32.totalorder %s27, 1
      %p323 = scmp.ne.s32.totalorder %s318, %s320
      %p324 = scmp.eq.s32.totalorder %s27, 0
      %p325 = por %p323, %p324
      %p326 = scmp.ne.s32.totalorder %s318, %s320
      %p327 = scmp.eq.s32.totalorder %s32, 1
      %p328 = por %p326, %p327
      %p329 = scmp.ne.s32.totalorder %s320, %s321
      %p330 = scmp.eq.s32.totalorder %s32, 0
      %p331 = por %p329, %p330
      %p332 = scmp.ne.s32.totalorder %s320, %s321
      %p333 = scmp.eq.s32.totalorder %s33, 1
      %p334 = por %p332, %p333
      %p336 = scmp.ne.s32.totalorder %s321, %s335
      %p337 = scmp.eq.s32.totalorder %s33, 0
      %p338 = por %p336, %p337
      %s340 = sadd.s32 %s339, 1
      %p343 = scmp.eq.s32.totalorder %s27, 1
      %p344 = scmp.ne.s32.totalorder %s339, %s341
      %p345 = scmp.eq.s32.totalorder %s27, 0
      %p346 = por %p344, %p345
      %p347 = scmp.ne.s32.totalorder %s339, %s341
      %p348 = scmp.eq.s32.totalorder %s32, 1
      %p349 = por %p347, %p348
      %p350 = scmp.ne.s32.totalorder %s341, %s342
      %p351 = scmp.eq.s32.totalorder %s32, 0
      %p352 = por %p350, %p351
      %p353 = scmp.ne.s32.totalorder %s341, %s342
      %p354 = scmp.eq.s32.totalorder %s33, 1
      %p355 = por %p353, %p354
      %p357 = scmp.ne.s32.totalorder %s342, %s356
      %p358 = scmp.eq.s32.totalorder %s33, 0
      %p359 = por %p357, %p358
      %s361 = sadd.s32 %s360, 1
      %p364 = scmp.eq.s32.totalorder %s27, 1
      %p365 = scmp.ne.s32.totalorder %s360, %s362
      %p366 = scmp.eq.s32.totalorder %s27, 0
      %p367 = por %p365, %p366
      %p368 = scmp.ne.s32.totalorder %s360, %s362
      %p369 = scmp.eq.s32.totalorder %s32, 1
      %p370 = por %p368, %p369
      %p371 = scmp.ne.s32.totalorder %s362, %s363
      %p372 = scmp.eq.s32.totalorder %s32, 0
      %p373 = por %p371, %p372
      %p374 = scmp.ne.s32.totalorder %s362, %s363
      %p375 = scmp.eq.s32.totalorder %s33, 1
      %p376 = por %p374, %p375
      %p378 = scmp.ne.s32.totalorder %s363, %s377
      %p379 = scmp.eq.s32.totalorder %s33, 0
      %p380 = por %p378, %p379
      %s382 = sadd.s32 %s381, 1
      %p385 = scmp.eq.s32.totalorder %s27, 1
      %p386 = scmp.ne.s32.totalorder %s381, %s383
      %p387 = scmp.eq.s32.totalorder %s27, 0
      %p388 = por %p386, %p387
      %p389 = scmp.ne.s32.totalorder %s381, %s383
      %p390 = scmp.eq.s32.totalorder %s32, 1
      %p391 = por %p389, %p390
      %p392 = scmp.ne.s32.totalorder %s383, %s384
      %p393 = scmp.eq.s32.totalorder %s32, 0
      %p394 = por %p392, %p393
      %p395 = scmp.ne.s32.totalorder %s383, %s384
      %p396 = scmp.eq.s32.totalorder %s33, 1
      %p397 = por %p395, %p396
      %p399 = scmp.ne.s32.totalorder %s384, %s398
      %p400 = scmp.eq.s32.totalorder %s33, 0
      %p401 = por %p399, %p400
      %s403 = sadd.s32 %s402, 1
      %p406 = scmp.eq.s32.totalorder %s27, 1
      %p407 = scmp.ne.s32.totalorder %s402, %s404
      %p408 = scmp.eq.s32.totalorder %s27, 0
      %p409 = por %p407, %p408
      %p410 = scmp.ne.s32.totalorder %s402, %s404
      %p411 = scmp.eq.s32.totalorder %s32, 1
      %p412 = por %p410, %p411
      %p413 = scmp.ne.s32.totalorder %s404, %s405
      %p414 = scmp.eq.s32.totalorder %s32, 0
      %p415 = por %p413, %p414
      %p416 = scmp.ne.s32.totalorder %s404, %s405
      %p417 = scmp.eq.s32.totalorder %s33, 1
      %p418 = por %p416, %p417
      %p420 = scmp.ne.s32.totalorder %s405, %s419
      %p421 = scmp.eq.s32.totalorder %s33, 0
      %p422 = por %p420, %p421
      %s423 = ssub.s32 %s27, %s34
      %p424 = scmp.eq.s32.totalorder %s423, 0
      %s426 = sadd.s32 %s425, 1
      %s427 = scalar_select %p424, %s425, %s426
      %p430 = pneg %p424
      %p431 = scmp.eq.s32.totalorder %s27, 1
      %p432 = por %p430, %p431
      %p433 = scmp.ne.s32.totalorder %s425, %s428
      %p434 = scmp.eq.s32.totalorder %s27, 0
      %p435 = por %p433, %p434
      %p436 = scmp.ne.s32.totalorder %s425, %s428
      %p437 = scmp.eq.s32.totalorder %s32, 1
      %p438 = por %p436, %p437
      %p439 = scmp.ne.s32.totalorder %s428, %s429
      %p440 = scmp.eq.s32.totalorder %s32, 0
      %p441 = por %p439, %p440
      %p442 = scmp.ne.s32.totalorder %s428, %s429
      %p443 = scmp.eq.s32.totalorder %s33, 1
      %p444 = por %p442, %p443
      %p446 = scmp.ne.s32.totalorder %s429, %s445
      %p447 = scmp.eq.s32.totalorder %s33, 0
      %p448 = por %p446, %p447
      %p449 = scmp.le.s32.totalorder 1, %s27
      %p450 = scmp.lt.s32.totalorder %s27, 3
      %p451 = pnand %p449, %p450
      %p452 = pneg %p451
      // Predicated region
      $region9: #{tpu_custom_call.1} parent=5 // pred_check
        _
      $region10: #{tpu_custom_call.1} parent=5 // pred_check_branch
        %454 = sbr.rel (%p451) target = $region12
      $region11: #{tpu_custom_call.1} parent=5 // pred_region
        %s455 = ssub.s32 %s27, 1
        // Predicated region
        $region13: #{tpu_custom_call.1} parent=11 // pred_check
          %p456 = pneg %p100
        $region14: #{tpu_custom_call.1} parent=11 // pred_check_branch
          %458 = sbr.rel (%p456) target = $region16
        $region15: #{tpu_custom_call.1} parent=11 // pred_region
          _
        $region16: #{tpu_custom_call.1} parent=11 // pred_fallthru
          _
        // Predicated region
        $region17: #{tpu_custom_call.1} parent=11 // pred_check
          %p459 = pneg %p121
        $region18: #{tpu_custom_call.1} parent=11 // pred_check_branch
          %461 = sbr.rel (%p459) target = $region20
        $region19: #{tpu_custom_call.1} parent=11 // pred_region
          _
        $region20: #{tpu_custom_call.1} parent=11 // pred_fallthru
          _
        // Predicated region
        $region21: #{tpu_custom_call.1} parent=11 // pred_check
          %p462 = pneg %p142
        $region22: #{tpu_custom_call.1} parent=11 // pred_check_branch
          %464 = sbr.rel (%p462) target = $region24
        $region23: #{tpu_custom_call.1} parent=11 // pred_region
          _
        $region24: #{tpu_custom_call.1} parent=11 // pred_fallthru
          _
        // Predicated region
        $region25: #{tpu_custom_call.1} parent=11 // pred_check
          %p465 = pneg %p163
        $region26: #{tpu_custom_call.1} parent=11 // pred_check_branch
          %467 = sbr.rel (%p465) target = $region28
        $region27: #{tpu_custom_call.1} parent=11 // pred_region
          _
        $region28: #{tpu_custom_call.1} parent=11 // pred_fallthru
          _
        // Predicated region
        $region29: #{tpu_custom_call.1} parent=11 // pred_check
          %p468 = pneg %p184
        $region30: #{tpu_custom_call.1} parent=11 // pred_check_branch
          %470 = sbr.rel (%p468) target = $region32
        $region31: #{tpu_custom_call.1} parent=11 // pred_region
          _
        $region32: #{tpu_custom_call.1} parent=11 // pred_fallthru
          _
        // Predicated region
        $region33: #{tpu_custom_call.1} parent=11 // pred_check
          %p471 = pneg %p205
        $region34: #{tpu_custom_call.1} parent=11 // pred_check_branch
          %473 = sbr.rel (%p471) target = $region36
        $region35: #{tpu_custom_call.1} parent=11 // pred_region
          _
        $region36: #{tpu_custom_call.1} parent=11 // pred_fallthru
          _
        // Predicated region
        $region37: #{tpu_custom_call.1} parent=11 // pred_check
          %p474 = pneg %p226
        $region38: #{tpu_custom_call.1} parent=11 // pred_check_branch
          %476 = sbr.rel (%p474) target = $region40
        $region39: #{tpu_custom_call.1} parent=11 // pred_region
          _
        $region40: #{tpu_custom_call.1} parent=11 // pred_fallthru
          _
        // Predicated region
        $region41: #{tpu_custom_call.1} parent=11 // pred_check
          %p477 = pneg %p247
        $region42: #{tpu_custom_call.1} parent=11 // pred_check_branch
          %479 = sbr.rel (%p477) target = $region44
        $region43: #{tpu_custom_call.1} parent=11 // pred_region
          _
        $region44: #{tpu_custom_call.1} parent=11 // pred_fallthru
          _
        // Predicated region
        $region45: #{tpu_custom_call.1} parent=11 // pred_check
          %p480 = pneg %p268
        $region46: #{tpu_custom_call.1} parent=11 // pred_check_branch
          %482 = sbr.rel (%p480) target = $region48
        $region47: #{tpu_custom_call.1} parent=11 // pred_region
          _
        $region48: #{tpu_custom_call.1} parent=11 // pred_fallthru
          _
        // Predicated region
        $region49: #{tpu_custom_call.1} parent=11 // pred_check
          %p483 = pneg %p289
        $region50: #{tpu_custom_call.1} parent=11 // pred_check_branch
          %485 = sbr.rel (%p483) target = $region52
        $region51: #{tpu_custom_call.1} parent=11 // pred_region
          _
        $region52: #{tpu_custom_call.1} parent=11 // pred_fallthru
          _
        // Predicated region
        $region53: #{tpu_custom_call.1} parent=11 // pred_check
          %p486 = pneg %p310
        $region54: #{tpu_custom_call.1} parent=11 // pred_check_branch
          %488 = sbr.rel (%p486) target = $region56
        $region55: #{tpu_custom_call.1} parent=11 // pred_region
          _
        $region56: #{tpu_custom_call.1} parent=11 // pred_fallthru
          _
        // Predicated region
        $region57: #{tpu_custom_call.1} parent=11 // pred_check
          %p489 = pneg %p331
        $region58: #{tpu_custom_call.1} parent=11 // pred_check_branch
          %491 = sbr.rel (%p489) target = $region60
        $region59: #{tpu_custom_call.1} parent=11 // pred_region
          _
        $region60: #{tpu_custom_call.1} parent=11 // pred_fallthru
          _
        // Predicated region
        $region61: #{tpu_custom_call.1} parent=11 // pred_check
          %p492 = pneg %p352
        $region62: #{tpu_custom_call.1} parent=11 // pred_check_branch
          %494 = sbr.rel (%p492) target = $region64
        $region63: #{tpu_custom_call.1} parent=11 // pred_region
          _
        $region64: #{tpu_custom_call.1} parent=11 // pred_fallthru
          _
        // Predicated region
        $region65: #{tpu_custom_call.1} parent=11 // pred_check
          %p495 = pneg %p373
        $region66: #{tpu_custom_call.1} parent=11 // pred_check_branch
          %497 = sbr.rel (%p495) target = $region68
        $region67: #{tpu_custom_call.1} parent=11 // pred_region
          _
        $region68: #{tpu_custom_call.1} parent=11 // pred_fallthru
          _
        // Predicated region
        $region69: #{tpu_custom_call.1} parent=11 // pred_check
          %p498 = pneg %p394
        $region70: #{tpu_custom_call.1} parent=11 // pred_check_branch
          %500 = sbr.rel (%p498) target = $region72
        $region71: #{tpu_custom_call.1} parent=11 // pred_region
          _
        $region72: #{tpu_custom_call.1} parent=11 // pred_fallthru
          _
        // Predicated region
        $region73: #{tpu_custom_call.1} parent=11 // pred_check
          %p501 = pneg %p415
        $region74: #{tpu_custom_call.1} parent=11 // pred_check_branch
          %503 = sbr.rel (%p501) target = $region76
        $region75: #{tpu_custom_call.1} parent=11 // pred_region
          _
        $region76: #{tpu_custom_call.1} parent=11 // pred_fallthru
          _
      $region12: #{tpu_custom_call.1} parent=5 // pred_fallthru
        _
      %p504 = scmp.lt.s32.totalorder %s27, 2
      // Predicated region
      $region77: #{tpu_custom_call.1} parent=5 // pred_check
        %p505 = pneg %p504
      $region78: #{tpu_custom_call.1} parent=5 // pred_check_branch
        %507 = sbr.rel (%p505) target = $region80
      $region79: #{tpu_custom_call.1} parent=5 // pred_region
        // Predicated region
        $region81: #{tpu_custom_call.1} parent=79 // pred_check
          %p508 = pneg %p47
        $region82: #{tpu_custom_call.1} parent=79 // pred_check_branch
          %510 = sbr.rel (%p508) target = $region84
        $region83: #{tpu_custom_call.1} parent=79 // pred_region
          %p511 = scmp.lt.s32.totalorder %s27, 1
          %s512 = scalar_select %p511, %s27, 1
          %s513 = smul.addr %s512, 8
          %s514 = scalar_lea.vmem %s0, %s513
        $region84: #{tpu_custom_call.1} parent=79 // pred_fallthru
          _
        // Predicated region
        $region85: #{tpu_custom_call.1} parent=79 // pred_check
          %p515 = pneg %p73
        $region86: #{tpu_custom_call.1} parent=79 // pred_check_branch
          %517 = sbr.rel (%p515) target = $region88
        $region87: #{tpu_custom_call.1} parent=79 // pred_region
          %p518 = scmp.lt.s32.totalorder %s27, 1
          %s519 = scalar_select %p518, %s27, 1
          %s520 = scalar_lea.vmem %s1, %s519
        $region88: #{tpu_custom_call.1} parent=79 // pred_fallthru
          _
      $region80: #{tpu_custom_call.1} parent=5 // pred_fallthru
        _
      %p521 = scmp.le.s32.totalorder 1, %s27
      %p522 = scmp.lt.s32.totalorder %s27, 3
      %p523 = pnand %p521, %p522
      %p524 = pneg %p523
      // Predicated region
      $region89: #{tpu_custom_call.1} parent=5 // pred_check
        _
      $region90: #{tpu_custom_call.1} parent=5 // pred_check_branch
        %526 = sbr.rel (%p523) target = $region92
      $region91: #{tpu_custom_call.1} parent=5 // pred_region
        %s527 = ssub.s32 %s27, 1
        %p528 = scmp.lt.s32.totalorder %s32, 1
        %s529 = scalar_select %p528, %s32, 1
        %s530 = smul.addr %s529, 8
        %s531 = scalar_lea.vmem %s0, %s530
        %p532 = pneg %p53
        %p533 = pneg %p50
        %p534 = scmp.lt.s32.totalorder %s32, 1
        %s535 = scalar_select %p534, %s32, 1
        %s536 = scalar_lea.vmem %s1, %s535
        %p537 = pneg %p79
        %p538 = pneg %p76
        %p539 = pneg %p100
        %p540 = pneg %p97
        %p541 = pneg %p121
        %p542 = pneg %p118
        %p543 = pneg %p142
        %p544 = pneg %p139
        %p545 = pneg %p163
        %p546 = pneg %p160
        %p547 = pneg %p184
        %p548 = pneg %p181
        %p549 = pneg %p205
        %p550 = pneg %p202
        %p551 = pneg %p226
        %p552 = pneg %p223
        %p553 = pneg %p247
        %p554 = pneg %p244
        %p555 = pneg %p268
        %p556 = pneg %p265
        %p557 = pneg %p289
        %p558 = pneg %p286
        %p559 = pneg %p310
        %p560 = pneg %p307
        %p561 = pneg %p331
        %p562 = pneg %p328
        %p563 = pneg %p352
        %p564 = pneg %p349
        %p565 = pneg %p373
        %p566 = pneg %p370
        %p567 = pneg %p394
        %p568 = pneg %p391
        %p569 = pneg %p415
        %p570 = pneg %p412
        %p571 = pneg %p441
        %p572 = pneg %p438
        %s573 = sand.u32 %s428, 1
        %s574 = scalar_lea.sflag [#allocation3], %s573
        %s575 = sand.u32 %s428, 1
        %s576 = smul.addr %s575, 8
        %s577 = scalar_lea.vmem [#allocation2], %s576
        %p578 = scmp.lt.s32.totalorder %s32, 1
        %s579 = scalar_select %p578, %s32, 1
        %s580 = smul.addr %s579, 8
        %s581 = scalar_lea.vmem %s0, %s580
        %p582 = scmp.lt.s32.totalorder %s32, 1
        %s583 = scalar_select %p582, %s32, 1
        %s584 = scalar_lea.vmem %s1, %s583
        %v586 = vld [vmem:[%s581] sm:$0xff]
        %v587 = vld [vmem:[%s584] sm:$0x1]
        %vm588 = vcmp.eq.f32.partialorder %v587, 0.0
        %v589 = vsel %vm588, -1e+09, 0.0
        %v590 = vld [vmem:[%s10] sm:$0x1]
        %v591 = vld [vmem:[%s11] sm:$0x1]
        %vm592 = vcmask 261120
        %v593 = vsel %vm592, %v586, 0.0
        %594 = vadd.xlane.f32.xlu0 %v593
        %v595 = vpop.xlane.xlu0 %594
        %v596 = vrcp.pop 32.0
        %v597 = vmul.f32 32.0, %v596
        %v598 = vsub.f32 1.0, %v597
        %v599 = vmul.f32 %v596, %v598
        %v600 = vadd.f32 %v596, %v599
        %vm601 = vweird.f32 %v596
        %v602 = vsel %vm601, %v596, %v600
        %v603 = vmul.f32 %v595, %v602
        %v604 = vsub.f32 %v586, %v603
        %v605 = vmul.f32 %v604, %v604
        %v606 = vsel %vm592, %v605, 0.0
        %607 = vadd.xlane.f32.xlu0 %v606
        %v608 = vpop.xlane.xlu0 %607
        %v609 = vrcp.pop 31.0
        %v610 = vmul.f32 31.0, %v609
        %v611 = vsub.f32 1.0, %v610
        %v612 = vmul.f32 %v609, %v611
        %v613 = vadd.f32 %v609, %v612
        %vm614 = vweird.f32 %v609
        %v615 = vsel %vm614, %v609, %v613
        %v616 = vmul.f32 %v608, %v615
        %v618 = vperm.slane %v590, 0
        %v620 = vmul.f32 %v618, %v604
        %v621 = vrsqrt.pop %v616
        %v622 = vmul.f32 %v621, %v616
        %v623 = vmul.f32 %v622, %v621
        %v624 = vmul.f32 0.5, %v623
        %v625 = vsub.f32 1.5, %v624
        %v626 = vmul.f32 %v621, %v625
        %v627 = vmul.f32 %v616, %v626
        %vm628 = vcmp.eq.f32.partialorder %v616, inf
        %v629 = vsel %vm628, %v616, %v627
        %vm630 = vcmp.eq.f32.partialorder %v616, 0.0
        %v631 = vand.u32 %v616, 2147483648
        %v632 = vsel %vm630, %v631, %v629
        %v633 = vadd.f32 %v632, 1e-06
        %v634 = vrcp.pop %v633
        %v635 = vmul.f32 %v633, %v634
        %v636 = vsub.f32 1.0, %v635
        %v637 = vmul.f32 %v634, %v636
        %v638 = vadd.f32 %v634, %v637
        %vm639 = vweird.f32 %v633
        %vm640 = vweird.f32 %v634
        %vm641 = vmor %vm639, %vm640
        %v642 = vsel %vm641, %v634, %v638
        %v643 = vand.u32 2147483647, %v633
        %vm644 = vcmp.eq.f32.partialorder %v643, 8.507059e+37
        %v645 = vand.u32 %v633, 2147483648
        %v646 = vor.u32 1.1754944e-38, %v645
        %v647 = vsel %vm644, %v646, %v642
        %v648 = vmul.f32 %v620, %v647
        %v650 = vperm.slane %v591, 0
        %v652 = vadd.f32 %v648, %v650
        %v653 = vpack.c.bf16 %v652, %v652
        %v654 = vld [vmem:[%s2] sm:$0xf]
        %v655 = vld [vmem:[%s2 + $0x4] sm:$0xf]
        %v656 = vld [vmem:[%s2 + $0x8] sm:$0xf]
        %v657 = vld [vmem:[%s2 + $0xc] sm:$0xf]
        %v658 = vld [vmem:[%s2 + $0x10] sm:$0xf]
        %v659 = vld [vmem:[%s2 + $0x14] sm:$0xf]
        %v660 = vld [vmem:[%s2 + $0x18] sm:$0xf]
        %v661 = vld [vmem:[%s2 + $0x1c] sm:$0xf]
        %v662 = vld [vmem:[%s2 + $0x20] sm:$0xf]
        %v663 = vld [vmem:[%s2 + $0x24] sm:$0xf]
        %v664 = vld [vmem:[%s2 + $0x28] sm:$0xf]
        %v665 = vld [vmem:[%s2 + $0x2c] sm:$0xf]
        %v666 = vld [vmem:[%s2 + $0x30] sm:$0xf]
        %v667 = vld [vmem:[%s2 + $0x34] sm:$0xf]
        %v668 = vld [vmem:[%s2 + $0x38] sm:$0xf]
        %v669 = vld [vmem:[%s2 + $0x3c] sm:$0xf]
        %v670 = vld [vmem:[%s3] sm:$0x1]
        %v671 = vld [vmem:[%s3 + $0x1] sm:$0x1]
        %v672 = vld [vmem:[%s3 + $0x2] sm:$0x1]
        %v673 = vld [vmem:[%s3 + $0x3] sm:$0x1]
        %v678 = vperm.slane %v670, 0
        %v679 = vperm.slane %v671, 0
        %v680 = vperm.slane %v672, 0
        %v681 = vperm.slane %v673, 0
        %v690 = vunpack.c.l.b16 %v654
        %v691 = vunpack.c.l.b16 %v655
        %v692 = vunpack.c.l.b16 %v656
        %v693 = vunpack.c.l.b16 %v657
        %v694 = vpack.c.b16 %v691, %v690
        %v695 = vpack.c.b16 %v693, %v692
        %v699 = vsel %vm592, %v653, 0
        %701 = vmatpush.bf16.msra.mxu0 0
        %702 = vmatpush.bf16.msra.mxu0 0
        %703 = vmatpush.bf16.msra.mxu0 0
        %704 = vmatpush.bf16.msra.mxu0 0
        %705 = vmatpush.bf16.msra.mxu0 0
        %706 = vmatpush.bf16.msra.mxu0 0
        %707 = vmatpush.bf16.msra.mxu0 %v695
        %708 = vmatpush.bf16.msra.mxu0 %v694
        %709 = vmatmul.bf16.gmra.mxu0 %v699
        %v710 = vpop.f32.mrf.mxu0
        %v711 = vadd.f32 %v678, %v710
        %v712 = vpop.f32.mrf.mxu0
        %713 = vdwg.mxu0
        %v718 = vunpack.c.l.b16 %v658
        %v719 = vunpack.c.l.b16 %v659
        %v720 = vunpack.c.l.b16 %v660
        %v721 = vunpack.c.l.b16 %v661
        %v722 = vpack.c.b16 %v719, %v718
        %v723 = vpack.c.b16 %v721, %v720
        %726 = vmatpush.bf16.msra.mxu0 0
        %727 = vmatpush.bf16.msra.mxu0 0
        %728 = vmatpush.bf16.msra.mxu0 0
        %729 = vmatpush.bf16.msra.mxu0 0
        %730 = vmatpush.bf16.msra.mxu0 0
        %731 = vmatpush.bf16.msra.mxu0 0
        %732 = vmatpush.bf16.msra.mxu0 %v723
        %733 = vmatpush.bf16.msra.mxu0 %v722
        %734 = vmatmul.bf16.gmra.mxu0 %v699
        %v735 = vpop.f32.mrf.mxu0
        %v736 = vadd.f32 %v679, %v735
        %v737 = vpop.f32.mrf.mxu0
        %738 = vdwg.mxu0
        %v743 = vunpack.c.l.b16 %v662
        %v744 = vunpack.c.l.b16 %v663
        %v745 = vunpack.c.l.b16 %v664
        %v746 = vunpack.c.l.b16 %v665
        %v747 = vpack.c.b16 %v744, %v743
        %v748 = vpack.c.b16 %v746, %v745
        %751 = vmatpush.bf16.msra.mxu0 0
        %752 = vmatpush.bf16.msra.mxu0 0
        %753 = vmatpush.bf16.msra.mxu0 0
        %754 = vmatpush.bf16.msra.mxu0 0
        %755 = vmatpush.bf16.msra.mxu0 0
        %756 = vmatpush.bf16.msra.mxu0 0
        %757 = vmatpush.bf16.msra.mxu0 %v748
        %758 = vmatpush.bf16.msra.mxu0 %v747
        %759 = vmatmul.bf16.gmra.mxu0 %v699
        %v760 = vpop.f32.mrf.mxu0
        %v761 = vadd.f32 %v680, %v760
        %v762 = vpop.f32.mrf.mxu0
        %763 = vdwg.mxu0
        %v768 = vunpack.c.l.b16 %v666
        %v769 = vunpack.c.l.b16 %v667
        %v770 = vunpack.c.l.b16 %v668
        %v771 = vunpack.c.l.b16 %v669
        %v772 = vpack.c.b16 %v769, %v768
        %v773 = vpack.c.b16 %v771, %v770
        %776 = vmatpush.bf16.msra.mxu0 0
        %777 = vmatpush.bf16.msra.mxu0 0
        %778 = vmatpush.bf16.msra.mxu0 0
        %779 = vmatpush.bf16.msra.mxu0 0
        %780 = vmatpush.bf16.msra.mxu0 0
        %781 = vmatpush.bf16.msra.mxu0 0
        %782 = vmatpush.bf16.msra.mxu0 %v773
        %783 = vmatpush.bf16.msra.mxu0 %v772
        %784 = vmatmul.bf16.gmra.mxu0 %v699
        %v785 = vpop.f32.mrf.mxu0
        %v786 = vadd.f32 %v681, %v785
        %v787 = vpop.f32.mrf.mxu0
        %788 = vdwg.mxu0
        %v789 = vpack.c.bf16 %v711, %v711
        %v790 = vpack.c.bf16 %v736, %v736
        %v791 = vpack.c.bf16 %v761, %v761
        %v792 = vpack.c.bf16 %v786, %v786
        %v793 = vld [vmem:[%s4] sm:$0xf]
        %v794 = vld [vmem:[%s4 + $0x4] sm:$0xf]
        %v795 = vld [vmem:[%s4 + $0x8] sm:$0xf]
        %v796 = vld [vmem:[%s4 + $0xc] sm:$0xf]
        %v797 = vld [vmem:[%s4 + $0x10] sm:$0xf]
        %v798 = vld [vmem:[%s4 + $0x14] sm:$0xf]
        %v799 = vld [vmem:[%s4 + $0x18] sm:$0xf]
        %v800 = vld [vmem:[%s4 + $0x1c] sm:$0xf]
        %v801 = vld [vmem:[%s4 + $0x20] sm:$0xf]
        %v802 = vld [vmem:[%s4 + $0x24] sm:$0xf]
        %v803 = vld [vmem:[%s4 + $0x28] sm:$0xf]
        %v804 = vld [vmem:[%s4 + $0x2c] sm:$0xf]
        %v805 = vld [vmem:[%s4 + $0x30] sm:$0xf]
        %v806 = vld [vmem:[%s4 + $0x34] sm:$0xf]
        %v807 = vld [vmem:[%s4 + $0x38] sm:$0xf]
        %v808 = vld [vmem:[%s4 + $0x3c] sm:$0xf]
        %v809 = vld [vmem:[%s5] sm:$0x1]
        %v810 = vld [vmem:[%s5 + $0x1] sm:$0x1]
        %v811 = vld [vmem:[%s5 + $0x2] sm:$0x1]
        %v812 = vld [vmem:[%s5 + $0x3] sm:$0x1]
        %v817 = vperm.slane %v809, 0
        %v818 = vperm.slane %v810, 0
        %v819 = vperm.slane %v811, 0
        %v820 = vperm.slane %v812, 0
        %v829 = vunpack.c.l.b16 %v793
        %v830 = vunpack.c.l.b16 %v794
        %v831 = vunpack.c.l.b16 %v795
        %v832 = vunpack.c.l.b16 %v796
        %v833 = vpack.c.b16 %v830, %v829
        %v834 = vpack.c.b16 %v832, %v831
        %837 = vmatpush.bf16.msra.mxu0 0
        %838 = vmatpush.bf16.msra.mxu0 0
        %839 = vmatpush.bf16.msra.mxu0 0
        %840 = vmatpush.bf16.msra.mxu0 0
        %841 = vmatpush.bf16.msra.mxu0 0
        %842 = vmatpush.bf16.msra.mxu0 0
        %843 = vmatpush.bf16.msra.mxu0 %v834
        %844 = vmatpush.bf16.msra.mxu0 %v833
        %845 = vmatmul.bf16.gmra.mxu0 %v699
        %v846 = vpop.f32.mrf.mxu0
        %v847 = vadd.f32 %v817, %v846
        %v848 = vpop.f32.mrf.mxu0
        %849 = vdwg.mxu0
        %v854 = vunpack.c.l.b16 %v797
        %v855 = vunpack.c.l.b16 %v798
        %v856 = vunpack.c.l.b16 %v799
        %v857 = vunpack.c.l.b16 %v800
        %v858 = vpack.c.b16 %v855, %v854
        %v859 = vpack.c.b16 %v857, %v856
        %862 = vmatpush.bf16.msra.mxu0 0
        %863 = vmatpush.bf16.msra.mxu0 0
        %864 = vmatpush.bf16.msra.mxu0 0
        %865 = vmatpush.bf16.msra.mxu0 0
        %866 = vmatpush.bf16.msra.mxu0 0
        %867 = vmatpush.bf16.msra.mxu0 0
        %868 = vmatpush.bf16.msra.mxu0 %v859
        %869 = vmatpush.bf16.msra.mxu0 %v858
        %870 = vmatmul.bf16.gmra.mxu0 %v699
        %v871 = vpop.f32.mrf.mxu0
        %v872 = vadd.f32 %v818, %v871
        %v873 = vpop.f32.mrf.mxu0
        %874 = vdwg.mxu0
        %v879 = vunpack.c.l.b16 %v801
        %v880 = vunpack.c.l.b16 %v802
        %v881 = vunpack.c.l.b16 %v803
        %v882 = vunpack.c.l.b16 %v804
        %v883 = vpack.c.b16 %v880, %v879
        %v884 = vpack.c.b16 %v882, %v881
        %887 = vmatpush.bf16.msra.mxu0 0
        %888 = vmatpush.bf16.msra.mxu0 0
        %889 = vmatpush.bf16.msra.mxu0 0
        %890 = vmatpush.bf16.msra.mxu0 0
        %891 = vmatpush.bf16.msra.mxu0 0
        %892 = vmatpush.bf16.msra.mxu0 0
        %893 = vmatpush.bf16.msra.mxu0 %v884
        %894 = vmatpush.bf16.msra.mxu0 %v883
        %895 = vmatmul.bf16.gmra.mxu0 %v699
        %v896 = vpop.f32.mrf.mxu0
        %v897 = vadd.f32 %v819, %v896
        %v898 = vpop.f32.mrf.mxu0
        %899 = vdwg.mxu0
        %v904 = vunpack.c.l.b16 %v805
        %v905 = vunpack.c.l.b16 %v806
        %v906 = vunpack.c.l.b16 %v807
        %v907 = vunpack.c.l.b16 %v808
        %v908 = vpack.c.b16 %v905, %v904
        %v909 = vpack.c.b16 %v907, %v906
        %912 = vmatpush.bf16.msra.mxu0 0
        %913 = vmatpush.bf16.msra.mxu0 0
        %914 = vmatpush.bf16.msra.mxu0 0
        %915 = vmatpush.bf16.msra.mxu0 0
        %916 = vmatpush.bf16.msra.mxu0 0
        %917 = vmatpush.bf16.msra.mxu0 0
        %918 = vmatpush.bf16.msra.mxu0 %v909
        %919 = vmatpush.bf16.msra.mxu0 %v908
        %920 = vmatmul.bf16.gmra.mxu0 %v699
        %v921 = vpop.f32.mrf.mxu0
        %v922 = vadd.f32 %v820, %v921
        %v923 = vpop.f32.mrf.mxu0
        %924 = vdwg.mxu0
        %v925 = vpack.c.bf16 %v847, %v847
        %v926 = vpack.c.bf16 %v872, %v872
        %v927 = vpack.c.bf16 %v897, %v897
        %v928 = vpack.c.bf16 %v922, %v922
        %v929 = vld [vmem:[%s6] sm:$0xf]
        %v930 = vld [vmem:[%s6 + $0x4] sm:$0xf]
        %v931 = vld [vmem:[%s6 + $0x8] sm:$0xf]
        %v932 = vld [vmem:[%s6 + $0xc] sm:$0xf]
        %v933 = vld [vmem:[%s6 + $0x10] sm:$0xf]
        %v934 = vld [vmem:[%s6 + $0x14] sm:$0xf]
        %v935 = vld [vmem:[%s6 + $0x18] sm:$0xf]
        %v936 = vld [vmem:[%s6 + $0x1c] sm:$0xf]
        %v937 = vld [vmem:[%s6 + $0x20] sm:$0xf]
        %v938 = vld [vmem:[%s6 + $0x24] sm:$0xf]
        %v939 = vld [vmem:[%s6 + $0x28] sm:$0xf]
        %v940 = vld [vmem:[%s6 + $0x2c] sm:$0xf]
        %v941 = vld [vmem:[%s6 + $0x30] sm:$0xf]
        %v942 = vld [vmem:[%s6 + $0x34] sm:$0xf]
        %v943 = vld [vmem:[%s6 + $0x38] sm:$0xf]
        %v944 = vld [vmem:[%s6 + $0x3c] sm:$0xf]
        %v945 = vld [vmem:[%s7] sm:$0x1]
        %v946 = vld [vmem:[%s7 + $0x1] sm:$0x1]
        %v947 = vld [vmem:[%s7 + $0x2] sm:$0x1]
        %v948 = vld [vmem:[%s7 + $0x3] sm:$0x1]
        %v953 = vperm.slane %v945, 0
        %v954 = vperm.slane %v946, 0
        %v955 = vperm.slane %v947, 0
        %v956 = vperm.slane %v948, 0
        %v965 = vunpack.c.l.b16 %v929
        %v966 = vunpack.c.l.b16 %v930
        %v967 = vunpack.c.l.b16 %v931
        %v968 = vunpack.c.l.b16 %v932
        %v969 = vpack.c.b16 %v966, %v965
        %v970 = vpack.c.b16 %v968, %v967
        %973 = vmatpush.bf16.msra.mxu0 0
        %974 = vmatpush.bf16.msra.mxu0 0
        %975 = vmatpush.bf16.msra.mxu0 0
        %976 = vmatpush.bf16.msra.mxu0 0
        %977 = vmatpush.bf16.msra.mxu0 0
        %978 = vmatpush.bf16.msra.mxu0 0
        %979 = vmatpush.bf16.msra.mxu0 %v970
        %980 = vmatpush.bf16.msra.mxu0 %v969
        %981 = vmatmul.bf16.gmra.mxu0 %v699
        %v982 = vpop.f32.mrf.mxu0
        %v983 = vadd.f32 %v953, %v982
        %v984 = vpop.f32.mrf.mxu0
        %985 = vdwg.mxu0
        %v990 = vunpack.c.l.b16 %v933
        %v991 = vunpack.c.l.b16 %v934
        %v992 = vunpack.c.l.b16 %v935
        %v993 = vunpack.c.l.b16 %v936
        %v994 = vpack.c.b16 %v991, %v990
        %v995 = vpack.c.b16 %v993, %v992
        %998 = vmatpush.bf16.msra.mxu0 0
        %999 = vmatpush.bf16.msra.mxu0 0
        %1000 = vmatpush.bf16.msra.mxu0 0
        %1001 = vmatpush.bf16.msra.mxu0 0
        %1002 = vmatpush.bf16.msra.mxu0 0
        %1003 = vmatpush.bf16.msra.mxu0 0
        %1004 = vmatpush.bf16.msra.mxu0 %v995
        %1005 = vmatpush.bf16.msra.mxu0 %v994
        %1006 = vmatmul.bf16.gmra.mxu0 %v699
        %v1007 = vpop.f32.mrf.mxu0
        %v1008 = vadd.f32 %v954, %v1007
        %v1009 = vpop.f32.mrf.mxu0
        %1010 = vdwg.mxu0
        %v1015 = vunpack.c.l.b16 %v937
        %v1016 = vunpack.c.l.b16 %v938
        %v1017 = vunpack.c.l.b16 %v939
        %v1018 = vunpack.c.l.b16 %v940
        %v1019 = vpack.c.b16 %v1016, %v1015
        %v1020 = vpack.c.b16 %v1018, %v1017
        %1023 = vmatpush.bf16.msra.mxu0 0
        %1024 = vmatpush.bf16.msra.mxu0 0
        %1025 = vmatpush.bf16.msra.mxu0 0
        %1026 = vmatpush.bf16.msra.mxu0 0
        %1027 = vmatpush.bf16.msra.mxu0 0
        %1028 = vmatpush.bf16.msra.mxu0 0
        %1029 = vmatpush.bf16.msra.mxu0 %v1020
        %1030 = vmatpush.bf16.msra.mxu0 %v1019
        %1031 = vmatmul.bf16.gmra.mxu0 %v699
        %v1032 = vpop.f32.mrf.mxu0
        %v1033 = vadd.f32 %v955, %v1032
        %v1034 = vpop.f32.mrf.mxu0
        %1035 = vdwg.mxu0
        %v1040 = vunpack.c.l.b16 %v941
        %v1041 = vunpack.c.l.b16 %v942
        %v1042 = vunpack.c.l.b16 %v943
        %v1043 = vunpack.c.l.b16 %v944
        %v1044 = vpack.c.b16 %v1041, %v1040
        %v1045 = vpack.c.b16 %v1043, %v1042
        %1048 = vmatpush.bf16.msra.mxu0 0
        %1049 = vmatpush.bf16.msra.mxu0 0
        %1050 = vmatpush.bf16.msra.mxu0 0
        %1051 = vmatpush.bf16.msra.mxu0 0
        %1052 = vmatpush.bf16.msra.mxu0 0
        %1053 = vmatpush.bf16.msra.mxu0 0
        %1054 = vmatpush.bf16.msra.mxu0 %v1045
        %1055 = vmatpush.bf16.msra.mxu0 %v1044
        %1056 = vmatmul.bf16.gmra.mxu0 %v699
        %v1057 = vpop.f32.mrf.mxu0
        %v1058 = vadd.f32 %v956, %v1057
        %v1059 = vpop.f32.mrf.mxu0
        %1060 = vdwg.mxu0
        %v1061 = vpack.c.bf16 %v983, %v983
        %v1062 = vpack.c.bf16 %v1008, %v1008
        %v1063 = vpack.c.bf16 %v1033, %v1033
        %v1064 = vpack.c.bf16 %v1058, %v1058
        %vm1065 = vcmask 64512
        %v1067 = vsel %vm1065, %v789, 0
        %v1070 = vsel %vm1065, %v925, 0
        %1072 = vmatpush.bf16.xpose.msra.mxu0 0
        %1073 = vmatpush.bf16.xpose.msra.mxu0 0
        %1074 = vmatpush.bf16.xpose.msra.mxu0 0
        %1075 = vmatpush.bf16.xpose.msra.mxu0 0
        %1076 = vmatpush.bf16.xpose.msra.mxu0 0
        %1077 = vmatpush.bf16.xpose.msra.mxu0 0
        %1078 = vmatpush.bf16.xpose.msra.mxu0 0
        %1079 = vmatpush.bf16.xpose.msra.mxu0 %v1070
        %1080 = vmatmul.bf16.gmra.mxu0 %v1067
        %v1081 = vpop.f32.mrf.mxu0
        %v1082 = vadd.f32 0.0, %v1081
        %v1083 = vpop.f32.mrf.mxu0
        %1084 = vdwg.mxu0
        %v1086 = vsel %vm1065, %v790, 0
        %v1089 = vsel %vm1065, %v926, 0
        %1091 = vmatpush.bf16.xpose.msra.mxu0 0
        %1092 = vmatpush.bf16.xpose.msra.mxu0 0
        %1093 = vmatpush.bf16.xpose.msra.mxu0 0
        %1094 = vmatpush.bf16.xpose.msra.mxu0 0
        %1095 = vmatpush.bf16.xpose.msra.mxu0 0
        %1096 = vmatpush.bf16.xpose.msra.mxu0 0
        %1097 = vmatpush.bf16.xpose.msra.mxu0 0
        %1098 = vmatpush.bf16.xpose.msra.mxu0 %v1089
        %1099 = vmatmul.bf16.gmra.mxu0 %v1086
        %v1100 = vpop.f32.mrf.mxu0
        %v1101 = vadd.f32 0.0, %v1100
        %v1102 = vpop.f32.mrf.mxu0
        %1103 = vdwg.mxu0
        %v1105 = vsel %vm1065, %v791, 0
        %v1108 = vsel %vm1065, %v927, 0
        %1110 = vmatpush.bf16.xpose.msra.mxu0 0
        %1111 = vmatpush.bf16.xpose.msra.mxu0 0
        %1112 = vmatpush.bf16.xpose.msra.mxu0 0
        %1113 = vmatpush.bf16.xpose.msra.mxu0 0
        %1114 = vmatpush.bf16.xpose.msra.mxu0 0
        %1115 = vmatpush.bf16.xpose.msra.mxu0 0
        %1116 = vmatpush.bf16.xpose.msra.mxu0 0
        %1117 = vmatpush.bf16.xpose.msra.mxu0 %v1108
        %1118 = vmatmul.bf16.gmra.mxu0 %v1105
        %v1119 = vpop.f32.mrf.mxu0
        %v1120 = vadd.f32 0.0, %v1119
        %v1121 = vpop.f32.mrf.mxu0
        %1122 = vdwg.mxu0
        %v1124 = vsel %vm1065, %v792, 0
        %v1127 = vsel %vm1065, %v928, 0
        %1129 = vmatpush.bf16.xpose.msra.mxu0 0
        %1130 = vmatpush.bf16.xpose.msra.mxu0 0
        %1131 = vmatpush.bf16.xpose.msra.mxu0 0
        %1132 = vmatpush.bf16.xpose.msra.mxu0 0
        %1133 = vmatpush.bf16.xpose.msra.mxu0 0
        %1134 = vmatpush.bf16.xpose.msra.mxu0 0
        %1135 = vmatpush.bf16.xpose.msra.mxu0 0
        %1136 = vmatpush.bf16.xpose.msra.mxu0 %v1127
        %1137 = vmatmul.bf16.gmra.mxu0 %v1124
        %v1138 = vpop.f32.mrf.mxu0
        %v1139 = vadd.f32 0.0, %v1138
        %v1140 = vpop.f32.mrf.mxu0
        %1141 = vdwg.mxu0
        %v1142 = vmul.f32 %v1082, 0.35355338
        %v1143 = vmul.f32 %v1101, 0.35355338
        %v1144 = vmul.f32 %v1120, 0.35355338
        %v1145 = vmul.f32 %v1139, 0.35355338
        %v1147 = vperm.slane %v589, 0
        %v1149 = vadd.f32 %v1142, %v1147
        %v1150 = vadd.f32 %v1143, %v1147
        %v1151 = vadd.f32 %v1144, %v1147
        %v1152 = vadd.f32 %v1145, %v1147
        %v1153 = vsel %vm1065, %v1149, -inf
        %1154 = vmax.xlane.f32.xlu0 %v1153
        %v1155 = vpop.xlane.xlu0 %1154
        %v1156 = vsel %vm1065, %v1150, -inf
        %1157 = vmax.xlane.f32.xlu0 %v1156
        %v1158 = vpop.xlane.xlu0 %1157
        %v1159 = vsel %vm1065, %v1151, -inf
        %1160 = vmax.xlane.f32.xlu0 %v1159
        %v1161 = vpop.xlane.xlu0 %1160
        %v1162 = vsel %vm1065, %v1152, -inf
        %1163 = vmax.xlane.f32.xlu0 %v1162
        %v1164 = vpop.xlane.xlu0 %1163
        %v1165 = vsub.f32 %v1149, %v1155
        %v1166 = vsub.f32 %v1150, %v1158
        %v1167 = vsub.f32 %v1151, %v1161
        %v1168 = vsub.f32 %v1152, %v1164
        %v1169 = vmul.f32 %v1165, 1.442695
        %v1170 = vpow.pop %v1169
        %v1171 = vmul.f32 %v1166, 1.442695
        %v1172 = vpow.pop %v1171
        %v1173 = vmul.f32 %v1167, 1.442695
        %v1174 = vpow.pop %v1173
        %v1175 = vmul.f32 %v1168, 1.442695
        %v1176 = vpow.pop %v1175
        %v1177 = vsel %vm1065, %v1170, 0.0
        %1178 = vadd.xlane.f32.xlu0 %v1177
        %v1179 = vpop.xlane.xlu0 %1178
        %v1180 = vsel %vm1065, %v1172, 0.0
        %1181 = vadd.xlane.f32.xlu0 %v1180
        %v1182 = vpop.xlane.xlu0 %1181
        %v1183 = vsel %vm1065, %v1174, 0.0
        %1184 = vadd.xlane.f32.xlu0 %v1183
        %v1185 = vpop.xlane.xlu0 %1184
        %v1186 = vsel %vm1065, %v1176, 0.0
        %1187 = vadd.xlane.f32.xlu0 %v1186
        %v1188 = vpop.xlane.xlu0 %1187
        %v1189 = vrcp.pop %v1179
        %v1190 = vrcp.pop %v1182
        %v1191 = vrcp.pop %v1185
        %v1192 = vrcp.pop %v1188
        %v1193 = vmul.f32 %v1170, %v1189
        %v1194 = vmul.f32 %v1172, %v1190
        %v1195 = vmul.f32 %v1174, %v1191
        %v1196 = vmul.f32 %v1176, %v1192
        %v1197 = vpack.c.bf16 %v1193, %v1193
        %v1198 = vpack.c.bf16 %v1194, %v1194
        %v1199 = vpack.c.bf16 %v1195, %v1195
        %v1200 = vpack.c.bf16 %v1196, %v1196
        %v1202 = vsel %vm1065, %v1197, 0
        %vm1204 = vcmask 1043456
        %v1206 = vsel %vm1204, %v1061, 0
        %1208 = vmatpush.bf16.msra.mxu0 0
        %1209 = vmatpush.bf16.msra.mxu0 0
        %1210 = vmatpush.bf16.msra.mxu0 0
        %1211 = vmatpush.bf16.msra.mxu0 0
        %1212 = vmatpush.bf16.msra.mxu0 0
        %1213 = vmatpush.bf16.msra.mxu0 0
        %1214 = vmatpush.bf16.msra.mxu0 0
        %1215 = vmatpush.bf16.msra.mxu0 %v1206
        %1216 = vmatmul.bf16.gmra.mxu0 %v1202
        %v1217 = vpop.f32.mrf.mxu0
        %v1218 = vadd.f32 0.0, %v1217
        %v1219 = vpop.f32.mrf.mxu0
        %1220 = vdwg.mxu0
        %v1222 = vsel %vm1065, %v1198, 0
        %v1225 = vsel %vm1204, %v1062, 0
        %1227 = vmatpush.bf16.msra.mxu0 0
        %1228 = vmatpush.bf16.msra.mxu0 0
        %1229 = vmatpush.bf16.msra.mxu0 0
        %1230 = vmatpush.bf16.msra.mxu0 0
        %1231 = vmatpush.bf16.msra.mxu0 0
        %1232 = vmatpush.bf16.msra.mxu0 0
        %1233 = vmatpush.bf16.msra.mxu0 0
        %1234 = vmatpush.bf16.msra.mxu0 %v1225
        %1235 = vmatmul.bf16.gmra.mxu0 %v1222
        %v1236 = vpop.f32.mrf.mxu0
        %v1237 = vadd.f32 0.0, %v1236
        %v1238 = vpop.f32.mrf.mxu0
        %1239 = vdwg.mxu0
        %v1241 = vsel %vm1065, %v1199, 0
        %v1244 = vsel %vm1204, %v1063, 0
        %1246 = vmatpush.bf16.msra.mxu0 0
        %1247 = vmatpush.bf16.msra.mxu0 0
        %1248 = vmatpush.bf16.msra.mxu0 0
        %1249 = vmatpush.bf16.msra.mxu0 0
        %1250 = vmatpush.bf16.msra.mxu0 0
        %1251 = vmatpush.bf16.msra.mxu0 0
        %1252 = vmatpush.bf16.msra.mxu0 0
        %1253 = vmatpush.bf16.msra.mxu0 %v1244
        %1254 = vmatmul.bf16.gmra.mxu0 %v1241
        %v1255 = vpop.f32.mrf.mxu0
        %v1256 = vadd.f32 0.0, %v1255
        %v1257 = vpop.f32.mrf.mxu0
        %1258 = vdwg.mxu0
        %v1260 = vsel %vm1065, %v1200, 0
        %v1263 = vsel %vm1204, %v1064, 0
        %1265 = vmatpush.bf16.msra.mxu0 0
        %1266 = vmatpush.bf16.msra.mxu0 0
        %1267 = vmatpush.bf16.msra.mxu0 0
        %1268 = vmatpush.bf16.msra.mxu0 0
        %1269 = vmatpush.bf16.msra.mxu0 0
        %1270 = vmatpush.bf16.msra.mxu0 0
        %1271 = vmatpush.bf16.msra.mxu0 0
        %1272 = vmatpush.bf16.msra.mxu0 %v1263
        %1273 = vmatmul.bf16.gmra.mxu0 %v1260
        %v1274 = vpop.f32.mrf.mxu0
        %v1275 = vadd.f32 0.0, %v1274
        %v1276 = vpop.f32.mrf.mxu0
        %1277 = vdwg.mxu0
        %v1278 = vpack.c.bf16 %v1218, %v1218
        %v1279 = vpack.c.bf16 %v1237, %v1237
        %v1280 = vpack.c.bf16 %v1256, %v1256
        %v1281 = vpack.c.bf16 %v1275, %v1275
        %v1282 = vld [vmem:[%s8] sm:$0xf]
        %v1283 = vld [vmem:[%s8 + $0x4] sm:$0xf]
        %v1284 = vld [vmem:[%s8 + $0x8] sm:$0xf]
        %v1285 = vld [vmem:[%s8 + $0xc] sm:$0xf]
        %v1287 = vsel %vm1065, %v1278, 0
        %v1290 = vsel %vm1204, %v1282, 0
        %1292 = vmatpush.bf16.msra.mxu0 0
        %1293 = vmatpush.bf16.msra.mxu0 0
        %1294 = vmatpush.bf16.msra.mxu0 0
        %1295 = vmatpush.bf16.msra.mxu0 0
        %1296 = vmatpush.bf16.msra.mxu0 0
        %1297 = vmatpush.bf16.msra.mxu0 0
        %1298 = vmatpush.bf16.msra.mxu0 0
        %1299 = vmatpush.bf16.msra.mxu0 %v1290
        %1300 = vmatmul.bf16.gmra.mxu0 %v1287
        %v1301 = vpop.f32.mrf.mxu0
        %v1302 = vadd.f32 0.0, %v1301
        %v1303 = vpop.f32.mrf.mxu0
        %1304 = vdwg.mxu0
        %v1306 = vsel %vm1065, %v1279, 0
        %v1309 = vsel %vm1204, %v1283, 0
        %1311 = vmatpush.bf16.msra.mxu0 0
        %1312 = vmatpush.bf16.msra.mxu0 0
        %1313 = vmatpush.bf16.msra.mxu0 0
        %1314 = vmatpush.bf16.msra.mxu0 0
        %1315 = vmatpush.bf16.msra.mxu0 0
        %1316 = vmatpush.bf16.msra.mxu0 0
        %1317 = vmatpush.bf16.msra.mxu0 0
        %1318 = vmatpush.bf16.msra.mxu0 %v1309
        %1319 = vmatmul.bf16.gmra.mxu0 %v1306
        %v1320 = vpop.f32.mrf.mxu0
        %v1321 = vadd.f32 0.0, %v1320
        %v1322 = vpop.f32.mrf.mxu0
        %1323 = vdwg.mxu0
        %v1325 = vsel %vm1065, %v1280, 0
        %v1328 = vsel %vm1204, %v1284, 0
        %1330 = vmatpush.bf16.msra.mxu0 0
        %1331 = vmatpush.bf16.msra.mxu0 0
        %1332 = vmatpush.bf16.msra.mxu0 0
        %1333 = vmatpush.bf16.msra.mxu0 0
        %1334 = vmatpush.bf16.msra.mxu0 0
        %1335 = vmatpush.bf16.msra.mxu0 0
        %1336 = vmatpush.bf16.msra.mxu0 0
        %1337 = vmatpush.bf16.msra.mxu0 %v1328
        %1338 = vmatmul.bf16.gmra.mxu0 %v1325
        %v1339 = vpop.f32.mrf.mxu0
        %v1340 = vadd.f32 0.0, %v1339
        %v1341 = vpop.f32.mrf.mxu0
        %1342 = vdwg.mxu0
        %v1344 = vsel %vm1065, %v1281, 0
        %v1347 = vsel %vm1204, %v1285, 0
        %1349 = vmatpush.bf16.msra.mxu0 0
        %1350 = vmatpush.bf16.msra.mxu0 0
        %1351 = vmatpush.bf16.msra.mxu0 0
        %1352 = vmatpush.bf16.msra.mxu0 0
        %1353 = vmatpush.bf16.msra.mxu0 0
        %1354 = vmatpush.bf16.msra.mxu0 0
        %1355 = vmatpush.bf16.msra.mxu0 0
        %1356 = vmatpush.bf16.msra.mxu0 %v1347
        %1357 = vmatmul.bf16.gmra.mxu0 %v1344
        %v1358 = vpop.f32.mrf.mxu0
        %v1359 = vadd.f32 0.0, %v1358
        %v1360 = vpop.f32.mrf.mxu0
        %1361 = vdwg.mxu0
        %v1362 = vsel %vm592, %v1302, 0.0
        %v1363 = vsel %vm592, %v1321, 0.0
        %v1364 = vadd.f32 %v1362, %v1363
        %v1365 = vsel %vm592, %v1340, 0.0
        %v1366 = vadd.f32 %v1364, %v1365
        %v1367 = vsel %vm592, %v1359, 0.0
        %v1368 = vadd.f32 %v1366, %v1367
        %v1369 = vld [vmem:[%s9] sm:$0x1]
        %v1371 = vperm.slane %v1369, 0
        %v1373 = vadd.f32 %v1368, %v1371
        %v1374 = vadd.f32 %v586, %v1373
        %v1375 = vld [vmem:[%s16] sm:$0x1]
        %v1376 = vld [vmem:[%s17] sm:$0x1]
        %v1377 = vsel %vm592, %v1374, 0.0
        %1378 = vadd.xlane.f32.xlu0 %v1377
        %v1379 = vpop.xlane.xlu0 %1378
        %v1380 = vmul.f32 %v1379, %v602
        %v1381 = vsub.f32 %v1374, %v1380
        %v1382 = vmul.f32 %v1381, %v1381
        %v1383 = vsel %vm592, %v1382, 0.0
        %1384 = vadd.xlane.f32.xlu0 %v1383
        %v1385 = vpop.xlane.xlu0 %1384
        %v1386 = vmul.f32 %v1385, %v615
        %v1388 = vperm.slane %v1375, 0
        %v1390 = vmul.f32 %v1388, %v1381
        %v1391 = vrsqrt.pop %v1386
        %v1392 = vmul.f32 %v1391, %v1386
        %v1393 = vmul.f32 %v1392, %v1391
        %v1394 = vmul.f32 0.5, %v1393
        %v1395 = vsub.f32 1.5, %v1394
        %v1396 = vmul.f32 %v1391, %v1395
        %v1397 = vmul.f32 %v1386, %v1396
        %vm1398 = vcmp.eq.f32.partialorder %v1386, inf
        %v1399 = vsel %vm1398, %v1386, %v1397
        %vm1400 = vcmp.eq.f32.partialorder %v1386, 0.0
        %v1401 = vand.u32 %v1386, 2147483648
        %v1402 = vsel %vm1400, %v1401, %v1399
        %v1403 = vadd.f32 %v1402, 1e-06
        %v1404 = vrcp.pop %v1403
        %v1405 = vmul.f32 %v1403, %v1404
        %v1406 = vsub.f32 1.0, %v1405
        %v1407 = vmul.f32 %v1404, %v1406
        %v1408 = vadd.f32 %v1404, %v1407
        %vm1409 = vweird.f32 %v1403
        %vm1410 = vweird.f32 %v1404
        %vm1411 = vmor %vm1409, %vm1410
        %v1412 = vsel %vm1411, %v1404, %v1408
        %v1413 = vand.u32 2147483647, %v1403
        %vm1414 = vcmp.eq.f32.partialorder %v1413, 8.507059e+37
        %v1415 = vand.u32 %v1403, 2147483648
        %v1416 = vor.u32 1.1754944e-38, %v1415
        %v1417 = vsel %vm1414, %v1416, %v1412
        %v1418 = vmul.f32 %v1390, %v1417
        %v1420 = vperm.slane %v1376, 0
        %v1422 = vadd.f32 %v1418, %v1420
        %v1423 = vpack.c.bf16 %v1422, %v1422
        %v1424 = vld [vmem:[%s12] sm:$0xf]
        %v1425 = vld [vmem:[%s12 + $0x4] sm:$0xf]
        %v1426 = vld [vmem:[%s12 + $0x8] sm:$0xf]
        %v1427 = vld [vmem:[%s12 + $0xc] sm:$0xf]
        %v1428 = vld [vmem:[%s13] sm:$0x1]
        %v1430 = vperm.slane %v1428, 0
        %v1436 = vunpack.c.l.b16 %v1424
        %v1437 = vunpack.c.l.b16 %v1425
        %v1438 = vunpack.c.l.b16 %v1426
        %v1439 = vunpack.c.l.b16 %v1427
        %v1440 = vpack.c.b16 %v1437, %v1436
        %v1441 = vpack.c.b16 %v1439, %v1438
        %v1445 = vsel %vm592, %v1423, 0
        %1447 = vmatpush.bf16.msra.mxu0 0
        %1448 = vmatpush.bf16.msra.mxu0 0
        %1449 = vmatpush.bf16.msra.mxu0 0
        %1450 = vmatpush.bf16.msra.mxu0 0
        %1451 = vmatpush.bf16.msra.mxu0 0
        %1452 = vmatpush.bf16.msra.mxu0 0
        %1453 = vmatpush.bf16.msra.mxu0 %v1441
        %1454 = vmatpush.bf16.msra.mxu0 %v1440
        %1455 = vmatmul.bf16.gmra.mxu0 %v1445
        %v1456 = vpop.f32.mrf.mxu0
        %v1457 = vadd.f32 %v1430, %v1456
        %v1458 = vpop.f32.mrf.mxu0
        %1459 = vdwg.mxu0
        %v1460 = vmul.f32 %v1457, 0.5
        %v1461 = vmul.f32 %v1457, 0.044715
        %v1462 = vmul.f32 %v1461, %v1457
        %v1463 = vmul.f32 %v1462, %v1457
        %v1464 = vadd.f32 %v1457, %v1463
        %v1465 = vmul.f32 %v1464, 0.7978846
        %v1466 = vtanh.pop %v1465
        %v1467 = vadd.f32 %v1466, 1.0
        %v1468 = vmul.f32 %v1460, %v1467
        %v1469 = vpack.c.bf16 %v1468, %v1468
        %v1470 = vld [vmem:[%s14] sm:$0xf]
        %v1471 = vld [vmem:[%s14 + $0x4] sm:$0xf]
        %v1472 = vld [vmem:[%s14 + $0x8] sm:$0xf]
        %v1473 = vld [vmem:[%s14 + $0xc] sm:$0xf]
        %v1474 = vld [vmem:[%s14 + $0x10] sm:$0xf]
        %v1475 = vld [vmem:[%s14 + $0x14] sm:$0xf]
        %v1476 = vld [vmem:[%s14 + $0x18] sm:$0xf]
        %v1477 = vld [vmem:[%s14 + $0x1c] sm:$0xf]
        %v1478 = vld [vmem:[%s14 + $0x20] sm:$0xf]
        %v1479 = vld [vmem:[%s14 + $0x24] sm:$0xf]
        %v1480 = vld [vmem:[%s14 + $0x28] sm:$0xf]
        %v1481 = vld [vmem:[%s14 + $0x2c] sm:$0xf]
        %v1482 = vld [vmem:[%s14 + $0x30] sm:$0xf]
        %v1483 = vld [vmem:[%s14 + $0x34] sm:$0xf]
        %v1484 = vld [vmem:[%s14 + $0x38] sm:$0xf]
        %v1485 = vld [vmem:[%s14 + $0x3c] sm:$0xf]
        %v1486 = vld [vmem:[%s15] sm:$0x1]
        %v1488 = vperm.slane %v1486, 0
        %v1506 = vunpack.c.l.b16 %v1470
        %v1507 = vunpack.c.l.b16 %v1471
        %v1508 = vunpack.c.l.b16 %v1472
        %v1509 = vunpack.c.l.b16 %v1473
        %v1510 = vunpack.c.l.b16 %v1474
        %v1511 = vunpack.c.l.b16 %v1475
        %v1512 = vunpack.c.l.b16 %v1476
        %v1513 = vunpack.c.l.b16 %v1477
        %v1514 = vunpack.c.l.b16 %v1478
        %v1515 = vunpack.c.l.b16 %v1479
        %v1516 = vunpack.c.l.b16 %v1480
        %v1517 = vunpack.c.l.b16 %v1481
        %v1518 = vunpack.c.l.b16 %v1482
        %v1519 = vunpack.c.l.b16 %v1483
        %v1520 = vunpack.c.l.b16 %v1484
        %v1521 = vunpack.c.l.b16 %v1485
        %v1522 = vpack.c.b16 %v1507, %v1506
        %v1523 = vpack.c.b16 %v1509, %v1508
        %v1524 = vpack.c.b16 %v1511, %v1510
        %v1525 = vpack.c.b16 %v1513, %v1512
        %v1526 = vpack.c.b16 %v1515, %v1514
        %v1527 = vpack.c.b16 %v1517, %v1516
        %v1528 = vpack.c.b16 %v1519, %v1518
        %v1529 = vpack.c.b16 %v1521, %v1520
        %1538 = vmatpush.bf16.msra.mxu0 %v1529
        %1539 = vmatpush.bf16.msra.mxu0 %v1528
        %1540 = vmatpush.bf16.msra.mxu0 %v1527
        %1541 = vmatpush.bf16.msra.mxu0 %v1526
        %1542 = vmatpush.bf16.msra.mxu0 %v1525
        %1543 = vmatpush.bf16.msra.mxu0 %v1524
        %1544 = vmatpush.bf16.msra.mxu0 %v1523
        %1545 = vmatpush.bf16.msra.mxu0 %v1522
        %1546 = vmatmul.bf16.gmra.mxu0 %v1469
        %v1547 = vpop.f32.mrf.mxu0
        %v1548 = vadd.f32 %v1488, %v1547
        %v1549 = vpop.f32.mrf.mxu0
        %1550 = vdwg.mxu0
        %v1551 = vadd.f32 %v1374, %v1548
        %1552 = vst.msk [vmem:[%s577] sm:$0xff] %vm592, %v1551
        %s1553 = sand.u32 %s428, 1
        %s1554 = scalar_lea.sflag [#allocation3], %s1553
        %s1555 = sand.u32 %s428, 1
        %s1556 = smul.addr %s1555, 8
        %s1557 = scalar_lea.vmem [#allocation2], %s1556
        // Predicated region
        $region93: #{tpu_custom_call.1} parent=91 // pred_check
          %p1558 = pneg %p438
        $region94: #{tpu_custom_call.1} parent=91 // pred_check_branch
          %1560 = sbr.rel (%p1558) target = $region96
        $region95: #{tpu_custom_call.1} parent=91 // pred_region
          %1562 = vsyncadd %s1554, 0
          %s1563 = smul.addr %s32, 8
          %s1564 = scalar_lea.hbm %s18, %s1563
          %s1566 = sshll.u32 %s1557, 4
          %s1567 = int_to_ptr.vmem [resolvable:$true] %s1566
          %s1568 = sshll.u32 %s1564, 4
          %s1569 = int_to_ptr.hbm [resolvable:$true] %s1568
          %1571 = dma.vmem_to_hbm [thread:$0]  %s1567, 128, %s1569, %s1554
        $region96: #{tpu_custom_call.1} parent=91 // pred_fallthru
          _
      $region92: #{tpu_custom_call.1} parent=5 // pred_fallthru
        _
      %p1572 = scmp.le.s32.totalorder 2, %s27
      // Predicated region
      $region97: #{tpu_custom_call.1} parent=5 // pred_check
        %p1573 = pneg %p1572
      $region98: #{tpu_custom_call.1} parent=5 // pred_check_branch
        %1575 = sbr.rel (%p1573) target = $region100
      $region99: #{tpu_custom_call.1} parent=5 // pred_region
        %s1576 = ssub.s32 %s27, 2
        // Predicated region
        $region101: #{tpu_custom_call.1} parent=99 // pred_check
          %p1577 = pneg %p444
        $region102: #{tpu_custom_call.1} parent=99 // pred_check_branch
          %1579 = sbr.rel (%p1577) target = $region104
        $region103: #{tpu_custom_call.1} parent=99 // pred_region
          %s1580 = sand.u32 %s429, 1
          %s1581 = scalar_lea.sflag [#allocation3], %s1580
          %s1582 = sand.u32 %s429, 1
          %s1583 = smul.addr %s1582, 8
          %s1584 = scalar_lea.vmem [#allocation2], %s1583
          %1586 = dma.done %s1581, 128
        $region104: #{tpu_custom_call.1} parent=99 // pred_fallthru
          _
      $region100: #{tpu_custom_call.1} parent=5 // pred_fallthru
        _
    $region6: #{tpu_custom_call.1} parent=1 // loop_footer
      %s31 = sadd.s32 1, %s27
    $region7: #{tpu_custom_call.1} parent=1 // loop_footer_branch
      %26 = sbr.rel target = $region3
    $region8: #{tpu_custom_call.1} parent=1 // loop_exit
      _
    %1587 = vsyncpa [#allocation3], 1
    %s1588 = scalar_lea.sflag [#allocation3], 1
    %1589 = vsyncpa %s1588, 1

// kernel: tpu_custom_call.1
$region0: #{tpu_custom_call.1}
  #allocation0 [shape = 'u32[]', space=smem, size = 0x4, offset = 0x4, fixed_abs, tag = 'smem constant byte address 0x4 - core index']
  #allocation1 [shape = 'u32[72,128]{1,0:T(1,128)}', space=vmem, size = 0x9000, scoped, tag = 'internal scratch']
  %s0 = inlined_call_operand.vmem [shape: f32[2,8,32], index: 0, kind: input, shape index: {}]
  %s1 = inlined_call_operand.vmem [shape: f32[2,1,8], index: 1, kind: input, shape index: {}]
  %s2 = inlined_call_operand.vmem [shape: bf16[4,32,8], index: 2, kind: input, shape index: {}]
  %s3 = inlined_call_operand.vmem [shape: f32[4,1,8], index: 3, kind: input, shape index: {}]
  %s4 = inlined_call_operand.vmem [shape: bf16[4,32,8], index: 4, kind: input, shape index: {}]
  %s5 = inlined_call_operand.vmem [shape: f32[4,1,8], index: 5, kind: input, shape index: {}]
  %s6 = inlined_call_operand.vmem [shape: bf16[4,32,8], index: 6, kind: input, shape index: {}]
  %s7 = inlined_call_operand.vmem [shape: f32[4,1,8], index: 7, kind: input, shape index: {}]
  %s8 = inlined_call_operand.vmem [shape: bf16[4,8,32], index: 8, kind: input, shape index: {}]
  %s9 = inlined_call_operand.vmem [shape: f32[1,32], index: 9, kind: input, shape index: {}]
  %s10 = inlined_call_operand.vmem [shape: f32[1,32], index: 10, kind: input, shape index: {}]
  %s11 = inlined_call_operand.vmem [shape: f32[1,32], index: 11, kind: input, shape index: {}]
  %s12 = inlined_call_operand.vmem [shape: bf16[32,128], index: 12, kind: input, shape index: {}]
  %s13 = inlined_call_operand.vmem [shape: f32[1,128], index: 13, kind: input, shape index: {}]
  %s14 = inlined_call_operand.vmem [shape: bf16[128,32], index: 14, kind: input, shape index: {}]
  %s15 = inlined_call_operand.vmem [shape: f32[1,32], index: 15, kind: input, shape index: {}]
  %s16 = inlined_call_operand.vmem [shape: f32[1,32], index: 16, kind: input, shape index: {}]
  %s17 = inlined_call_operand.vmem [shape: f32[1,32], index: 17, kind: input, shape index: {}]
  %s18 = inlined_call_operand.hbm [shape: f32[2,8,32], index: 18, kind: output, shape index: {}]
  %s19 = sld [smem:[#allocation0]]
  $region105: #{tpu_custom_call.1} parent=0
    _
  %s21 = ssub.s32 1, %s19
  %s22 = scalar_select 0, %s21, %s19
  $region1: #{tpu_custom_call.1} parent=0
    #allocation2 [shape = 'u8[8192]{0}', space=vmem, size = 0x2000, scoped, tag = 'output window, operand 0']
    #allocation3 [shape = 's32[2]{0}', space=sflag, size = 0x8, scoped, tag = 'scoped memory for tpu_custom_call.1']
    %23 = vsyncpa [#allocation3], 0
    %s24 = scalar_lea.sflag [#allocation3], 1
    %25 = vsyncpa %s24, 0
    loop: start=0, step=1, limit=4
    $region2: #{tpu_custom_call.1} parent=1 // loop_pre_header
      _
    $region3: #{tpu_custom_call.1} parent=1 // loop_header
      %s27 = sphi 0, %s31
      %p28 = scmp.ge.s32.totalorder %s27, 4
      %s37 = sphi 0, %s39
      %s40 = sphi 0, %s37
      %s41 = sphi 0, %s40
      %s57 = sphi 0, %s41
      %s63 = sphi 0, %s65
      %s66 = sphi 0, %s63
      %s67 = sphi 0, %s66
      %s83 = sphi 0, %s67
      %s87 = sphi 0, %s87
      %s89 = sphi 0, %s87
      %s90 = sphi 0, %s89
      %s104 = sphi 0, %s90
      %s108 = sphi 0, %s108
      %s110 = sphi 0, %s108
      %s111 = sphi 0, %s110
      %s125 = sphi 0, %s111
      %s129 = sphi 0, %s129
      %s131 = sphi 0, %s129
      %s132 = sphi 0, %s131
      %s146 = sphi 0, %s132
      %s150 = sphi 0, %s150
      %s152 = sphi 0, %s150
      %s153 = sphi 0, %s152
      %s167 = sphi 0, %s153
      %s171 = sphi 0, %s171
      %s173 = sphi 0, %s171
      %s174 = sphi 0, %s173
      %s188 = sphi 0, %s174
      %s192 = sphi 0, %s192
      %s194 = sphi 0, %s192
      %s195 = sphi 0, %s194
      %s209 = sphi 0, %s195
      %s213 = sphi 0, %s213
      %s215 = sphi 0, %s213
      %s216 = sphi 0, %s215
      %s230 = sphi 0, %s216
      %s234 = sphi 0, %s234
      %s236 = sphi 0, %s234
      %s237 = sphi 0, %s236
      %s251 = sphi 0, %s237
      %s255 = sphi 0, %s255
      %s257 = sphi 0, %s255
      %s258 = sphi 0, %s257
      %s272 = sphi 0, %s258
      %s276 = sphi 0, %s276
      %s278 = sphi 0, %s276
      %s279 = sphi 0, %s278
      %s293 = sphi 0, %s279
      %s297 = sphi 0, %s297
      %s299 = sphi 0, %s297
      %s300 = sphi 0, %s299
      %s314 = sphi 0, %s300
      %s318 = sphi 0, %s318
      %s320 = sphi 0, %s318
      %s321 = sphi 0, %s320
      %s335 = sphi 0, %s321
      %s339 = sphi 0, %s339
      %s341 = sphi 0, %s339
      %s342 = sphi 0, %s341
      %s356 = sphi 0, %s342
      %s360 = sphi 0, %s360
      %s362 = sphi 0, %s360
      %s363 = sphi 0, %s362
      %s377 = sphi 0, %s363
      %s381 = sphi 0, %s381
      %s383 = sphi 0, %s381
      %s384 = sphi 0, %s383
      %s398 = sphi 0, %s384
      %s402 = sphi 0, %s402
      %s404 = sphi 0, %s402
      %s405 = sphi 0, %s404
      %s419 = sphi 0, %s405
      %s425 = sphi 0, %s427
      %s428 = sphi 0, %s425
      %s429 = sphi 0, %s428
      %s445 = sphi 0, %s429
    $region4: #{tpu_custom_call.1} parent=1 // loop_header_branch
      %30 = sbr.rel (%p28) target = $region8
    $region5: #{tpu_custom_call.1} parent=1 // loop_body
      %s32 = ssub.s32 %s27, 1
      %s33 = ssub.s32 %s27, 2
      %s34 = sadd.s32 %s27, 1
      %s35 = ssub.s32 %s27, %s34
      %p36 = scmp.eq.s32.totalorder %s35, 0
      %s38 = sadd.s32 %s37, 1
      %s39 = scalar_select %p36, %s37, %s38
      %p42 = pneg %p36
      %p43 = scmp.eq.s32.totalorder %s27, 1
      %p44 = por %p42, %p43
      %p45 = scmp.ne.s32.totalorder %s37, %s40
      %p46 = scmp.eq.s32.totalorder %s27, 0
      %p47 = por %p45, %p46
      %p48 = scmp.ne.s32.totalorder %s37, %s40
      %p49 = scmp.eq.s32.totalorder %s32, 1
      %p50 = por %p48, %p49
      %p51 = scmp.ne.s32.totalorder %s40, %s41
      %p52 = scmp.eq.s32.totalorder %s32, 0
      %p53 = por %p51, %p52
      %p54 = scmp.ne.s32.totalorder %s40, %s41
      %p55 = scmp.eq.s32.totalorder %s33, 1
      %p56 = por %p54, %p55
      %p58 = scmp.ne.s32.totalorder %s41, %s57
      %p59 = scmp.eq.s32.totalorder %s33, 0
      %p60 = por %p58, %p59
      %s61 = ssub.s32 %s27, %s34
      %p62 = scmp.eq.s32.totalorder %s61, 0
      %s64 = sadd.s32 %s63, 1
      %s65 = scalar_select %p62, %s63, %s64
      %p68 = pneg %p62
      %p69 = scmp.eq.s32.totalorder %s27, 1
      %p70 = por %p68, %p69
      %p71 = scmp.ne.s32.totalorder %s63, %s66
      %p72 = scmp.eq.s32.totalorder %s27, 0
      %p73 = por %p71, %p72
      %p74 = scmp.ne.s32.totalorder %s63, %s66
      %p75 = scmp.eq.s32.totalorder %s32, 1
      %p76 = por %p74, %p75
      %p77 = scmp.ne.s32.totalorder %s66, %s67
      %p78 = scmp.eq.s32.totalorder %s32, 0
      %p79 = por %p77, %p78
      %p80 = scmp.ne.s32.totalorder %s66, %s67
      %p81 = scmp.eq.s32.totalorder %s33, 1
      %p82 = por %p80, %p81
      %p84 = scmp.ne.s32.totalorder %s67, %s83
      %p85 = scmp.eq.s32.totalorder %s33, 0
      %p86 = por %p84, %p85
      %s88 = sadd.s32 %s87, 1
      %p91 = scmp.eq.s32.totalorder %s27, 1
      %p92 = scmp.ne.s32.totalorder %s87, %s89
      %p93 = scmp.eq.s32.totalorder %s27, 0
      %p94 = por %p92, %p93
      %p95 = scmp.ne.s32.totalorder %s87, %s89
      %p96 = scmp.eq.s32.totalorder %s32, 1
      %p97 = por %p95, %p96
      %p98 = scmp.ne.s32.totalorder %s89, %s90
      %p99 = scmp.eq.s32.totalorder %s32, 0
      %p100 = por %p98, %p99
      %p101 = scmp.ne.s32.totalorder %s89, %s90
      %p102 = scmp.eq.s32.totalorder %s33, 1
      %p103 = por %p101, %p102
      %p105 = scmp.ne.s32.totalorder %s90, %s104
      %p106 = scmp.eq.s32.totalorder %s33, 0
      %p107 = por %p105, %p106
      %s109 = sadd.s32 %s108, 1
      %p112 = scmp.eq.s32.totalorder %s27, 1
      %p113 = scmp.ne.s32.totalorder %s108, %s110
      %p114 = scmp.eq.s32.totalorder %s27, 0
      %p115 = por %p113, %p114
      %p116 = scmp.ne.s32.totalorder %s108, %s110
      %p117 = scmp.eq.s32.totalorder %s32, 1
      %p118 = por %p116, %p117
      %p119 = scmp.ne.s32.totalorder %s110, %s111
      %p120 = scmp.eq.s32.totalorder %s32, 0
      %p121 = por %p119, %p120
      %p122 = scmp.ne.s32.totalorder %s110, %s111
      %p123 = scmp.eq.s32.totalorder %s33, 1
      %p124 = por %p122, %p123
      %p126 = scmp.ne.s32.totalorder %s111, %s125
      %p127 = scmp.eq.s32.totalorder %s33, 0
      %p128 = por %p126, %p127
      %s130 = sadd.s32 %s129, 1
      %p133 = scmp.eq.s32.totalorder %s27, 1
      %p134 = scmp.ne.s32.totalorder %s129, %s131
      %p135 = scmp.eq.s32.totalorder %s27, 0
      %p136 = por %p134, %p135
      %p137 = scmp.ne.s32.totalorder %s129, %s131
      %p138 = scmp.eq.s32.totalorder %s32, 1
      %p139 = por %p137, %p138
      %p140 = scmp.ne.s32.totalorder %s131, %s132
      %p141 = scmp.eq.s32.totalorder %s32, 0
      %p142 = por %p140, %p141
      %p143 = scmp.ne.s32.totalorder %s131, %s132
      %p144 = scmp.eq.s32.totalorder %s33, 1
      %p145 = por %p143, %p144
      %p147 = scmp.ne.s32.totalorder %s132, %s146
      %p148 = scmp.eq.s32.totalorder %s33, 0
      %p149 = por %p147, %p148
      %s151 = sadd.s32 %s150, 1
      %p154 = scmp.eq.s32.totalorder %s27, 1
      %p155 = scmp.ne.s32.totalorder %s150, %s152
      %p156 = scmp.eq.s32.totalorder %s27, 0
      %p157 = por %p155, %p156
      %p158 = scmp.ne.s32.totalorder %s150, %s152
      %p159 = scmp.eq.s32.totalorder %s32, 1
      %p160 = por %p158, %p159
      %p161 = scmp.ne.s32.totalorder %s152, %s153
      %p162 = scmp.eq.s32.totalorder %s32, 0
      %p163 = por %p161, %p162
      %p164 = scmp.ne.s32.totalorder %s152, %s153
      %p165 = scmp.eq.s32.totalorder %s33, 1
      %p166 = por %p164, %p165
      %p168 = scmp.ne.s32.totalorder %s153, %s167
      %p169 = scmp.eq.s32.totalorder %s33, 0
      %p170 = por %p168, %p169
      %s172 = sadd.s32 %s171, 1
      %p175 = scmp.eq.s32.totalorder %s27, 1
      %p176 = scmp.ne.s32.totalorder %s171, %s173
      %p177 = scmp.eq.s32.totalorder %s27, 0
      %p178 = por %p176, %p177
      %p179 = scmp.ne.s32.totalorder %s171, %s173
      %p180 = scmp.eq.s32.totalorder %s32, 1
      %p181 = por %p179, %p180
      %p182 = scmp.ne.s32.totalorder %s173, %s174
      %p183 = scmp.eq.s32.totalorder %s32, 0
      %p184 = por %p182, %p183
      %p185 = scmp.ne.s32.totalorder %s173, %s174
      %p186 = scmp.eq.s32.totalorder %s33, 1
      %p187 = por %p185, %p186
      %p189 = scmp.ne.s32.totalorder %s174, %s188
      %p190 = scmp.eq.s32.totalorder %s33, 0
      %p191 = por %p189, %p190
      %s193 = sadd.s32 %s192, 1
      %p196 = scmp.eq.s32.totalorder %s27, 1
      %p197 = scmp.ne.s32.totalorder %s192, %s194
      %p198 = scmp.eq.s32.totalorder %s27, 0
      %p199 = por %p197, %p198
      %p200 = scmp.ne.s32.totalorder %s192, %s194
      %p201 = scmp.eq.s32.totalorder %s32, 1
      %p202 = por %p200, %p201
      %p203 = scmp.ne.s32.totalorder %s194, %s195
      %p204 = scmp.eq.s32.totalorder %s32, 0
      %p205 = por %p203, %p204
      %p206 = scmp.ne.s32.totalorder %s194, %s195
      %p207 = scmp.eq.s32.totalorder %s33, 1
      %p208 = por %p206, %p207
      %p210 = scmp.ne.s32.totalorder %s195, %s209
      %p211 = scmp.eq.s32.totalorder %s33, 0
      %p212 = por %p210, %p211
      %s214 = sadd.s32 %s213, 1
      %p217 = scmp.eq.s32.totalorder %s27, 1
      %p218 = scmp.ne.s32.totalorder %s213, %s215
      %p219 = scmp.eq.s32.totalorder %s27, 0
      %p220 = por %p218, %p219
      %p221 = scmp.ne.s32.totalorder %s213, %s215
      %p222 = scmp.eq.s32.totalorder %s32, 1
      %p223 = por %p221, %p222
      %p224 = scmp.ne.s32.totalorder %s215, %s216
      %p225 = scmp.eq.s32.totalorder %s32, 0
      %p226 = por %p224, %p225
      %p227 = scmp.ne.s32.totalorder %s215, %s216
      %p228 = scmp.eq.s32.totalorder %s33, 1
      %p229 = por %p227, %p228
      %p231 = scmp.ne.s32.totalorder %s216, %s230
      %p232 = scmp.eq.s32.totalorder %s33, 0
      %p233 = por %p231, %p232
      %s235 = sadd.s32 %s234, 1
      %p238 = scmp.eq.s32.totalorder %s27, 1
      %p239 = scmp.ne.s32.totalorder %s234, %s236
      %p240 = scmp.eq.s32.totalorder %s27, 0
      %p241 = por %p239, %p240
      %p242 = scmp.ne.s32.totalorder %s234, %s236
      %p243 = scmp.eq.s32.totalorder %s32, 1
      %p244 = por %p242, %p243
      %p245 = scmp.ne.s32.totalorder %s236, %s237
      %p246 = scmp.eq.s32.totalorder %s32, 0
      %p247 = por %p245, %p246
      %p248 = scmp.ne.s32.totalorder %s236, %s237
      %p249 = scmp.eq.s32.totalorder %s33, 1
      %p250 = por %p248, %p249
      %p252 = scmp.ne.s32.totalorder %s237, %s251
      %p253 = scmp.eq.s32.totalorder %s33, 0
      %p254 = por %p252, %p253
      %s256 = sadd.s32 %s255, 1
      %p259 = scmp.eq.s32.totalorder %s27, 1
      %p260 = scmp.ne.s32.totalorder %s255, %s257
      %p261 = scmp.eq.s32.totalorder %s27, 0
      %p262 = por %p260, %p261
      %p263 = scmp.ne.s32.totalorder %s255, %s257
      %p264 = scmp.eq.s32.totalorder %s32, 1
      %p265 = por %p263, %p264
      %p266 = scmp.ne.s32.totalorder %s257, %s258
      %p267 = scmp.eq.s32.totalorder %s32, 0
      %p268 = por %p266, %p267
      %p269 = scmp.ne.s32.totalorder %s257, %s258
      %p270 = scmp.eq.s32.totalorder %s33, 1
      %p271 = por %p269, %p270
      %p273 = scmp.ne.s32.totalorder %s258, %s272
      %p274 = scmp.eq.s32.totalorder %s33, 0
      %p275 = por %p273, %p274
      %s277 = sadd.s32 %s276, 1
      %p280 = scmp.eq.s32.totalorder %s27, 1
      %p281 = scmp.ne.s32.totalorder %s276, %s278
      %p282 = scmp.eq.s32.totalorder %s27, 0
      %p283 = por %p281, %p282
      %p284 = scmp.ne.s32.totalorder %s276, %s278
      %p285 = scmp.eq.s32.totalorder %s32, 1
      %p286 = por %p284, %p285
      %p287 = scmp.ne.s32.totalorder %s278, %s279
      %p288 = scmp.eq.s32.totalorder %s32, 0
      %p289 = por %p287, %p288
      %p290 = scmp.ne.s32.totalorder %s278, %s279
      %p291 = scmp.eq.s32.totalorder %s33, 1
      %p292 = por %p290, %p291
      %p294 = scmp.ne.s32.totalorder %s279, %s293
      %p295 = scmp.eq.s32.totalorder %s33, 0
      %p296 = por %p294, %p295
      %s298 = sadd.s32 %s297, 1
      %p301 = scmp.eq.s32.totalorder %s27, 1
      %p302 = scmp.ne.s32.totalorder %s297, %s299
      %p303 = scmp.eq.s32.totalorder %s27, 0
      %p304 = por %p302, %p303
      %p305 = scmp.ne.s32.totalorder %s297, %s299
      %p306 = scmp.eq.s32.totalorder %s32, 1
      %p307 = por %p305, %p306
      %p308 = scmp.ne.s32.totalorder %s299, %s300
      %p309 = scmp.eq.s32.totalorder %s32, 0
      %p310 = por %p308, %p309
      %p311 = scmp.ne.s32.totalorder %s299, %s300
      %p312 = scmp.eq.s32.totalorder %s33, 1
      %p313 = por %p311, %p312
      %p315 = scmp.ne.s32.totalorder %s300, %s314
      %p316 = scmp.eq.s32.totalorder %s33, 0
      %p317 = por %p315, %p316
      %s319 = sadd.s32 %s318, 1
      %p322 = scmp.eq.s32.totalorder %s27, 1
      %p323 = scmp.ne.s32.totalorder %s318, %s320
      %p324 = scmp.eq.s32.totalorder %s27, 0
      %p325 = por %p323, %p324
      %p326 = scmp.ne.s32.totalorder %s318, %s320
      %p327 = scmp.eq.s32.totalorder %s32, 1
      %p328 = por %p326, %p327
      %p329 = scmp.ne.s32.totalorder %s320, %s321
      %p330 = scmp.eq.s32.totalorder %s32, 0
      %p331 = por %p329, %p330
      %p332 = scmp.ne.s32.totalorder %s320, %s321
      %p333 = scmp.eq.s32.totalorder %s33, 1
      %p334 = por %p332, %p333
      %p336 = scmp.ne.s32.totalorder %s321, %s335
      %p337 = scmp.eq.s32.totalorder %s33, 0
      %p338 = por %p336, %p337
      %s340 = sadd.s32 %s339, 1
      %p343 = scmp.eq.s32.totalorder %s27, 1
      %p344 = scmp.ne.s32.totalorder %s339, %s341
      %p345 = scmp.eq.s32.totalorder %s27, 0
      %p346 = por %p344, %p345
      %p347 = scmp.ne.s32.totalorder %s339, %s341
      %p348 = scmp.eq.s32.totalorder %s32, 1
      %p349 = por %p347, %p348
      %p350 = scmp.ne.s32.totalorder %s341, %s342
      %p351 = scmp.eq.s32.totalorder %s32, 0
      %p352 = por %p350, %p351
      %p353 = scmp.ne.s32.totalorder %s341, %s342
      %p354 = scmp.eq.s32.totalorder %s33, 1
      %p355 = por %p353, %p354
      %p357 = scmp.ne.s32.totalorder %s342, %s356
      %p358 = scmp.eq.s32.totalorder %s33, 0
      %p359 = por %p357, %p358
      %s361 = sadd.s32 %s360, 1
      %p364 = scmp.eq.s32.totalorder %s27, 1
      %p365 = scmp.ne.s32.totalorder %s360, %s362
      %p366 = scmp.eq.s32.totalorder %s27, 0
      %p367 = por %p365, %p366
      %p368 = scmp.ne.s32.totalorder %s360, %s362
      %p369 = scmp.eq.s32.totalorder %s32, 1
      %p370 = por %p368, %p369
      %p371 = scmp.ne.s32.totalorder %s362, %s363
      %p372 = scmp.eq.s32.totalorder %s32, 0
      %p373 = por %p371, %p372
      %p374 = scmp.ne.s32.totalorder %s362, %s363
      %p375 = scmp.eq.s32.totalorder %s33, 1
      %p376 = por %p374, %p375
      %p378 = scmp.ne.s32.totalorder %s363, %s377
      %p379 = scmp.eq.s32.totalorder %s33, 0
      %p380 = por %p378, %p379
      %s382 = sadd.s32 %s381, 1
      %p385 = scmp.eq.s32.totalorder %s27, 1
      %p386 = scmp.ne.s32.totalorder %s381, %s383
      %p387 = scmp.eq.s32.totalorder %s27, 0
      %p388 = por %p386, %p387
      %p389 = scmp.ne.s32.totalorder %s381, %s383
      %p390 = scmp.eq.s32.totalorder %s32, 1
      %p391 = por %p389, %p390
      %p392 = scmp.ne.s32.totalorder %s383, %s384
      %p393 = scmp.eq.s32.totalorder %s32, 0
      %p394 = por %p392, %p393
      %p395 = scmp.ne.s32.totalorder %s383, %s384
      %p396 = scmp.eq.s32.totalorder %s33, 1
      %p397 = por %p395, %p396
      %p399 = scmp.ne.s32.totalorder %s384, %s398
      %p400 = scmp.eq.s32.totalorder %s33, 0
      %p401 = por %p399, %p400
      %s403 = sadd.s32 %s402, 1
      %p406 = scmp.eq.s32.totalorder %s27, 1
      %p407 = scmp.ne.s32.totalorder %s402, %s404
      %p408 = scmp.eq.s32.totalorder %s27, 0
      %p409 = por %p407, %p408
      %p410 = scmp.ne.s32.totalorder %s402, %s404
      %p411 = scmp.eq.s32.totalorder %s32, 1
      %p412 = por %p410, %p411
      %p413 = scmp.ne.s32.totalorder %s404, %s405
      %p414 = scmp.eq.s32.totalorder %s32, 0
      %p415 = por %p413, %p414
      %p416 = scmp.ne.s32.totalorder %s404, %s405
      %p417 = scmp.eq.s32.totalorder %s33, 1
      %p418 = por %p416, %p417
      %p420 = scmp.ne.s32.totalorder %s405, %s419
      %p421 = scmp.eq.s32.totalorder %s33, 0
      %p422 = por %p420, %p421
      %s423 = ssub.s32 %s27, %s34
      %p424 = scmp.eq.s32.totalorder %s423, 0
      %s426 = sadd.s32 %s425, 1
      %s427 = scalar_select %p424, %s425, %s426
      %p430 = pneg %p424
      %p431 = scmp.eq.s32.totalorder %s27, 1
      %p432 = por %p430, %p431
      %p433 = scmp.ne.s32.totalorder %s425, %s428
      %p434 = scmp.eq.s32.totalorder %s27, 0
      %p435 = por %p433, %p434
      %p436 = scmp.ne.s32.totalorder %s425, %s428
      %p437 = scmp.eq.s32.totalorder %s32, 1
      %p438 = por %p436, %p437
      %p439 = scmp.ne.s32.totalorder %s428, %s429
      %p440 = scmp.eq.s32.totalorder %s32, 0
      %p441 = por %p439, %p440
      %p442 = scmp.ne.s32.totalorder %s428, %s429
      %p443 = scmp.eq.s32.totalorder %s33, 1
      %p444 = por %p442, %p443
      %p446 = scmp.ne.s32.totalorder %s429, %s445
      %p447 = scmp.eq.s32.totalorder %s33, 0
      %p448 = por %p446, %p447
      %p449 = scmp.le.s32.totalorder 1, %s27
      %p450 = scmp.lt.s32.totalorder %s27, 3
      %p451 = pnand %p449, %p450
      %p452 = pneg %p451
      // Predicated region
      $region9: #{tpu_custom_call.1} parent=5 // pred_check
        _
      $region10: #{tpu_custom_call.1} parent=5 // pred_check_branch
        %454 = sbr.rel (%p451) target = $region12
      $region11: #{tpu_custom_call.1} parent=5 // pred_region
        %s455 = ssub.s32 %s27, 1
        // Predicated region
        $region13: #{tpu_custom_call.1} parent=11 // pred_check
          %p456 = pneg %p100
        $region14: #{tpu_custom_call.1} parent=11 // pred_check_branch
          %458 = sbr.rel (%p456) target = $region16
        $region15: #{tpu_custom_call.1} parent=11 // pred_region
          _
        $region16: #{tpu_custom_call.1} parent=11 // pred_fallthru
          _
        // Predicated region
        $region17: #{tpu_custom_call.1} parent=11 // pred_check
          %p459 = pneg %p121
        $region18: #{tpu_custom_call.1} parent=11 // pred_check_branch
          %461 = sbr.rel (%p459) target = $region20
        $region19: #{tpu_custom_call.1} parent=11 // pred_region
          _
        $region20: #{tpu_custom_call.1} parent=11 // pred_fallthru
          _
        // Predicated region
        $region21: #{tpu_custom_call.1} parent=11 // pred_check
          %p462 = pneg %p142
        $region22: #{tpu_custom_call.1} parent=11 // pred_check_branch
          %464 = sbr.rel (%p462) target = $region24
        $region23: #{tpu_custom_call.1} parent=11 // pred_region
          _
        $region24: #{tpu_custom_call.1} parent=11 // pred_fallthru
          _
        // Predicated region
        $region25: #{tpu_custom_call.1} parent=11 // pred_check
          %p465 = pneg %p163
        $region26: #{tpu_custom_call.1} parent=11 // pred_check_branch
          %467 = sbr.rel (%p465) target = $region28
        $region27: #{tpu_custom_call.1} parent=11 // pred_region
          _
        $region28: #{tpu_custom_call.1} parent=11 // pred_fallthru
          _
        // Predicated region
        $region29: #{tpu_custom_call.1} parent=11 // pred_check
          %p468 = pneg %p184
        $region30: #{tpu_custom_call.1} parent=11 // pred_check_branch
          %470 = sbr.rel (%p468) target = $region32
        $region31: #{tpu_custom_call.1} parent=11 // pred_region
          _
        $region32: #{tpu_custom_call.1} parent=11 // pred_fallthru
          _
        // Predicated region
        $region33: #{tpu_custom_call.1} parent=11 // pred_check
          %p471 = pneg %p205
        $region34: #{tpu_custom_call.1} parent=11 // pred_check_branch
          %473 = sbr.rel (%p471) target = $region36
        $region35: #{tpu_custom_call.1} parent=11 // pred_region
          _
        $region36: #{tpu_custom_call.1} parent=11 // pred_fallthru
          _
        // Predicated region
        $region37: #{tpu_custom_call.1} parent=11 // pred_check
          %p474 = pneg %p226
        $region38: #{tpu_custom_call.1} parent=11 // pred_check_branch
          %476 = sbr.rel (%p474) target = $region40
        $region39: #{tpu_custom_call.1} parent=11 // pred_region
          _
        $region40: #{tpu_custom_call.1} parent=11 // pred_fallthru
          _
        // Predicated region
        $region41: #{tpu_custom_call.1} parent=11 // pred_check
          %p477 = pneg %p247
        $region42: #{tpu_custom_call.1} parent=11 // pred_check_branch
          %479 = sbr.rel (%p477) target = $region44
        $region43: #{tpu_custom_call.1} parent=11 // pred_region
          _
        $region44: #{tpu_custom_call.1} parent=11 // pred_fallthru
          _
        // Predicated region
        $region45: #{tpu_custom_call.1} parent=11 // pred_check
          %p480 = pneg %p268
        $region46: #{tpu_custom_call.1} parent=11 // pred_check_branch
          %482 = sbr.rel (%p480) target = $region48
        $region47: #{tpu_custom_call.1} parent=11 // pred_region
          _
        $region48: #{tpu_custom_call.1} parent=11 // pred_fallthru
          _
        // Predicated region
        $region49: #{tpu_custom_call.1} parent=11 // pred_check
          %p483 = pneg %p289
        $region50: #{tpu_custom_call.1} parent=11 // pred_check_branch
          %485 = sbr.rel (%p483) target = $region52
        $region51: #{tpu_custom_call.1} parent=11 // pred_region
          _
        $region52: #{tpu_custom_call.1} parent=11 // pred_fallthru
          _
        // Predicated region
        $region53: #{tpu_custom_call.1} parent=11 // pred_check
          %p486 = pneg %p310
        $region54: #{tpu_custom_call.1} parent=11 // pred_check_branch
          %488 = sbr.rel (%p486) target = $region56
        $region55: #{tpu_custom_call.1} parent=11 // pred_region
          _
        $region56: #{tpu_custom_call.1} parent=11 // pred_fallthru
          _
        // Predicated region
        $region57: #{tpu_custom_call.1} parent=11 // pred_check
          %p489 = pneg %p331
        $region58: #{tpu_custom_call.1} parent=11 // pred_check_branch
          %491 = sbr.rel (%p489) target = $region60
        $region59: #{tpu_custom_call.1} parent=11 // pred_region
          _
        $region60: #{tpu_custom_call.1} parent=11 // pred_fallthru
          _
        // Predicated region
        $region61: #{tpu_custom_call.1} parent=11 // pred_check
          %p492 = pneg %p352
        $region62: #{tpu_custom_call.1} parent=11 // pred_check_branch
          %494 = sbr.rel (%p492) target = $region64
        $region63: #{tpu_custom_call.1} parent=11 // pred_region
          _
        $region64: #{tpu_custom_call.1} parent=11 // pred_fallthru
          _
        // Predicated region
        $region65: #{tpu_custom_call.1} parent=11 // pred_check
          %p495 = pneg %p373
        $region66: #{tpu_custom_call.1} parent=11 // pred_check_branch
          %497 = sbr.rel (%p495) target = $region68
        $region67: #{tpu_custom_call.1} parent=11 // pred_region
          _
        $region68: #{tpu_custom_call.1} parent=11 // pred_fallthru
          _
        // Predicated region
        $region69: #{tpu_custom_call.1} parent=11 // pred_check
          %p498 = pneg %p394
        $region70: #{tpu_custom_call.1} parent=11 // pred_check_branch
          %500 = sbr.rel (%p498) target = $region72
        $region71: #{tpu_custom_call.1} parent=11 // pred_region
          _
        $region72: #{tpu_custom_call.1} parent=11 // pred_fallthru
          _
        // Predicated region
        $region73: #{tpu_custom_call.1} parent=11 // pred_check
          %p501 = pneg %p415
        $region74: #{tpu_custom_call.1} parent=11 // pred_check_branch
          %503 = sbr.rel (%p501) target = $region76
        $region75: #{tpu_custom_call.1} parent=11 // pred_region
          _
        $region76: #{tpu_custom_call.1} parent=11 // pred_fallthru
          _
      $region12: #{tpu_custom_call.1} parent=5 // pred_fallthru
        _
      %p504 = scmp.lt.s32.totalorder %s27, 2
      // Predicated region
      $region77: #{tpu_custom_call.1} parent=5 // pred_check
        %p505 = pneg %p504
      $region78: #{tpu_custom_call.1} parent=5 // pred_check_branch
        %507 = sbr.rel (%p505) target = $region80
      $region79: #{tpu_custom_call.1} parent=5 // pred_region
        // Predicated region
        $region81: #{tpu_custom_call.1} parent=79 // pred_check
          %p508 = pneg %p47
        $region82: #{tpu_custom_call.1} parent=79 // pred_check_branch
          %510 = sbr.rel (%p508) target = $region84
        $region83: #{tpu_custom_call.1} parent=79 // pred_region
          %p511 = scmp.lt.s32.totalorder %s27, 1
          %s512 = scalar_select %p511, %s27, 1
          %s513 = smul.addr %s512, 8
          %s514 = scalar_lea.vmem %s0, %s513
        $region84: #{tpu_custom_call.1} parent=79 // pred_fallthru
          _
        // Predicated region
        $region85: #{tpu_custom_call.1} parent=79 // pred_check
          %p515 = pneg %p73
        $region86: #{tpu_custom_call.1} parent=79 // pred_check_branch
          %517 = sbr.rel (%p515) target = $region88
        $region87: #{tpu_custom_call.1} parent=79 // pred_region
          %p518 = scmp.lt.s32.totalorder %s27, 1
          %s519 = scalar_select %p518, %s27, 1
          %s520 = scalar_lea.vmem %s1, %s519
        $region88: #{tpu_custom_call.1} parent=79 // pred_fallthru
          _
      $region80: #{tpu_custom_call.1} parent=5 // pred_fallthru
        _
      %p521 = scmp.le.s32.totalorder 1, %s27
      %p522 = scmp.lt.s32.totalorder %s27, 3
      %p523 = pnand %p521, %p522
      %p524 = pneg %p523
      // Predicated region
      $region89: #{tpu_custom_call.1} parent=5 // pred_check
        _
      $region90: #{tpu_custom_call.1} parent=5 // pred_check_branch
        %526 = sbr.rel (%p523) target = $region92
      $region91: #{tpu_custom_call.1} parent=5 // pred_region
        %s527 = ssub.s32 %s27, 1
        %p528 = scmp.lt.s32.totalorder %s32, 1
        %s529 = scalar_select %p528, %s32, 1
        %s530 = smul.addr %s529, 8
        %s531 = scalar_lea.vmem %s0, %s530
        %p532 = pneg %p53
        %p533 = pneg %p50
        %p534 = scmp.lt.s32.totalorder %s32, 1
        %s535 = scalar_select %p534, %s32, 1
        %s536 = scalar_lea.vmem %s1, %s535
        %p537 = pneg %p79
        %p538 = pneg %p76
        %p539 = pneg %p100
        %p540 = pneg %p97
        %p541 = pneg %p121
        %p542 = pneg %p118
        %p543 = pneg %p142
        %p544 = pneg %p139
        %p545 = pneg %p163
        %p546 = pneg %p160
        %p547 = pneg %p184
        %p548 = pneg %p181
        %p549 = pneg %p205
        %p550 = pneg %p202
        %p551 = pneg %p226
        %p552 = pneg %p223
        %p553 = pneg %p247
        %p554 = pneg %p244
        %p555 = pneg %p268
        %p556 = pneg %p265
        %p557 = pneg %p289
        %p558 = pneg %p286
        %p559 = pneg %p310
        %p560 = pneg %p307
        %p561 = pneg %p331
        %p562 = pneg %p328
        %p563 = pneg %p352
        %p564 = pneg %p349
        %p565 = pneg %p373
        %p566 = pneg %p370
        %p567 = pneg %p394
        %p568 = pneg %p391
        %p569 = pneg %p415
        %p570 = pneg %p412
        %p571 = pneg %p441
        %p572 = pneg %p438
        %s573 = sand.u32 %s428, 1
        %s574 = scalar_lea.sflag [#allocation3], %s573
        %s575 = sand.u32 %s428, 1
        %s576 = smul.addr %s575, 8
        %s577 = scalar_lea.vmem [#allocation2], %s576
        %p578 = scmp.lt.s32.totalorder %s32, 1
        %s579 = scalar_select %p578, %s32, 1
        %s580 = smul.addr %s579, 8
        %s581 = scalar_lea.vmem %s0, %s580
        %p582 = scmp.lt.s32.totalorder %s32, 1
        %s583 = scalar_select %p582, %s32, 1
        %s584 = scalar_lea.vmem %s1, %s583
        %v586 = vld [vmem:[%s581] sm:$0xff]
        %v587 = vld [vmem:[%s584] sm:$0x1]
        %vm588 = vcmp.eq.f32.partialorder %v587, 0.0
        %v589 = vsel %vm588, -1e+09, 0.0
        %v590 = vld [vmem:[%s10] sm:$0x1]
        %v591 = vld [vmem:[%s11] sm:$0x1]
        %vm592 = vcmask 261120
        %v593 = vsel %vm592, %v586, 0.0
        %594 = vadd.xlane.f32.xlu0 %v593
        %v595 = vpop.xlane.xlu0 %594
        %v596 = vrcp.pop 32.0
        %v597 = vmul.f32 32.0, %v596
        %v598 = vsub.f32 1.0, %v597
        %v599 = vmul.f32 %v596, %v598
        %v600 = vadd.f32 %v596, %v599
        %vm601 = vweird.f32 %v596
        %v602 = vsel %vm601, %v596, %v600
        %v603 = vmul.f32 %v595, %v602
        %v604 = vsub.f32 %v586, %v603
        %v605 = vmul.f32 %v604, %v604
        %v606 = vsel %vm592, %v605, 0.0
        %607 = vadd.xlane.f32.xlu0 %v606
        %v608 = vpop.xlane.xlu0 %607
        %v609 = vrcp.pop 31.0
        %v610 = vmul.f32 31.0, %v609
        %v611 = vsub.f32 1.0, %v610
        %v612 = vmul.f32 %v609, %v611
        %v613 = vadd.f32 %v609, %v612
        %vm614 = vweird.f32 %v609
        %v615 = vsel %vm614, %v609, %v613
        %v616 = vmul.f32 %v608, %v615
        %v618 = vperm.slane %v590, 0
        %v620 = vmul.f32 %v618, %v604
        %v621 = vrsqrt.pop %v616
        %v622 = vmul.f32 %v621, %v616
        %v623 = vmul.f32 %v622, %v621
        %v624 = vmul.f32 0.5, %v623
        %v625 = vsub.f32 1.5, %v624
        %v626 = vmul.f32 %v621, %v625
        %v627 = vmul.f32 %v616, %v626
        %vm628 = vcmp.eq.f32.partialorder %v616, inf
        %v629 = vsel %vm628, %v616, %v627
        %vm630 = vcmp.eq.f32.partialorder %v616, 0.0
        %v631 = vand.u32 %v616, 2147483648
        %v632 = vsel %vm630, %v631, %v629
        %v633 = vadd.f32 %v632, 1e-06
        %v634 = vrcp.pop %v633
        %v635 = vmul.f32 %v633, %v634
        %v636 = vsub.f32 1.0, %v635
        %v637 = vmul.f32 %v634, %v636
        %v638 = vadd.f32 %v634, %v637
        %vm639 = vweird.f32 %v633
        %vm640 = vweird.f32 %v634
        %vm641 = vmor %vm639, %vm640
        %v642 = vsel %vm641, %v634, %v638
        %v643 = vand.u32 2147483647, %v633
        %vm644 = vcmp.eq.f32.partialorder %v643, 8.507059e+37
        %v645 = vand.u32 %v633, 2147483648
        %v646 = vor.u32 1.1754944e-38, %v645
        %v647 = vsel %vm644, %v646, %v642
        %v648 = vmul.f32 %v620, %v647
        %v650 = vperm.slane %v591, 0
        %v652 = vadd.f32 %v648, %v650
        %v653 = vpack.c.bf16 %v652, %v652
        %v654 = vld [vmem:[%s2] sm:$0xf]
        %v655 = vld [vmem:[%s2 + $0x4] sm:$0xf]
        %v656 = vld [vmem:[%s2 + $0x8] sm:$0xf]
        %v657 = vld [vmem:[%s2 + $0xc] sm:$0xf]
        %v658 = vld [vmem:[%s2 + $0x10] sm:$0xf]
        %v659 = vld [vmem:[%s2 + $0x14] sm:$0xf]
        %v660 = vld [vmem:[%s2 + $0x18] sm:$0xf]
        %v661 = vld [vmem:[%s2 + $0x1c] sm:$0xf]
        %v662 = vld [vmem:[%s2 + $0x20] sm:$0xf]
        %v663 = vld [vmem:[%s2 + $0x24] sm:$0xf]
        %v664 = vld [vmem:[%s2 + $0x28] sm:$0xf]
        %v665 = vld [vmem:[%s2 + $0x2c] sm:$0xf]
        %v666 = vld [vmem:[%s2 + $0x30] sm:$0xf]
        %v667 = vld [vmem:[%s2 + $0x34] sm:$0xf]
        %v668 = vld [vmem:[%s2 + $0x38] sm:$0xf]
        %v669 = vld [vmem:[%s2 + $0x3c] sm:$0xf]
        %v670 = vld [vmem:[%s3] sm:$0x1]
        %v671 = vld [vmem:[%s3 + $0x1] sm:$0x1]
        %v672 = vld [vmem:[%s3 + $0x2] sm:$0x1]
        %v673 = vld [vmem:[%s3 + $0x3] sm:$0x1]
        %v678 = vperm.slane %v670, 0
        %v679 = vperm.slane %v671, 0
        %v680 = vperm.slane %v672, 0
        %v681 = vperm.slane %v673, 0
        %v690 = vunpack.c.l.b16 %v654
        %v691 = vunpack.c.l.b16 %v655
        %v692 = vunpack.c.l.b16 %v656
        %v693 = vunpack.c.l.b16 %v657
        %v694 = vpack.c.b16 %v691, %v690
        %v695 = vpack.c.b16 %v693, %v692
        %v699 = vsel %vm592, %v653, 0
        %701 = vmatpush.bf16.msra.mxu0 0
        %702 = vmatpush.bf16.msra.mxu0 0
        %703 = vmatpush.bf16.msra.mxu0 0
        %704 = vmatpush.bf16.msra.mxu0 0
        %705 = vmatpush.bf16.msra.mxu0 0
        %706 = vmatpush.bf16.msra.mxu0 0
        %707 = vmatpush.bf16.msra.mxu0 %v695
        %708 = vmatpush.bf16.msra.mxu0 %v694
        %709 = vmatmul.bf16.gmra.mxu0 %v699
        %v710 = vpop.f32.mrf.mxu0
        %v711 = vadd.f32 %v678, %v710
        %v712 = vpop.f32.mrf.mxu0
        %713 = vdwg.mxu0
        %v718 = vunpack.c.l.b16 %v658
        %v719 = vunpack.c.l.b16 %v659
        %v720 = vunpack.c.l.b16 %v660
        %v721 = vunpack.c.l.b16 %v661
        %v722 = vpack.c.b16 %v719, %v718
        %v723 = vpack.c.b16 %v721, %v720
        %726 = vmatpush.bf16.msra.mxu0 0
        %727 = vmatpush.bf16.msra.mxu0 0
        %728 = vmatpush.bf16.msra.mxu0 0
        %729 = vmatpush.bf16.msra.mxu0 0
        %730 = vmatpush.bf16.msra.mxu0 0
        %731 = vmatpush.bf16.msra.mxu0 0
        %732 = vmatpush.bf16.msra.mxu0 %v723
        %733 = vmatpush.bf16.msra.mxu0 %v722
        %734 = vmatmul.bf16.gmra.mxu0 %v699
        %v735 = vpop.f32.mrf.mxu0
        %v736 = vadd.f32 %v679, %v735
        %v737 = vpop.f32.mrf.mxu0
        %738 = vdwg.mxu0
        %v743 = vunpack.c.l.b16 %v662
        %v744 = vunpack.c.l.b16 %v663
        %v745 = vunpack.c.l.b16 %v664
        %v746 = vunpack.c.l.b16 %v665
        %v747 = vpack.c.b16 %v744, %v743
        %v748 = vpack.c.b16 %v746, %v745
        %751 = vmatpush.bf16.msra.mxu0 0
        %752 = vmatpush.bf16.msra.mxu0 0
        %753 = vmatpush.bf16.msra.mxu0 0
        %754 = vmatpush.bf16.msra.mxu0 0
        %755 = vmatpush.bf16.msra.mxu0 0
        %756 = vmatpush.bf16.msra.mxu0 0
        %757 = vmatpush.bf16.msra.mxu0 %v748
        %758 = vmatpush.bf16.msra.mxu0 %v747
        %759 = vmatmul.bf16.gmra.mxu0 %v699
        %v760 = vpop.f32.mrf.mxu0
        %v761 = vadd.f32 %v680, %v760
        %v762 = vpop.f32.mrf.mxu0
        %763 = vdwg.mxu0
        %v768 = vunpack.c.l.b16 %v666
        %v769 = vunpack.c.l.b16 %v667
        %v770 = vunpack.c.l.b16 %v668
        %v771 = vunpack.c.l.b16 %v669
        %v772 = vpack.c.b16 %v769, %v768
        %v773 = vpack.c.b16 %v771, %v770
        %776 = vmatpush.bf16.msra.mxu0 0
        %777 = vmatpush.bf16.msra.mxu0 0
        %778 = vmatpush.bf16.msra.mxu0 0
        %779 = vmatpush.bf16.msra.mxu0 0
        %780 = vmatpush.bf16.msra.mxu0 0
        %781 = vmatpush.bf16.msra.mxu0 0
        %782 = vmatpush.bf16.msra.mxu0 %v773
        %783 = vmatpush.bf16.msra.mxu0 %v772
        %784 = vmatmul.bf16.gmra.mxu0 %v699
        %v785 = vpop.f32.mrf.mxu0
        %v786 = vadd.f32 %v681, %v785
        %v787 = vpop.f32.mrf.mxu0
        %788 = vdwg.mxu0
        %v789 = vpack.c.bf16 %v711, %v711
        %v790 = vpack.c.bf16 %v736, %v736
        %v791 = vpack.c.bf16 %v761, %v761
        %v792 = vpack.c.bf16 %v786, %v786
        %v793 = vld [vmem:[%s4] sm:$0xf]
        %v794 = vld [vmem:[%s4 + $0x4] sm:$0xf]
        %v795 = vld [vmem:[%s4 + $0x8] sm:$0xf]
        %v796 = vld [vmem:[%s4 + $0xc] sm:$0xf]
        %v797 = vld [vmem:[%s4 + $0x10] sm:$0xf]
        %v798 = vld [vmem:[%s4 + $0x14] sm:$0xf]
        %v799 = vld [vmem:[%s4 + $0x18] sm:$0xf]
        %v800 = vld [vmem:[%s4 + $0x1c] sm:$0xf]
        %v801 = vld [vmem:[%s4 + $0x20] sm:$0xf]
        %v802 = vld [vmem:[%s4 + $0x24] sm:$0xf]
        %v803 = vld [vmem:[%s4 + $0x28] sm:$0xf]
        %v804 = vld [vmem:[%s4 + $0x2c] sm:$0xf]
        %v805 = vld [vmem:[%s4 + $0x30] sm:$0xf]
        %v806 = vld [vmem:[%s4 + $0x34] sm:$0xf]
        %v807 = vld [vmem:[%s4 + $0x38] sm:$0xf]
        %v808 = vld [vmem:[%s4 + $0x3c] sm:$0xf]
        %v809 = vld [vmem:[%s5] sm:$0x1]
        %v810 = vld [vmem:[%s5 + $0x1] sm:$0x1]
        %v811 = vld [vmem:[%s5 + $0x2] sm:$0x1]
        %v812 = vld [vmem:[%s5 + $0x3] sm:$0x1]
        %v817 = vperm.slane %v809, 0
        %v818 = vperm.slane %v810, 0
        %v819 = vperm.slane %v811, 0
        %v820 = vperm.slane %v812, 0
        %v829 = vunpack.c.l.b16 %v793
        %v830 = vunpack.c.l.b16 %v794
        %v831 = vunpack.c.l.b16 %v795
        %v832 = vunpack.c.l.b16 %v796
        %v833 = vpack.c.b16 %v830, %v829
        %v834 = vpack.c.b16 %v832, %v831
        %837 = vmatpush.bf16.msra.mxu0 0
        %838 = vmatpush.bf16.msra.mxu0 0
        %839 = vmatpush.bf16.msra.mxu0 0
        %840 = vmatpush.bf16.msra.mxu0 0
        %841 = vmatpush.bf16.msra.mxu0 0
        %842 = vmatpush.bf16.msra.mxu0 0
        %843 = vmatpush.bf16.msra.mxu0 %v834
        %844 = vmatpush.bf16.msra.mxu0 %v833
        %845 = vmatmul.bf16.gmra.mxu0 %v699
        %v846 = vpop.f32.mrf.mxu0
        %v847 = vadd.f32 %v817, %v846
        %v848 = vpop.f32.mrf.mxu0
        %849 = vdwg.mxu0
        %v854 = vunpack.c.l.b16 %v797
        %v855 = vunpack.c.l.b16 %v798
        %v856 = vunpack.c.l.b16 %v799
        %v857 = vunpack.c.l.b16 %v800
        %v858 = vpack.c.b16 %v855, %v854
        %v859 = vpack.c.b16 %v857, %v856
        %862 = vmatpush.bf16.msra.mxu0 0
        %863 = vmatpush.bf16.msra.mxu0 0
        %864 = vmatpush.bf16.msra.mxu0 0
        %865 = vmatpush.bf16.msra.mxu0 0
        %866 = vmatpush.bf16.msra.mxu0 0
        %867 = vmatpush.bf16.msra.mxu0 0
        %868 = vmatpush.bf16.msra.mxu0 %v859
        %869 = vmatpush.bf16.msra.mxu0 %v858
        %870 = vmatmul.bf16.gmra.mxu0 %v699
        %v871 = vpop.f32.mrf.mxu0
        %v872 = vadd.f32 %v818, %v871
        %v873 = vpop.f32.mrf.mxu0
        %874 = vdwg.mxu0
        %v879 = vunpack.c.l.b16 %v801
        %v880 = vunpack.c.l.b16 %v802
        %v881 = vunpack.c.l.b16 %v803
        %v882 = vunpack.c.l.b16 %v804
        %v883 = vpack.c.b16 %v880, %v879
        %v884 = vpack.c.b16 %v882, %v881
        %887 = vmatpush.bf16.msra.mxu0 0
        %888 = vmatpush.bf16.msra.mxu0 0
        %889 = vmatpush.bf16.msra.mxu0 0
        %890 = vmatpush.bf16.msra.mxu0 0
        %891 = vmatpush.bf16.msra.mxu0 0
        %892 = vmatpush.bf16.msra.mxu0 0
        %893 = vmatpush.bf16.msra.mxu0 %v884
        %894 = vmatpush.bf16.msra.mxu0 %v883
        %895 = vmatmul.bf16.gmra.mxu0 %v699
        %v896 = vpop.f32.mrf.mxu0
        %v897 = vadd.f32 %v819, %v896
        %v898 = vpop.f32.mrf.mxu0
        %899 = vdwg.mxu0
        %v904 = vunpack.c.l.b16 %v805
        %v905 = vunpack.c.l.b16 %v806
        %v906 = vunpack.c.l.b16 %v807
        %v907 = vunpack.c.l.b16 %v808
        %v908 = vpack.c.b16 %v905, %v904
        %v909 = vpack.c.b16 %v907, %v906
        %912 = vmatpush.bf16.msra.mxu0 0
        %913 = vmatpush.bf16.msra.mxu0 0
        %914 = vmatpush.bf16.msra.mxu0 0
        %915 = vmatpush.bf16.msra.mxu0 0
        %916 = vmatpush.bf16.msra.mxu0 0
        %917 = vmatpush.bf16.msra.mxu0 0
        %918 = vmatpush.bf16.msra.mxu0 %v909
        %919 = vmatpush.bf16.msra.mxu0 %v908
        %920 = vmatmul.bf16.gmra.mxu0 %v699
        %v921 = vpop.f32.mrf.mxu0
        %v922 = vadd.f32 %v820, %v921
        %v923 = vpop.f32.mrf.mxu0
        %924 = vdwg.mxu0
        %v925 = vpack.c.bf16 %v847, %v847
        %v926 = vpack.c.bf16 %v872, %v872
        %v927 = vpack.c.bf16 %v897, %v897
        %v928 = vpack.c.bf16 %v922, %v922
        %v929 = vld [vmem:[%s6] sm:$0xf]
        %v930 = vld [vmem:[%s6 + $0x4] sm:$0xf]
        %v931 = vld [vmem:[%s6 + $0x8] sm:$0xf]
        %v932 = vld [vmem:[%s6 + $0xc] sm:$0xf]
        %v933 = vld [vmem:[%s6 + $0x10] sm:$0xf]
        %v934 = vld [vmem:[%s6 + $0x14] sm:$0xf]
        %v935 = vld [vmem:[%s6 + $0x18] sm:$0xf]
        %v936 = vld [vmem:[%s6 + $0x1c] sm:$0xf]
        %v937 = vld [vmem:[%s6 + $0x20] sm:$0xf]
        %v938 = vld [vmem:[%s6 + $0x24] sm:$0xf]
        %v939 = vld [vmem:[%s6 + $0x28] sm:$0xf]
        %v940 = vld [vmem:[%s6 + $0x2c] sm:$0xf]
        %v941 = vld [vmem:[%s6 + $0x30] sm:$0xf]
        %v942 = vld [vmem:[%s6 + $0x34] sm:$0xf]
        %v943 = vld [vmem:[%s6 + $0x38] sm:$0xf]
        %v944 = vld [vmem:[%s6 + $0x3c] sm:$0xf]
        %v945 = vld [vmem:[%s7] sm:$0x1]
        %v946 = vld [vmem:[%s7 + $0x1] sm:$0x1]
        %v947 = vld [vmem:[%s7 + $0x2] sm:$0x1]
        %v948 = vld [vmem:[%s7 + $0x3] sm:$0x1]
        %v953 = vperm.slane %v945, 0
        %v954 = vperm.slane %v946, 0
        %v955 = vperm.slane %v947, 0
        %v956 = vperm.slane %v948, 0
        %v965 = vunpack.c.l.b16 %v929
        %v966 = vunpack.c.l.b16 %v930
        %v967 = vunpack.c.l.b16 %v931
        %v968 = vunpack.c.l.b16 %v932
        %v969 = vpack.c.b16 %v966, %v965
        %v970 = vpack.c.b16 %v968, %v967
        %973 = vmatpush.bf16.msra.mxu0 0
        %974 = vmatpush.bf16.msra.mxu0 0
        %975 = vmatpush.bf16.msra.mxu0 0
        %976 = vmatpush.bf16.msra.mxu0 0
        %977 = vmatpush.bf16.msra.mxu0 0
        %978 = vmatpush.bf16.msra.mxu0 0
        %979 = vmatpush.bf16.msra.mxu0 %v970
        %980 = vmatpush.bf16.msra.mxu0 %v969
        %981 = vmatmul.bf16.gmra.mxu0 %v699
        %v982 = vpop.f32.mrf.mxu0
        %v983 = vadd.f32 %v953, %v982
        %v984 = vpop.f32.mrf.mxu0
        %985 = vdwg.mxu0
        %v990 = vunpack.c.l.b16 %v933
        %v991 = vunpack.c.l.b16 %v934
        %v992 = vunpack.c.l.b16 %v935
        %v993 = vunpack.c.l.b16 %v936
        %v994 = vpack.c.b16 %v991, %v990
        %v995 = vpack.c.b16 %v993, %v992
        %998 = vmatpush.bf16.msra.mxu0 0
        %999 = vmatpush.bf16.msra.mxu0 0
        %1000 = vmatpush.bf16.msra.mxu0 0
        %1001 = vmatpush.bf16.msra.mxu0 0
        %1002 = vmatpush.bf16.msra.mxu0 0
        %1003 = vmatpush.bf16.msra.mxu0 0
        %1004 = vmatpush.bf16.msra.mxu0 %v995
        %1005 = vmatpush.bf16.msra.mxu0 %v994
        %1006 = vmatmul.bf16.gmra.mxu0 %v699
        %v1007 = vpop.f32.mrf.mxu0
        %v1008 = vadd.f32 %v954, %v1007
        %v1009 = vpop.f32.mrf.mxu0
        %1010 = vdwg.mxu0
        %v1015 = vunpack.c.l.b16 %v937
        %v1016 = vunpack.c.l.b16 %v938
        %v1017 = vunpack.c.l.b16 %v939
        %v1018 = vunpack.c.l.b16 %v940
        %v1019 = vpack.c.b16 %v1016, %v1015
        %v1020 = vpack.c.b16 %v1018, %v1017
        %1023 = vmatpush.bf16.msra.mxu0 0
        %1024 = vmatpush.bf16.msra.mxu0 0
        %1025 = vmatpush.bf16.msra.mxu0 0
        %1026 = vmatpush.bf16.msra.mxu0 0
        %1027 = vmatpush.bf16.msra.mxu0 0
        %1028 = vmatpush.bf16.msra.mxu0 0
        %1029 = vmatpush.bf16.msra.mxu0 %v1020
        %1030 = vmatpush.bf16.msra.mxu0 %v1019
        %1031 = vmatmul.bf16.gmra.mxu0 %v699
        %v1032 = vpop.f32.mrf.mxu0
        %v1033 = vadd.f32 %v955, %v1032
        %v1034 = vpop.f32.mrf.mxu0
        %1035 = vdwg.mxu0
        %v1040 = vunpack.c.l.b16 %v941
        %v1041 = vunpack.c.l.b16 %v942
        %v1042 = vunpack.c.l.b16 %v943
        %v1043 = vunpack.c.l.b16 %v944
        %v1044 = vpack.c.b16 %v1041, %v1040
        %v1045 = vpack.c.b16 %v1043, %v1042
        %1048 = vmatpush.bf16.msra.mxu0 0
        %1049 = vmatpush.bf16.msra.mxu0 0
        %1050 = vmatpush.bf16.msra.mxu0 0
        %1051 = vmatpush.bf16.msra.mxu0 0
        %1052 = vmatpush.bf16.msra.mxu0 0
        %1053 = vmatpush.bf16.msra.mxu0 0
        %1054 = vmatpush.bf16.msra.mxu0 %v1045
        %1055 = vmatpush.bf16.msra.mxu0 %v1044
        %1056 = vmatmul.bf16.gmra.mxu0 %v699
        %v1057 = vpop.f32.mrf.mxu0
        %v1058 = vadd.f32 %v956, %v1057
        %v1059 = vpop.f32.mrf.mxu0
        %1060 = vdwg.mxu0
        %v1061 = vpack.c.bf16 %v983, %v983
        %v1062 = vpack.c.bf16 %v1008, %v1008
        %v1063 = vpack.c.bf16 %v1033, %v1033
        %v1064 = vpack.c.bf16 %v1058, %v1058
        %vm1065 = vcmask 64512
        %v1067 = vsel %vm1065, %v789, 0
        %v1070 = vsel %vm1065, %v925, 0
        %1072 = vmatpush.bf16.xpose.msra.mxu0 0
        %1073 = vmatpush.bf16.xpose.msra.mxu0 0
        %1074 = vmatpush.bf16.xpose.msra.mxu0 0
        %1075 = vmatpush.bf16.xpose.msra.mxu0 0
        %1076 = vmatpush.bf16.xpose.msra.mxu0 0
        %1077 = vmatpush.bf16.xpose.msra.mxu0 0
        %1078 = vmatpush.bf16.xpose.msra.mxu0 0
        %1079 = vmatpush.bf16.xpose.msra.mxu0 %v1070
        %1080 = vmatmul.bf16.gmra.mxu0 %v1067
        %v1081 = vpop.f32.mrf.mxu0
        %v1082 = vadd.f32 0.0, %v1081
        %v1083 = vpop.f32.mrf.mxu0
        %1084 = vdwg.mxu0
        %v1086 = vsel %vm1065, %v790, 0
        %v1089 = vsel %vm1065, %v926, 0
        %1091 = vmatpush.bf16.xpose.msra.mxu0 0
        %1092 = vmatpush.bf16.xpose.msra.mxu0 0
        %1093 = vmatpush.bf16.xpose.msra.mxu0 0
        %1094 = vmatpush.bf16.xpose.msra.mxu0 0
        %1095 = vmatpush.bf16.xpose.msra.mxu0 0
        %1096 = vmatpush.bf16.xpose.msra.mxu0 0
        %1097 = vmatpush.bf16.xpose.msra.mxu0 0
        %1098 = vmatpush.bf16.xpose.msra.mxu0 %v1089
        %1099 = vmatmul.bf16.gmra.mxu0 %v1086
        %v1100 = vpop.f32.mrf.mxu0
        %v1101 = vadd.f32 0.0, %v1100
        %v1102 = vpop.f32.mrf.mxu0
        %1103 = vdwg.mxu0
        %v1105 = vsel %vm1065, %v791, 0
        %v1108 = vsel %vm1065, %v927, 0
        %1110 = vmatpush.bf16.xpose.msra.mxu0 0
        %1111 = vmatpush.bf16.xpose.msra.mxu0 0
        %1112 = vmatpush.bf16.xpose.msra.mxu0 0
        %1113 = vmatpush.bf16.xpose.msra.mxu0 0
        %1114 = vmatpush.bf16.xpose.msra.mxu0 0
        %1115 = vmatpush.bf16.xpose.msra.mxu0 0
        %1116 = vmatpush.bf16.xpose.msra.mxu0 0
        %1117 = vmatpush.bf16.xpose.msra.mxu0 %v1108
        %1118 = vmatmul.bf16.gmra.mxu0 %v1105
        %v1119 = vpop.f32.mrf.mxu0
        %v1120 = vadd.f32 0.0, %v1119
        %v1121 = vpop.f32.mrf.mxu0
        %1122 = vdwg.mxu0
        %v1124 = vsel %vm1065, %v792, 0
        %v1127 = vsel %vm1065, %v928, 0
        %1129 = vmatpush.bf16.xpose.msra.mxu0 0
        %1130 = vmatpush.bf16.xpose.msra.mxu0 0
        %1131 = vmatpush.bf16.xpose.msra.mxu0 0
        %1132 = vmatpush.bf16.xpose.msra.mxu0 0
        %1133 = vmatpush.bf16.xpose.msra.mxu0 0
        %1134 = vmatpush.bf16.xpose.msra.mxu0 0
        %1135 = vmatpush.bf16.xpose.msra.mxu0 0
        %1136 = vmatpush.bf16.xpose.msra.mxu0 %v1127
        %1137 = vmatmul.bf16.gmra.mxu0 %v1124
        %v1138 = vpop.f32.mrf.mxu0
        %v1139 = vadd.f32 0.0, %v1138
        %v1140 = vpop.f32.mrf.mxu0
        %1141 = vdwg.mxu0
        %v1142 = vmul.f32 %v1082, 0.35355338
        %v1143 = vmul.f32 %v1101, 0.35355338
        %v1144 = vmul.f32 %v1120, 0.35355338
        %v1145 = vmul.f32 %v1139, 0.35355338
        %v1147 = vperm.slane %v589, 0
        %v1149 = vadd.f32 %v1142, %v1147
        %v1150 = vadd.f32 %v1143, %v1147
        %v1151 = vadd.f32 %v1144, %v1147
        %v1152 = vadd.f32 %v1145, %v1147
        %v1153 = vsel %vm1065, %v1149, -inf
        %1154 = vmax.xlane.f32.xlu0 %v1153
        %v1155 = vpop.xlane.xlu0 %1154
        %v1156 = vsel %vm1065, %v1150, -inf
        %1157 = vmax.xlane.f32.xlu0 %v1156
        %v1158 = vpop.xlane.xlu0 %1157
        %v1159 = vsel %vm1065, %v1151, -inf
        %1160 = vmax.xlane.f32.xlu0 %v1159
        %v1161 = vpop.xlane.xlu0 %1160
        %v1162 = vsel %vm1065, %v1152, -inf
        %1163 = vmax.xlane.f32.xlu0 %v1162
        %v1164 = vpop.xlane.xlu0 %1163
        %v1165 = vsub.f32 %v1149, %v1155
        %v1166 = vsub.f32 %v1150, %v1158
        %v1167 = vsub.f32 %v1151, %v1161
        %v1168 = vsub.f32 %v1152, %v1164
        %v1169 = vmul.f32 %v1165, 1.442695
        %v1170 = vpow.pop %v1169
        %v1171 = vmul.f32 %v1166, 1.442695
        %v1172 = vpow.pop %v1171
        %v1173 = vmul.f32 %v1167, 1.442695
        %v1174 = vpow.pop %v1173
        %v1175 = vmul.f32 %v1168, 1.442695
        %v1176 = vpow.pop %v1175
        %v1177 = vsel %vm1065, %v1170, 0.0
        %1178 = vadd.xlane.f32.xlu0 %v1177
        %v1179 = vpop.xlane.xlu0 %1178
        %v1180 = vsel %vm1065, %v1172, 0.0
        %1181 = vadd.xlane.f32.xlu0 %v1180
        %v1182 = vpop.xlane.xlu0 %1181
        %v1183 = vsel %vm1065, %v1174, 0.0
        %1184 = vadd.xlane.f32.xlu0 %v1183
        %v1185 = vpop.xlane.xlu0 %1184
        %v1186 = vsel %vm1065, %v1176, 0.0
        %1187 = vadd.xlane.f32.xlu0 %v1186
        %v1188 = vpop.xlane.xlu0 %1187
        %v1189 = vrcp.pop %v1179
        %v1190 = vrcp.pop %v1182
        %v1191 = vrcp.pop %v1185
        %v1192 = vrcp.pop %v1188
        %v1193 = vmul.f32 %v1170, %v1189
        %v1194 = vmul.f32 %v1172, %v1190
        %v1195 = vmul.f32 %v1174, %v1191
        %v1196 = vmul.f32 %v1176, %v1192
        %v1197 = vpack.c.bf16 %v1193, %v1193
        %v1198 = vpack.c.bf16 %v1194, %v1194
        %v1199 = vpack.c.bf16 %v1195, %v1195
        %v1200 = vpack.c.bf16 %v1196, %v1196
        %v1202 = vsel %vm1065, %v1197, 0
        %vm1204 = vcmask 1043456
        %v1206 = vsel %vm1204, %v1061, 0
        %1208 = vmatpush.bf16.msra.mxu0 0
        %1209 = vmatpush.bf16.msra.mxu0 0
        %1210 = vmatpush.bf16.msra.mxu0 0
        %1211 = vmatpush.bf16.msra.mxu0 0
        %1212 = vmatpush.bf16.msra.mxu0 0
        %1213 = vmatpush.bf16.msra.mxu0 0
        %1214 = vmatpush.bf16.msra.mxu0 0
        %1215 = vmatpush.bf16.msra.mxu0 %v1206
        %1216 = vmatmul.bf16.gmra.mxu0 %v1202
        %v1217 = vpop.f32.mrf.mxu0
        %v1218 = vadd.f32 0.0, %v1217
        %v1219 = vpop.f32.mrf.mxu0
        %1220 = vdwg.mxu0
        %v1222 = vsel %vm1065, %v1198, 0
        %v1225 = vsel %vm1204, %v1062, 0
        %1227 = vmatpush.bf16.msra.mxu0 0
        %1228 = vmatpush.bf16.msra.mxu0 0
        %1229 = vmatpush.bf16.msra.mxu0 0
        %1230 = vmatpush.bf16.msra.mxu0 0
        %1231 = vmatpush.bf16.msra.mxu0 0
        %1232 = vmatpush.bf16.msra.mxu0 0
        %1233 = vmatpush.bf16.msra.mxu0 0
        %1234 = vmatpush.bf16.msra.mxu0 %v1225
        %1235 = vmatmul.bf16.gmra.mxu0 %v1222
        %v1236 = vpop.f32.mrf.mxu0
        %v1237 = vadd.f32 0.0, %v1236
        %v1238 = vpop.f32.mrf.mxu0
        %1239 = vdwg.mxu0
        %v1241 = vsel %vm1065, %v1199, 0
        %v1244 = vsel %vm1204, %v1063, 0
        %1246 = vmatpush.bf16.msra.mxu0 0
        %1247 = vmatpush.bf16.msra.mxu0 0
        %1248 = vmatpush.bf16.msra.mxu0 0
        %1249 = vmatpush.bf16.msra.mxu0 0
        %1250 = vmatpush.bf16.msra.mxu0 0
        %1251 = vmatpush.bf16.msra.mxu0 0
        %1252 = vmatpush.bf16.msra.mxu0 0
        %1253 = vmatpush.bf16.msra.mxu0 %v1244
        %1254 = vmatmul.bf16.gmra.mxu0 %v1241
        %v1255 = vpop.f32.mrf.mxu0
        %v1256 = vadd.f32 0.0, %v1255
        %v1257 = vpop.f32.mrf.mxu0
        %1258 = vdwg.mxu0
        %v1260 = vsel %vm1065, %v1200, 0
        %v1263 = vsel %vm1204, %v1064, 0
        %1265 = vmatpush.bf16.msra.mxu0 0
        %1266 = vmatpush.bf16.msra.mxu0 0
        %1267 = vmatpush.bf16.msra.mxu0 0
        %1268 = vmatpush.bf16.msra.mxu0 0
        %1269 = vmatpush.bf16.msra.mxu0 0
        %1270 = vmatpush.bf16.msra.mxu0 0
        %1271 = vmatpush.bf16.msra.mxu0 0
        %1272 = vmatpush.bf16.msra.mxu0 %v1263
        %1273 = vmatmul.bf16.gmra.mxu0 %v1260
        %v1274 = vpop.f32.mrf.mxu0
        %v1275 = vadd.f32 0.0, %v1274
        %v1276 = vpop.f32.mrf.mxu0
        %1277 = vdwg.mxu0
        %v1278 = vpack.c.bf16 %v1218, %v1218
        %v1279 = vpack.c.bf16 %v1237, %v1237
        %v1280 = vpack.c.bf16 %v1256, %v1256
        %v1281 = vpack.c.bf16 %v1275, %v1275
        %v1282 = vld [vmem:[%s8] sm:$0xf]
        %v1283 = vld [vmem:[%s8 + $0x4] sm:$0xf]
        %v1284 = vld [vmem:[%s8 + $0x8] sm:$0xf]
        %v1285 = vld [vmem:[%s8 + $0xc] sm:$0xf]
        %v1287 = vsel %vm1065, %v1278, 0
        %v1290 = vsel %vm1204, %v1282, 0
        %1292 = vmatpush.bf16.msra.mxu0 0
        %1293 = vmatpush.bf16.msra.mxu0 0
        %1294 = vmatpush.bf16.msra.mxu0 0
        %1295 = vmatpush.bf16.msra.mxu0 0
        %1296 = vmatpush.bf16.msra.mxu0 0
        %1297 = vmatpush.bf16.msra.mxu0 0
        %1298 = vmatpush.bf16.msra.mxu0 0
        %1299 = vmatpush.bf16.msra.mxu0 %v1290
        %1300 = vmatmul.bf16.gmra.mxu0 %v1287
        %v1301 = vpop.f32.mrf.mxu0
        %v1302 = vadd.f32 0.0, %v1301
        %v1303 = vpop.f32.mrf.mxu0
        %1304 = vdwg.mxu0
        %v1306 = vsel %vm1065, %v1279, 0
        %v1309 = vsel %vm1204, %v1283, 0
        %1311 = vmatpush.bf16.msra.mxu0 0
        %1312 = vmatpush.bf16.msra.mxu0 0
        %1313 = vmatpush.bf16.msra.mxu0 0
        %1314 = vmatpush.bf16.msra.mxu0 0
        %1315 = vmatpush.bf16.msra.mxu0 0
        %1316 = vmatpush.bf16.msra.mxu0 0
        %1317 = vmatpush.bf16.msra.mxu0 0
        %1318 = vmatpush.bf16.msra.mxu0 %v1309
        %1319 = vmatmul.bf16.gmra.mxu0 %v1306
        %v1320 = vpop.f32.mrf.mxu0
        %v1321 = vadd.f32 0.0, %v1320
        %v1322 = vpop.f32.mrf.mxu0
        %1323 = vdwg.mxu0
        %v1325 = vsel %vm1065, %v1280, 0
        %v1328 = vsel %vm1204, %v1284, 0
        %1330 = vmatpush.bf16.msra.mxu0 0
        %1331 = vmatpush.bf16.msra.mxu0 0
        %1332 = vmatpush.bf16.msra.mxu0 0
        %1333 = vmatpush.bf16.msra.mxu0 0
        %1334 = vmatpush.bf16.msra.mxu0 0
        %1335 = vmatpush.bf16.msra.mxu0 0
        %1336 = vmatpush.bf16.msra.mxu0 0
        %1337 = vmatpush.bf16.msra.mxu0 %v1328
        %1338 = vmatmul.bf16.gmra.mxu0 %v1325
        %v1339 = vpop.f32.mrf.mxu0
        %v1340 = vadd.f32 0.0, %v1339
        %v1341 = vpop.f32.mrf.mxu0
        %1342 = vdwg.mxu0
        %v1344 = vsel %vm1065, %v1281, 0
        %v1347 = vsel %vm1204, %v1285, 0
        %1349 = vmatpush.bf16.msra.mxu0 0
        %1350 = vmatpush.bf16.msra.mxu0 0
        %1351 = vmatpush.bf16.msra.mxu0 0
        %1352 = vmatpush.bf16.msra.mxu0 0
        %1353 = vmatpush.bf16.msra.mxu0 0
        %1354 = vmatpush.bf16.msra.mxu0 0
        %1355 = vmatpush.bf16.msra.mxu0 0
        %1356 = vmatpush.bf16.msra.mxu0 %v1347
        %1357 = vmatmul.bf16.gmra.mxu0 %v1344
        %v1358 = vpop.f32.mrf.mxu0
        %v1359 = vadd.f32 0.0, %v1358
        %v1360 = vpop.f32.mrf.mxu0
        %1361 = vdwg.mxu0
        %v1362 = vsel %vm592, %v1302, 0.0
        %v1363 = vsel %vm592, %v1321, 0.0
        %v1364 = vadd.f32 %v1362, %v1363
        %v1365 = vsel %vm592, %v1340, 0.0
        %v1366 = vadd.f32 %v1364, %v1365
        %v1367 = vsel %vm592, %v1359, 0.0
        %v1368 = vadd.f32 %v1366, %v1367
        %v1369 = vld [vmem:[%s9] sm:$0x1]
        %v1371 = vperm.slane %v1369, 0
        %v1373 = vadd.f32 %v1368, %v1371
        %v1374 = vadd.f32 %v586, %v1373
        %v1375 = vld [vmem:[%s16] sm:$0x1]
        %v1376 = vld [vmem:[%s17] sm:$0x1]
        %v1377 = vsel %vm592, %v1374, 0.0
        %1378 = vadd.xlane.f32.xlu0 %v1377
        %v1379 = vpop.xlane.xlu0 %1378
        %v1380 = vmul.f32 %v1379, %v602
        %v1381 = vsub.f32 %v1374, %v1380
        %v1382 = vmul.f32 %v1381, %v1381
        %v1383 = vsel %vm592, %v1382, 0.0
        %1384 = vadd.xlane.f32.xlu0 %v1383
        %v1385 = vpop.xlane.xlu0 %1384
        %v1386 = vmul.f32 %v1385, %v615
        %v1388 = vperm.slane %v1375, 0
        %v1390 = vmul.f32 %v1388, %v1381
        %v1391 = vrsqrt.pop %v1386
        %v1392 = vmul.f32 %v1391, %v1386
        %v1393 = vmul.f32 %v1392, %v1391
        %v1394 = vmul.f32 0.5, %v1393
        %v1395 = vsub.f32 1.5, %v1394
        %v1396 = vmul.f32 %v1391, %v1395
        %v1397 = vmul.f32 %v1386, %v1396
        %vm1398 = vcmp.eq.f32.partialorder %v1386, inf
        %v1399 = vsel %vm1398, %v1386, %v1397
        %vm1400 = vcmp.eq.f32.partialorder %v1386, 0.0
        %v1401 = vand.u32 %v1386, 2147483648
        %v1402 = vsel %vm1400, %v1401, %v1399
        %v1403 = vadd.f32 %v1402, 1e-06
        %v1404 = vrcp.pop %v1403
        %v1405 = vmul.f32 %v1403, %v1404
        %v1406 = vsub.f32 1.0, %v1405
        %v1407 = vmul.f32 %v1404, %v1406
        %v1408 = vadd.f32 %v1404, %v1407
        %vm1409 = vweird.f32 %v1403
        %vm1410 = vweird.f32 %v1404
        %vm1411 = vmor %vm1409, %vm1410
        %v1412 = vsel %vm1411, %v1404, %v1408
        %v1413 = vand.u32 2147483647, %v1403
        %vm1414 = vcmp.eq.f32.partialorder %v1413, 8.507059e+37
        %v1415 = vand.u32 %v1403, 2147483648
        %v1416 = vor.u32 1.1754944e-38, %v1415
        %v1417 = vsel %vm1414, %v1416, %v1412
        %v1418 = vmul.f32 %v1390, %v1417
        %v1420 = vperm.slane %v1376, 0
        %v1422 = vadd.f32 %v1418, %v1420
        %v1423 = vpack.c.bf16 %v1422, %v1422
        %v1424 = vld [vmem:[%s12] sm:$0xf]
        %v1425 = vld [vmem:[%s12 + $0x4] sm:$0xf]
        %v1426 = vld [vmem:[%s12 + $0x8] sm:$0xf]
        %v1427 = vld [vmem:[%s12 + $0xc] sm:$0xf]
        %v1428 = vld [vmem:[%s13] sm:$0x1]
        %v1430 = vperm.slane %v1428, 0
        %v1436 = vunpack.c.l.b16 %v1424
        %v1437 = vunpack.c.l.b16 %v1425
        %v1438 = vunpack.c.l.b16 %v1426
        %v1439 = vunpack.c.l.b16 %v1427
        %v1440 = vpack.c.b16 %v1437, %v1436
        %v1441 = vpack.c.b16 %v1439, %v1438
        %v1445 = vsel %vm592, %v1423, 0
        %1447 = vmatpush.bf16.msra.mxu0 0
        %1448 = vmatpush.bf16.msra.mxu0 0
        %1449 = vmatpush.bf16.msra.mxu0 0
        %1450 = vmatpush.bf16.msra.mxu0 0
        %1451 = vmatpush.bf16.msra.mxu0 0
        %1452 = vmatpush.bf16.msra.mxu0 0
        %1453 = vmatpush.bf16.msra.mxu0 %v1441
        %1454 = vmatpush.bf16.msra.mxu0 %v1440
        %1455 = vmatmul.bf16.gmra.mxu0 %v1445
        %v1456 = vpop.f32.mrf.mxu0
        %v1457 = vadd.f32 %v1430, %v1456
        %v1458 = vpop.f32.mrf.mxu0
        %1459 = vdwg.mxu0
        %v1460 = vmul.f32 %v1457, 0.5
        %v1461 = vmul.f32 %v1457, 0.044715
        %v1462 = vmul.f32 %v1461, %v1457
        %v1463 = vmul.f32 %v1462, %v1457
        %v1464 = vadd.f32 %v1457, %v1463
        %v1465 = vmul.f32 %v1464, 0.7978846
        %v1466 = vtanh.pop %v1465
        %v1467 = vadd.f32 %v1466, 1.0
        %v1468 = vmul.f32 %v1460, %v1467
        %v1469 = vpack.c.bf16 %v1468, %v1468
        %v1470 = vld [vmem:[%s14] sm:$0xf]
        %v1471 = vld [vmem:[%s14 + $0x4] sm:$0xf]
        %v1472 = vld [vmem:[%s14 + $0x8] sm:$0xf]
        %v1473 = vld [vmem:[%s14 + $0xc] sm:$0xf]
        %v1474 = vld [vmem:[%s14 + $0x10] sm:$0xf]
        %v1475 = vld [vmem:[%s14 + $0x14] sm:$0xf]
        %v1476 = vld [vmem:[%s14 + $0x18] sm:$0xf]
        %v1477 = vld [vmem:[%s14 + $0x1c] sm:$0xf]
        %v1478 = vld [vmem:[%s14 + $0x20] sm:$0xf]
        %v1479 = vld [vmem:[%s14 + $0x24] sm:$0xf]
        %v1480 = vld [vmem:[%s14 + $0x28] sm:$0xf]
        %v1481 = vld [vmem:[%s14 + $0x2c] sm:$0xf]
        %v1482 = vld [vmem:[%s14 + $0x30] sm:$0xf]
        %v1483 = vld [vmem:[%s14 + $0x34] sm:$0xf]
        %v1484 = vld [vmem:[%s14 + $0x38] sm:$0xf]
        %v1485 = vld [vmem:[%s14 + $0x3c] sm:$0xf]
        %v1486 = vld [vmem:[%s15] sm:$0x1]
        %v1488 = vperm.slane %v1486, 0
        %v1506 = vunpack.c.l.b16 %v1470
        %v1507 = vunpack.c.l.b16 %v1471
        %v1508 = vunpack.c.l.b16 %v1472
        %v1509 = vunpack.c.l.b16 %v1473
        %v1510 = vunpack.c.l.b16 %v1474
        %v1511 = vunpack.c.l.b16 %v1475
        %v1512 = vunpack.c.l.b16 %v1476
        %v1513 = vunpack.c.l.b16 %v1477
        %v1514 = vunpack.c.l.b16 %v1478
        %v1515 = vunpack.c.l.b16 %v1479
        %v1516 = vunpack.c.l.b16 %v1480
        %v1517 = vunpack.c.l.b16 %v1481
        %v1518 = vunpack.c.l.b16 %v1482
        %v1519 = vunpack.c.l.b16 %v1483
        %v1520 = vunpack.c.l.b16 %v1484
        %v1521 = vunpack.c.l.b16 %v1485
        %v1522 = vpack.c.b16 %v1507, %v1506
        %v1523 = vpack.c.b16 %v1509, %v1508
        %v1524 = vpack.c.b16 %v1511, %v1510
        %v1525 = vpack.c.b16 %v1513, %v1512
        %v1526 = vpack.c.b16 %v1515, %v1514
        %v1527 = vpack.c.b16 %v1517, %v1516
        %v1528 = vpack.c.b16 %v1519, %v1518
        %v1529 = vpack.c.b16 %v1521, %v1520
        %1538 = vmatpush.bf16.msra.mxu0 %v1529
        %1539 = vmatpush.bf16.msra.mxu0 %v1528
        %1540 = vmatpush.bf16.msra.mxu0 %v1527
        %1541 = vmatpush.bf16.msra.mxu0 %v1526
        %1542 = vmatpush.bf16.msra.mxu0 %v1525
        %1543 = vmatpush.bf16.msra.mxu0 %v1524
        %1544 = vmatpush.bf16.msra.mxu0 %v1523
        %1545 = vmatpush.bf16.msra.mxu0 %v1522
        %1546 = vmatmul.bf16.gmra.mxu0 %v1469
        %v1547 = vpop.f32.mrf.mxu0
        %v1548 = vadd.f32 %v1488, %v1547
        %v1549 = vpop.f32.mrf.mxu0
        %1550 = vdwg.mxu0
        %v1551 = vadd.f32 %v1374, %v1548
        %1552 = vst.msk [vmem:[%s577] sm:$0xff] %vm592, %v1551
        %s1553 = sand.u32 %s428, 1
        %s1554 = scalar_lea.sflag [#allocation3], %s1553
        %s1555 = sand.u32 %s428, 1
        %s1556 = smul.addr %s1555, 8
        %s1557 = scalar_lea.vmem [#allocation2], %s1556
        // Predicated region
        $region93: #{tpu_custom_call.1} parent=91 // pred_check
          %p1558 = pneg %p438
        $region94: #{tpu_custom_call.1} parent=91 // pred_check_branch
          %1560 = sbr.rel (%p1558) target = $region96
        $region95: #{tpu_custom_call.1} parent=91 // pred_region
          %1562 = vsyncadd %s1554, 0
          %s1563 = smul.addr %s32, 8
          %s1564 = scalar_lea.hbm %s18, %s1563
          %s1566 = sshll.u32 %s1557, 4
          %s1567 = int_to_ptr.vmem [resolvable:$true] %s1566
          %s1568 = sshll.u32 %s1564, 4
          %s1569 = int_to_ptr.hbm [resolvable:$true] %s1568
          %1571 = dma.vmem_to_hbm [thread:$0]  %s1567, 128, %s1569, %s1554
        $region96: #{tpu_custom_call.1} parent=91 // pred_fallthru
          _
      $region92: #{tpu_custom_call.1} parent=5 // pred_fallthru
        _
      %p1572 = scmp.le.s32.totalorder 2, %s27
      // Predicated region
      $region97: #{tpu_custom_call.1} parent=5 // pred_check
        %p1573 = pneg %p1572
      $region98: #{tpu_custom_call.1} parent=5 // pred_check_branch
        %1575 = sbr.rel (%p1573) target = $region100
      $region99: #{tpu_custom_call.1} parent=5 // pred_region
        %s1576 = ssub.s32 %s27, 2
        // Predicated region
        $region101: #{tpu_custom_call.1} parent=99 // pred_check
          %p1577 = pneg %p444
        $region102: #{tpu_custom_call.1} parent=99 // pred_check_branch
          %1579 = sbr.rel (%p1577) target = $region104
        $region103: #{tpu_custom_call.1} parent=99 // pred_region
          %s1580 = sand.u32 %s429, 1
          %s1581 = scalar_lea.sflag [#allocation3], %s1580
          %s1582 = sand.u32 %s429, 1
          %s1583 = smul.addr %s1582, 8
          %s1584 = scalar_lea.vmem [#allocation2], %s1583
          %1586 = dma.done %s1581, 128
        $region104: #{tpu_custom_call.1} parent=99 // pred_fallthru
          _
      $region100: #{tpu_custom_call.1} parent=5 // pred_fallthru
        _
    $region6: #{tpu_custom_call.1} parent=1 // loop_footer
      %s31 = sadd.s32 1, %s27
    $region7: #{tpu_custom_call.1} parent=1 // loop_footer_branch
      %26 = sbr.rel target = $region3
    $region8: #{tpu_custom_call.1} parent=1 // loop_exit
      _
    %1587 = vsyncpa [#allocation3], 1
    %s1588 = scalar_lea.sflag [#allocation3], 1
    %1589 = vsyncpa %s1588, 1

</llo_original>
